<compile_context>
chip_gen: v5e
topology: v5e:2x2
jax: 0.10.0
libtpu: 0.0.40
codegen_flags: <defaults>
</compile_context>

<pallas_src>
import functools

import jax
import jax.numpy as jnp
from jax.experimental import pallas as pl
from jax.experimental.pallas import tpu as pltpu

LANE = 128
SUB = 8
EPS = 1e-12  # F.normalize eps


def _round_up(x, m):
    return (x + m - 1) // m * m


def _vmem_capacity_bytes():
    try:
        return int(pltpu.get_tpu_info().vmem_capacity_bytes)
    except Exception:
        return 64 << 20  # conservative default (v7x per-core VMEM)


def _choose_batch_tile(bp, per_b_bytes, budget_bytes):
    """Largest tb (multiple of 8, divides bp, <= bp//2) fitting the budget."""
    cap = max(8, budget_bytes // max(per_b_bytes, 1))
    cap = min(cap, bp // 2, 256)          # bp//2 => grid >= 2 (v7x megacore)
    cap = max(8, cap - cap % 8)
    for t in range(cap, 7, -8):
        if bp % t == 0:
            return t
    return 8


# -----------------------------------------------------------------------------
# Fused kernel: in-VMEM patch build -> conv matmul -> ReLU -> masked avg pool
#               -> Linear -> ReLU -> Linear -> L2 normalize.
# One grid step handles one batch tile; the spatial axis is chunked in-kernel.
# -----------------------------------------------------------------------------
def simclr_fused_kernel(x_ref, mask_ref, wconv_ref, w1_ref, w2_ref,
                        h_ref, z_ref, acc_ref, *,
                        tb, ftp, lc, n_chunks, tap_offsets, inv_hw):
    # x_ref:    (tb, Cp, Np_pad) bf16  raw input, padded-flat spatial on lanes
    # mask_ref: (1, 1, Lt)       f32   1.0 at valid conv-center positions
    # wconv_ref:(FTp, K=9*Cp)    bf16  3x3 conv weight, tap-major / chan-minor
    # w1_ref:   (FTp, FTp) bf16        w2_ref: (FTp, OUTp) bf16
    # h_ref:    (tb, FTp) f32          z_ref:  (tb, OUTp) f32
    # acc_ref:  (tb, FTp) f32 VMEM scratch -- running sum of ReLU(conv)
    k = wconv_ref.shape[1]

    acc_ref[...] = jnp.zeros_like(acc_ref)
    x = x_ref[...]                                              # (tb, Cp, Np_pad)
    # Hoist the weight broadcast out of the chunk loop (JAX does not CSE it).
    wb = jnp.broadcast_to(wconv_ref[...][None], (tb, ftp, k))   # (tb, FTp, K)

    # ---- backbone stem, chunked over the flattened padded spatial axis -----
    for ci in range(n_chunks):
        q0 = ci * lc
        # In-VMEM "im2col": 9 lane-shifted views of the raw input stacked
        # along K. Static offsets, data never leaves VMEM.
        patch = jnp.concatenate(
            [x[:, :, off + q0: off + q0 + lc] for off in tap_offsets],
            axis=1)                                             # (tb, K, lc) bf16
        conv = jnp.einsum("bfk,bkq->bfq", wb, patch,
                          preferred_element_type=jnp.float32)   # (tb, FTp, lc)
        conv = jnp.maximum(conv, 0.0) * mask_ref[:, :, q0:q0 + lc]
        acc_ref[...] += jnp.sum(conv, axis=-1)                  # partial pool

    h = acc_ref[...] * inv_hw                                   # global avg pool
    h_ref[...] = h                                              # (tb, FTp) f32

    # ---- projection head + F.normalize(dim=1) ------------------------------
    a = jnp.dot(h.astype(jnp.bfloat16), w1_ref[...],
                preferred_element_type=jnp.float32)
    a = jnp.maximum(a, 0.0)
    z = jnp.dot(a.astype(jnp.bfloat16), w2_ref[...],
                preferred_element_type=jnp.float32)             # (tb, OUTp) f32
    # Padded lanes of z are exactly zero (zero-padded weight columns), so the
    # full-lane sum equals the logical sum.  z/max(||z||,eps) via rsqrt (EUP).
    ssq = jnp.sum(z * z, axis=1, keepdims=True)
    z_ref[...] = z * jax.lax.rsqrt(jnp.maximum(ssq, EPS * EPS))


# -----------------------------------------------------------------------------
# SimCLR forward wrapper (returns (h, z) like SimCLR_Model.forward)
# -----------------------------------------------------------------------------
def simclr_forward(x, params):
    B, C, H, W = x.shape
    hw = H * W
    ft_dim = params["wconv"].shape[0]
    out_dim = params["w2"].shape[1]

    cp = _round_up(C, SUB)          # channels -> sublane aligned
    ftp = _round_up(ft_dim, LANE)   # lane-dense feature dims
    outp = _round_up(out_dim, LANE)
    k = 9 * cp                      # contraction dim (left unpadded)

    # Padded-flat spatial layout: P[c, h', w'], h'/w' in [0,H+2)/[0,W+2),
    # flattened on lanes.  Conv centers live at q = h*(W+2)+w + (W+3).
    wp2 = W + 2
    np_flat = (H + 2) * wp2
    ltot = H * wp2 - 2                          # flat window covering centers
    lc = min(512, _round_up(ltot, LANE))        # spatial chunk (lanes)
    n_chunks = pl.cdiv(ltot, lc)
    lt = n_chunks * lc
    np_pad = _round_up(2 * W + 6 + lt, LANE)    # all tap slices stay in-bounds
    tap_offsets = tuple(dy * wp2 + dx for dy in range(3) for dx in range(3))

    bp = _round_up(max(B, 1), 16)               # pad batch; padded rows -> 0

    # ---- cheap layout prep (raw input only, no im2col slab) ----------------
    xp = jnp.pad(x, ((0, bp - B), (0, cp - C), (1, 1), (1, 1)))
    xp = xp.reshape(bp, cp, np_flat)
    xp = jnp.pad(xp, ((0, 0), (0, 0), (0, np_pad - np_flat))).astype(jnp.bfloat16)

    # Validity mask over the chunked flat window (1.0 at true HxW centers).
    q = jnp.arange(lt, dtype=jnp.int32) + (W + 3)
    hh, ww = q // wp2, q % wp2
    mask = ((hh >= 1) & (hh <= H) & (ww >= 1) & (ww <= W))
    mask = mask.astype(jnp.float32).reshape(1, 1, lt)

    # Weights: zero-padded so padded lanes/rows are inert, bf16 for the MXU.
    wconv = jnp.pad(params["wconv"].astype(jnp.float32),
                    ((0, ftp - ft_dim), (0, 0), (0, cp - C)))
    wconv = wconv.reshape(ftp, k).astype(jnp.bfloat16)
    w1 = jnp.pad(params["w1"],
                 ((0, ftp - ft_dim), (0, ftp - ft_dim))).astype(jnp.bfloat16)
    w2 = jnp.pad(params["w2"],
                 ((0, ftp - ft_dim), (0, outp - out_dim))).astype(jnp.bfloat16)

    # ---- generation-aware VMEM budgeting ------------------------------------
    vmem_cap = _vmem_capacity_bytes()
    vmem_limit = int(min(vmem_cap * 3 // 4, 96 << 20))   # ~48MiB v7x / 96MiB v5e,v6e
    per_b = (2 * cp * np_pad * 2        # double-buffered input block (bf16)
             + k * lc * 2               # patch slab chunk (bf16)
             + ftp * k * 2              # broadcast conv weight (bf16)
             + 2 * ftp * lc * 4         # conv + masked-relu chunk (f32)
             + 4 * (3 * ftp + outp))    # acc / h / a / z rows (f32)
    fixed = 2 * (ftp * k + ftp * ftp + ftp * outp) * 2 + 2 * lt * 4 + (2 << 20)
    budget = max(per_b * 8, vmem_limit // 2 - fixed)
    tb = _choose_batch_tile(bp, per_b, budget)

    kernel = functools.partial(
        simclr_fused_kernel, tb=tb, ftp=ftp, lc=lc, n_chunks=n_chunks,
        tap_offsets=tap_offsets, inv_hw=1.0 / float(hw))

    h_pad, z_pad = pl.pallas_call(
        kernel,
        out_shape=(jax.ShapeDtypeStruct((bp, ftp), jnp.float32),
                   jax.ShapeDtypeStruct((bp, outp), jnp.float32)),
        grid=(bp // tb,),                                   # always >= 2 steps
        in_specs=[
            pl.BlockSpec((tb, cp, np_pad), lambda i: (i, 0, 0)),   # raw input
            pl.BlockSpec((1, 1, lt), lambda i: (0, 0, 0)),         # pool mask
            pl.BlockSpec((ftp, k), lambda i: (0, 0)),              # conv weight
            pl.BlockSpec((ftp, ftp), lambda i: (0, 0)),            # proj w1
            pl.BlockSpec((ftp, outp), lambda i: (0, 0)),           # proj w2
        ],
        out_specs=(
            pl.BlockSpec((tb, ftp), lambda i: (i, 0)),             # h
            pl.BlockSpec((tb, outp), lambda i: (i, 0)),            # z
        ),
        scratch_shapes=[pltpu.VMEM((tb, ftp), jnp.float32)],       # pool acc
        compiler_params=pltpu.CompilerParams(
            dimension_semantics=("parallel",),                     # megacore
            vmem_limit_bytes=vmem_limit,
        ),
    )(xp, mask, wconv, w1, w2)

    # torch.flatten(h, 1) is a no-op: backbone output is already (B, ft_dim).
    return h_pad[:B, :ft_dim], z_pad[:B, :out_dim]


# -----------------------------------------------------------------------------
# Params + pure-JAX reference (for correctness checking)
# -----------------------------------------------------------------------------
def init_params(key, in_ch, ft_dim, out_dim):
    k0, k1, k2 = jax.random.split(key, 3)
    # 3x3 conv weight stored as (ft, 9, C): wconv[f, dy*3+dx, c] corresponds
    # to torch conv weight[f, c, dy, dx].
    wconv = 0.1 * jax.random.normal(k0, (ft_dim, 9, in_ch), dtype=jnp.float32)
    # nn.Linear(ft, ft, bias=False): stored as (in, out) == torch weight.T.
    w1 = 0.1 * jax.random.normal(k1, (ft_dim, ft_dim), dtype=jnp.float32)
    w2 = 0.1 * jax.random.normal(k2, (ft_dim, out_dim), dtype=jnp.float32)
    return {"wconv": wconv, "w1": w1, "w2": w2}


def reference_forward(x, params):
    """Pure-JAX f32 reference with identical semantics."""
    B, C, H, W = x.shape
    wconv = params["wconv"]                                  # (ft, 9, C)
    ft = wconv.shape[0]
    xp = jnp.pad(x, ((0, 0), (0, 0), (1, 1), (1, 1)))
    out = jnp.zeros((B, ft, H, W), jnp.float32)
    for dy in range(3):
        for dx in range(3):
            xs = xp[:, :, dy:dy + H, dx:dx + W]              # (B, C, H, W)
            out = out + jnp.einsum("fc,bchw->bfhw", wconv[:, dy * 3 + dx, :], xs)
    h = jnp.mean(jnp.maximum(out, 0.0), axis=(2, 3))         # (B, ft)
    a = jnp.maximum(h @ params["w1"], 0.0)
    z = a @ params["w2"]
    z = z / jnp.maximum(jnp.linalg.norm(z, axis=1, keepdims=True), EPS)
    return h, z


if __name__ == "__main__":
    B, C, H, W = 2, 3, 16, 16       # small CIFAR-like input (NCHW)
    ft_dim, out_dim = 32, 16

    key = jax.random.PRNGKey(0)
    kx, kparams = jax.random.split(key)
    x = jax.random.normal(kx, (B, C, H, W), dtype=jnp.float32)
    params = init_params(kparams, C, ft_dim, out_dim)

    h, z = jax.jit(simclr_forward)(x, params)
    jax.block_until_ready((h, z))

    assert h.shape == (B, ft_dim) and z.shape == (B, out_dim)
    assert bool(jnp.all(jnp.isfinite(h))) and bool(jnp.all(jnp.isfinite(z)))
    # F.normalize semantics: unit-norm rows (normalization done in f32).
    assert jnp.allclose(jnp.linalg.norm(z, axis=1), 1.0, atol=2e-3)

    # Compare against the pure-JAX f32 reference (bf16 matmul operands ->
    # loose tolerances).
    h_ref, z_ref = reference_forward(x, params)
    assert jnp.allclose(h, h_ref, rtol=5e-2, atol=5e-2)
    assert jnp.allclose(z, z_ref, atol=5e-2)

    print("KERNEL_OK")
</pallas_src>

<mosaic_0001>
module attributes {stable_mosaic.version = 11 : i64} {
  func.func @simclr_fused_kernel(%arg0: i32, %arg1: memref<8x8x512xbf16, #tpu.memory_space<vmem>>, %arg2: memref<1x1x384xf32, #tpu.memory_space<vmem>>, %arg3: memref<128x72xbf16, #tpu.memory_space<vmem>>, %arg4: memref<128x128xbf16, #tpu.memory_space<vmem>>, %arg5: memref<128x128xbf16, #tpu.memory_space<vmem>>, %arg6: memref<8x128xf32, #tpu.memory_space<vmem>>, %arg7: memref<8x128xf32, #tpu.memory_space<vmem>>, %arg8: memref<8x128xf32, #tpu.memory_space<vmem>>) attributes {dimension_semantics = [#tpu.dimension_semantics<parallel>], iteration_bounds = array<i64: 2>, scalar_prefetch = 0 : i64, scratch_operands = 1 : i64, tpu.core_type = #tpu.core_type<tc>, window_params = [{transform_indices = @transform_0, window_bounds = array<i64: 8, 8, 512>}, {pipeline_mode = #tpu.pipeline_mode<synchronous>, transform_indices = @transform_1, window_bounds = array<i64: 1, 1, 384>}, {pipeline_mode = #tpu.pipeline_mode<synchronous>, transform_indices = @transform_2, window_bounds = array<i64: 128, 72>}, {pipeline_mode = #tpu.pipeline_mode<synchronous>, transform_indices = @transform_3, window_bounds = array<i64: 128, 128>}, {pipeline_mode = #tpu.pipeline_mode<synchronous>, transform_indices = @transform_4, window_bounds = array<i64: 128, 128>}, {transform_indices = @transform_5, window_bounds = array<i64: 8, 128>}, {transform_indices = @transform_6, window_bounds = array<i64: 8, 128>}]} {
    %cst = arith.constant 0.000000e+00 : f32
    %0 = vector.broadcast %cst : f32 to vector<8x128xf32>
    %c0 = arith.constant 0 : index
    %c0_0 = arith.constant 0 : index
    %1 = vector.load %arg8[%c0, %c0_0] : memref<8x128xf32, #tpu.memory_space<vmem>>, vector<8x128xf32>
    tpu.vector_store %arg8[%c0, %c0_0], %0 {strides = array<i32>} : memref<8x128xf32, #tpu.memory_space<vmem>>, vector<8x128xf32>,
    %c0_1 = arith.constant 0 : index
    %c0_2 = arith.constant 0 : index
    %c0_3 = arith.constant 0 : index
    %2 = vector.load %arg1[%c0_1, %c0_2, %c0_3] : memref<8x8x512xbf16, #tpu.memory_space<vmem>>, vector<8x8x512xbf16>
    %c0_4 = arith.constant 0 : index
    %c0_5 = arith.constant 0 : index
    %3 = vector.load %arg3[%c0_4, %c0_5] : memref<128x72xbf16, #tpu.memory_space<vmem>>, vector<128x72xbf16>
    %4 = vector.shape_cast %3 : vector<128x72xbf16> to vector<1x128x72xbf16>
    %5 = vector.shape_cast %4 : vector<1x128x72xbf16> to vector<1x128x72xbf16>
    %6 = vector.broadcast %5 : vector<1x128x72xbf16> to vector<8x128x72xbf16>
    %7 = vector.extract_strided_slice %2 {offsets = [0, 0, 0], sizes = [8, 8, 384], strides = [1, 1, 1]} : vector<8x8x512xbf16> to vector<8x8x384xbf16>
    %8 = vector.extract_strided_slice %2 {offsets = [0, 0, 1], sizes = [8, 8, 384], strides = [1, 1, 1]} : vector<8x8x512xbf16> to vector<8x8x384xbf16>
    %9 = vector.extract_strided_slice %2 {offsets = [0, 0, 2], sizes = [8, 8, 384], strides = [1, 1, 1]} : vector<8x8x512xbf16> to vector<8x8x384xbf16>
    %10 = vector.extract_strided_slice %2 {offsets = [0, 0, 18], sizes = [8, 8, 384], strides = [1, 1, 1]} : vector<8x8x512xbf16> to vector<8x8x384xbf16>
    %11 = vector.extract_strided_slice %2 {offsets = [0, 0, 19], sizes = [8, 8, 384], strides = [1, 1, 1]} : vector<8x8x512xbf16> to vector<8x8x384xbf16>
    %12 = vector.extract_strided_slice %2 {offsets = [0, 0, 20], sizes = [8, 8, 384], strides = [1, 1, 1]} : vector<8x8x512xbf16> to vector<8x8x384xbf16>
    %13 = vector.extract_strided_slice %2 {offsets = [0, 0, 36], sizes = [8, 8, 384], strides = [1, 1, 1]} : vector<8x8x512xbf16> to vector<8x8x384xbf16>
    %14 = vector.extract_strided_slice %2 {offsets = [0, 0, 37], sizes = [8, 8, 384], strides = [1, 1, 1]} : vector<8x8x512xbf16> to vector<8x8x384xbf16>
    %15 = vector.extract_strided_slice %2 {offsets = [0, 0, 38], sizes = [8, 8, 384], strides = [1, 1, 1]} : vector<8x8x512xbf16> to vector<8x8x384xbf16>
    %16 = tpu.concatenate %7, %8, %9, %10, %11, %12, %13, %14, %15 in 1 : vector<8x8x384xbf16>, vector<8x8x384xbf16>, vector<8x8x384xbf16>, vector<8x8x384xbf16>, vector<8x8x384xbf16>, vector<8x8x384xbf16>, vector<8x8x384xbf16>, vector<8x8x384xbf16>, vector<8x8x384xbf16> -> vector<8x72x384xbf16>
    "tpu.trace_start"() <{level = 10 : i32, message = "bfk,bkq->bfq"}> : () -> ()
    %cst_6 = arith.constant dense<0.000000e+00> : vector<8x128x384xf32>
    %17 = tpu.matmul %6, %16, %cst_6 {dimension_numbers = #tpu.dot_dimension_numbers<[2], [1], [1], [2], [0, 0, 0, 1, 1, 2], [0], [0]>} : vector<8x128x72xbf16>, vector<8x72x384xbf16>, vector<8x128x384xf32> -> vector<8x128x384xf32>
    "tpu.trace_stop"() : () -> ()
    %cst_7 = arith.constant 0.000000e+00 : f32
    %18 = vector.broadcast %cst_7 : f32 to vector<8x128x384xf32>
    %19 = arith.maximumf %17, %18 : vector<8x128x384xf32>
    %c0_8 = arith.constant 0 : index
    %c0_9 = arith.constant 0 : index
    %c0_10 = arith.constant 0 : index
    %20 = vector.load %arg2[%c0_8, %c0_9, %c0_10] : memref<1x1x384xf32, #tpu.memory_space<vmem>>, vector<1x1x384xf32>
    %21 = vector.broadcast %20 : vector<1x1x384xf32> to vector<8x128x384xf32>
    %22 = arith.mulf %19, %21 : vector<8x128x384xf32>
    %c0_11 = arith.constant 0 : index
    %c0_12 = arith.constant 0 : index
    %23 = vector.load %arg8[%c0_11, %c0_12] : memref<8x128xf32, #tpu.memory_space<vmem>>, vector<8x128xf32>
    %cst_13 = arith.constant dense<0.000000e+00> : vector<8x128xf32>
    %24 = vector.multi_reduction <add>, %22, %cst_13 [2] : vector<8x128x384xf32> to vector<8x128xf32>
    %25 = arith.addf %23, %24 : vector<8x128xf32>
    %c0_14 = arith.constant 0 : index
    %c0_15 = arith.constant 0 : index
    %26 = vector.load %arg8[%c0_14, %c0_15] : memref<8x128xf32, #tpu.memory_space<vmem>>, vector<8x128xf32>
    tpu.vector_store %arg8[%c0_14, %c0_15], %25 {strides = array<i32>} : memref<8x128xf32, #tpu.memory_space<vmem>>, vector<8x128xf32>,
    %c0_16 = arith.constant 0 : index
    %c0_17 = arith.constant 0 : index
    %27 = vector.load %arg8[%c0_16, %c0_17] : memref<8x128xf32, #tpu.memory_space<vmem>>, vector<8x128xf32>
    %cst_18 = arith.constant 3.906250e-03 : f32
    %28 = vector.broadcast %cst_18 : f32 to vector<8x128xf32>
    %29 = arith.mulf %27, %28 : vector<8x128xf32>
    %c0_19 = arith.constant 0 : index
    %c0_20 = arith.constant 0 : index
    %30 = vector.load %arg6[%c0_19, %c0_20] : memref<8x128xf32, #tpu.memory_space<vmem>>, vector<8x128xf32>
    tpu.vector_store %arg6[%c0_19, %c0_20], %29 {strides = array<i32>} : memref<8x128xf32, #tpu.memory_space<vmem>>, vector<8x128xf32>,
    %31 = arith.truncf %29 : vector<8x128xf32> to vector<8x128xbf16>
    %c0_21 = arith.constant 0 : index
    %c0_22 = arith.constant 0 : index
    %32 = vector.load %arg4[%c0_21, %c0_22] : memref<128x128xbf16, #tpu.memory_space<vmem>>, vector<128x128xbf16>
    %cst_23 = arith.constant dense<0.000000e+00> : vector<8x128xf32>
    %33 = tpu.matmul %31, %32, %cst_23 {dimension_numbers = #tpu.dot_dimension_numbers<[1], [0], [0], [1], [0, 0, 1, 1], [], []>} : vector<8x128xbf16>, vector<128x128xbf16>, vector<8x128xf32> -> vector<8x128xf32>
    %cst_24 = arith.constant 0.000000e+00 : f32
    %34 = vector.broadcast %cst_24 : f32 to vector<8x128xf32>
    %35 = arith.maximumf %33, %34 : vector<8x128xf32>
    %36 = arith.truncf %35 : vector<8x128xf32> to vector<8x128xbf16>
    %c0_25 = arith.constant 0 : index
    %c0_26 = arith.constant 0 : index
    %37 = vector.load %arg5[%c0_25, %c0_26] : memref<128x128xbf16, #tpu.memory_space<vmem>>, vector<128x128xbf16>
    %cst_27 = arith.constant dense<0.000000e+00> : vector<8x128xf32>
    %38 = tpu.matmul %36, %37, %cst_27 {dimension_numbers = #tpu.dot_dimension_numbers<[1], [0], [0], [1], [0, 0, 1, 1], [], []>} : vector<8x128xbf16>, vector<128x128xbf16>, vector<8x128xf32> -> vector<8x128xf32>
    %39 = arith.mulf %38, %38 : vector<8x128xf32>
    %cst_28 = arith.constant dense<0.000000e+00> : vector<8xf32>
    %40 = vector.multi_reduction <add>, %39, %cst_28 [1] : vector<8x128xf32> to vector<8xf32>
    %41 = vector.shape_cast %40 : vector<8xf32> to vector<8x1xf32>
    %cst_29 = arith.constant 1.000000e-24 : f32
    %42 = vector.broadcast %cst_29 : f32 to vector<8x1xf32>
    %43 = arith.maximumf %41, %42 : vector<8x1xf32>
    %44 = math.rsqrt %43 : vector<8x1xf32>
    %45 = vector.broadcast %44 : vector<8x1xf32> to vector<8x128xf32>
    %46 = arith.mulf %38, %45 : vector<8x128xf32>
    %c0_30 = arith.constant 0 : index
    %c0_31 = arith.constant 0 : index
    %47 = vector.load %arg7[%c0_30, %c0_31] : memref<8x128xf32, #tpu.memory_space<vmem>>, vector<8x128xf32>
    tpu.vector_store %arg7[%c0_30, %c0_31], %46 {strides = array<i32>} : memref<8x128xf32, #tpu.memory_space<vmem>>, vector<8x128xf32>,
    return
  }
  func.func @transform_0(%arg0: i32) -> (i32, i32, i32) {
    %c0_i32 = arith.constant 0 : i32
    %c0_i32_0 = arith.constant 0 : i32
    %c0_i32_1 = arith.constant 0 : i32
    return %arg0, %c0_i32, %c0_i32_0 : i32, i32, i32
  }
  func.func @transform_1(%arg0: i32) -> (i32, i32, i32) {
    %c0_i32 = arith.constant 0 : i32
    %c0_i32_0 = arith.constant 0 : i32
    %c0_i32_1 = arith.constant 0 : i32
    %c0_i32_2 = arith.constant 0 : i32
    return %c0_i32, %c0_i32_0, %c0_i32_1 : i32, i32, i32
  }
  func.func @transform_2(%arg0: i32) -> (i32, i32) {
    %c0_i32 = arith.constant 0 : i32
    %c0_i32_0 = arith.constant 0 : i32
    %c0_i32_1 = arith.constant 0 : i32
    return %c0_i32, %c0_i32_0 : i32, i32
  }
  func.func @transform_3(%arg0: i32) -> (i32, i32) {
    %c0_i32 = arith.constant 0 : i32
    %c0_i32_0 = arith.constant 0 : i32
    %c0_i32_1 = arith.constant 0 : i32
    return %c0_i32, %c0_i32_0 : i32, i32
  }
  func.func @transform_4(%arg0: i32) -> (i32, i32) {
    %c0_i32 = arith.constant 0 : i32
    %c0_i32_0 = arith.constant 0 : i32
    %c0_i32_1 = arith.constant 0 : i32
    return %c0_i32, %c0_i32_0 : i32, i32
  }
  func.func @transform_5(%arg0: i32) -> (i32, i32) {
    %c0_i32 = arith.constant 0 : i32
    %c0_i32_0 = arith.constant 0 : i32
    return %arg0, %c0_i32 : i32, i32
  }
  func.func @transform_6(%arg0: i32) -> (i32, i32) {
    %c0_i32 = arith.constant 0 : i32
    %c0_i32_0 = arith.constant 0 : i32
    return %arg0, %c0_i32 : i32, i32
  }
}

</mosaic_0001>

<llo_original>
// kernel: simclr_forward.1
$region0: #{simclr_forward.1}
  #allocation0 [shape = 'u32[]', space=smem, size = 0x4, offset = 0x4, fixed_abs, tag = 'smem constant byte address 0x4 - core index']
  #allocation1 [shape = 'u32[72,128]{1,0:T(1,128)}', space=vmem, size = 0x9000, scoped, tag = 'internal scratch']
  #allocation2 [shape = 'f32[8,128]{1,0:T(8,128)}', space=vmem, size = 0x1000, scoped, tag = 'scratch operand']
  %s0 = inlined_call_operand.vmem [shape: bf16[16,8,512], index: 0, kind: input, shape index: {}]
  %s1 = inlined_call_operand.vmem [shape: f32[1,1,384], index: 1, kind: input, shape index: {}]
  %s2 = inlined_call_operand.vmem [shape: bf16[128,72], index: 2, kind: input, shape index: {}]
  %s3 = inlined_call_operand.vmem [shape: bf16[128,128], index: 3, kind: input, shape index: {}]
  %s4 = inlined_call_operand.vmem [shape: bf16[128,128], index: 4, kind: input, shape index: {}]
  %s5 = inlined_call_operand.vmem [shape: f32[16,128], index: 5, kind: output, shape index: {0}]
  %s6 = inlined_call_operand.vmem [shape: f32[16,128], index: 6, kind: output, shape index: {1}]
  %7 = xla_tuple %s5, %s6
  %s8 = sld [smem:[#allocation0]]
  $region61: #{simclr_forward.1} parent=0
    _
  %s10 = ssub.s32 1, %s8
  %s11 = scalar_select 0, %s10, %s8
  loop: start=0, step=1, limit=4
  $region2: #{simclr_forward.1} parent=0 // loop_pre_header
    _
  $region3: #{simclr_forward.1} parent=0 // loop_header
    %s13 = sphi 0, %s17
    %p14 = scmp.ge.s32.totalorder %s13, 4
    %s23 = sphi 0, %s25
    %s26 = sphi 0, %s23
    %s27 = sphi 0, %s26
    %s43 = sphi 0, %s27
    %s47 = sphi 0, %s47
    %s49 = sphi 0, %s47
    %s50 = sphi 0, %s49
    %s64 = sphi 0, %s50
    %s68 = sphi 0, %s68
    %s70 = sphi 0, %s68
    %s71 = sphi 0, %s70
    %s85 = sphi 0, %s71
    %s89 = sphi 0, %s89
    %s91 = sphi 0, %s89
    %s92 = sphi 0, %s91
    %s106 = sphi 0, %s92
    %s110 = sphi 0, %s110
    %s112 = sphi 0, %s110
    %s113 = sphi 0, %s112
    %s127 = sphi 0, %s113
    %s133 = sphi 0, %s135
    %s136 = sphi 0, %s133
    %s137 = sphi 0, %s136
    %s153 = sphi 0, %s137
    %s159 = sphi 0, %s161
    %s162 = sphi 0, %s159
    %s163 = sphi 0, %s162
    %s179 = sphi 0, %s163
  $region4: #{simclr_forward.1} parent=0 // loop_header_branch
    %16 = sbr.rel (%p14) target = $region8
  $region5: #{simclr_forward.1} parent=0 // loop_body
    %s18 = ssub.s32 %s13, 1
    %s19 = ssub.s32 %s13, 2
    %s20 = sadd.s32 %s13, 1
    %s21 = ssub.s32 %s13, %s20
    %p22 = scmp.eq.s32.totalorder %s21, 0
    %s24 = sadd.s32 %s23, 1
    %s25 = scalar_select %p22, %s23, %s24
    %p28 = pneg %p22
    %p29 = scmp.eq.s32.totalorder %s13, 1
    %p30 = por %p28, %p29
    %p31 = scmp.ne.s32.totalorder %s23, %s26
    %p32 = scmp.eq.s32.totalorder %s13, 0
    %p33 = por %p31, %p32
    %p34 = scmp.ne.s32.totalorder %s23, %s26
    %p35 = scmp.eq.s32.totalorder %s18, 1
    %p36 = por %p34, %p35
    %p37 = scmp.ne.s32.totalorder %s26, %s27
    %p38 = scmp.eq.s32.totalorder %s18, 0
    %p39 = por %p37, %p38
    %p40 = scmp.ne.s32.totalorder %s26, %s27
    %p41 = scmp.eq.s32.totalorder %s19, 1
    %p42 = por %p40, %p41
    %p44 = scmp.ne.s32.totalorder %s27, %s43
    %p45 = scmp.eq.s32.totalorder %s19, 0
    %p46 = por %p44, %p45
    %s48 = sadd.s32 %s47, 1
    %p51 = scmp.eq.s32.totalorder %s13, 1
    %p52 = scmp.ne.s32.totalorder %s47, %s49
    %p53 = scmp.eq.s32.totalorder %s13, 0
    %p54 = por %p52, %p53
    %p55 = scmp.ne.s32.totalorder %s47, %s49
    %p56 = scmp.eq.s32.totalorder %s18, 1
    %p57 = por %p55, %p56
    %p58 = scmp.ne.s32.totalorder %s49, %s50
    %p59 = scmp.eq.s32.totalorder %s18, 0
    %p60 = por %p58, %p59
    %p61 = scmp.ne.s32.totalorder %s49, %s50
    %p62 = scmp.eq.s32.totalorder %s19, 1
    %p63 = por %p61, %p62
    %p65 = scmp.ne.s32.totalorder %s50, %s64
    %p66 = scmp.eq.s32.totalorder %s19, 0
    %p67 = por %p65, %p66
    %s69 = sadd.s32 %s68, 1
    %p72 = scmp.eq.s32.totalorder %s13, 1
    %p73 = scmp.ne.s32.totalorder %s68, %s70
    %p74 = scmp.eq.s32.totalorder %s13, 0
    %p75 = por %p73, %p74
    %p76 = scmp.ne.s32.totalorder %s68, %s70
    %p77 = scmp.eq.s32.totalorder %s18, 1
    %p78 = por %p76, %p77
    %p79 = scmp.ne.s32.totalorder %s70, %s71
    %p80 = scmp.eq.s32.totalorder %s18, 0
    %p81 = por %p79, %p80
    %p82 = scmp.ne.s32.totalorder %s70, %s71
    %p83 = scmp.eq.s32.totalorder %s19, 1
    %p84 = por %p82, %p83
    %p86 = scmp.ne.s32.totalorder %s71, %s85
    %p87 = scmp.eq.s32.totalorder %s19, 0
    %p88 = por %p86, %p87
    %s90 = sadd.s32 %s89, 1
    %p93 = scmp.eq.s32.totalorder %s13, 1
    %p94 = scmp.ne.s32.totalorder %s89, %s91
    %p95 = scmp.eq.s32.totalorder %s13, 0
    %p96 = por %p94, %p95
    %p97 = scmp.ne.s32.totalorder %s89, %s91
    %p98 = scmp.eq.s32.totalorder %s18, 1
    %p99 = por %p97, %p98
    %p100 = scmp.ne.s32.totalorder %s91, %s92
    %p101 = scmp.eq.s32.totalorder %s18, 0
    %p102 = por %p100, %p101
    %p103 = scmp.ne.s32.totalorder %s91, %s92
    %p104 = scmp.eq.s32.totalorder %s19, 1
    %p105 = por %p103, %p104
    %p107 = scmp.ne.s32.totalorder %s92, %s106
    %p108 = scmp.eq.s32.totalorder %s19, 0
    %p109 = por %p107, %p108
    %s111 = sadd.s32 %s110, 1
    %p114 = scmp.eq.s32.totalorder %s13, 1
    %p115 = scmp.ne.s32.totalorder %s110, %s112
    %p116 = scmp.eq.s32.totalorder %s13, 0
    %p117 = por %p115, %p116
    %p118 = scmp.ne.s32.totalorder %s110, %s112
    %p119 = scmp.eq.s32.totalorder %s18, 1
    %p120 = por %p118, %p119
    %p121 = scmp.ne.s32.totalorder %s112, %s113
    %p122 = scmp.eq.s32.totalorder %s18, 0
    %p123 = por %p121, %p122
    %p124 = scmp.ne.s32.totalorder %s112, %s113
    %p125 = scmp.eq.s32.totalorder %s19, 1
    %p126 = por %p124, %p125
    %p128 = scmp.ne.s32.totalorder %s113, %s127
    %p129 = scmp.eq.s32.totalorder %s19, 0
    %p130 = por %p128, %p129
    %s131 = ssub.s32 %s13, %s20
    %p132 = scmp.eq.s32.totalorder %s131, 0
    %s134 = sadd.s32 %s133, 1
    %s135 = scalar_select %p132, %s133, %s134
    %p138 = pneg %p132
    %p139 = scmp.eq.s32.totalorder %s13, 1
    %p140 = por %p138, %p139
    %p141 = scmp.ne.s32.totalorder %s133, %s136
    %p142 = scmp.eq.s32.totalorder %s13, 0
    %p143 = por %p141, %p142
    %p144 = scmp.ne.s32.totalorder %s133, %s136
    %p145 = scmp.eq.s32.totalorder %s18, 1
    %p146 = por %p144, %p145
    %p147 = scmp.ne.s32.totalorder %s136, %s137
    %p148 = scmp.eq.s32.totalorder %s18, 0
    %p149 = por %p147, %p148
    %p150 = scmp.ne.s32.totalorder %s136, %s137
    %p151 = scmp.eq.s32.totalorder %s19, 1
    %p152 = por %p150, %p151
    %p154 = scmp.ne.s32.totalorder %s137, %s153
    %p155 = scmp.eq.s32.totalorder %s19, 0
    %p156 = por %p154, %p155
    %s157 = ssub.s32 %s13, %s20
    %p158 = scmp.eq.s32.totalorder %s157, 0
    %s160 = sadd.s32 %s159, 1
    %s161 = scalar_select %p158, %s159, %s160
    %p164 = pneg %p158
    %p165 = scmp.eq.s32.totalorder %s13, 1
    %p166 = por %p164, %p165
    %p167 = scmp.ne.s32.totalorder %s159, %s162
    %p168 = scmp.eq.s32.totalorder %s13, 0
    %p169 = por %p167, %p168
    %p170 = scmp.ne.s32.totalorder %s159, %s162
    %p171 = scmp.eq.s32.totalorder %s18, 1
    %p172 = por %p170, %p171
    %p173 = scmp.ne.s32.totalorder %s162, %s163
    %p174 = scmp.eq.s32.totalorder %s18, 0
    %p175 = por %p173, %p174
    %p176 = scmp.ne.s32.totalorder %s162, %s163
    %p177 = scmp.eq.s32.totalorder %s19, 1
    %p178 = por %p176, %p177
    %p180 = scmp.ne.s32.totalorder %s163, %s179
    %p181 = scmp.eq.s32.totalorder %s19, 0
    %p182 = por %p180, %p181
    %p183 = scmp.le.s32.totalorder 1, %s13
    %p184 = scmp.lt.s32.totalorder %s13, 3
    %p185 = pnand %p183, %p184
    %p186 = pneg %p185
    // Predicated region
    $region9: #{simclr_forward.1} parent=5 // pred_check
      _
    $region10: #{simclr_forward.1} parent=5 // pred_check_branch
      %188 = sbr.rel (%p185) target = $region12
    $region11: #{simclr_forward.1} parent=5 // pred_region
      %s189 = ssub.s32 %s13, 1
      // Predicated region
      $region13: #{simclr_forward.1} parent=11 // pred_check
        %p190 = pneg %p60
      $region14: #{simclr_forward.1} parent=11 // pred_check_branch
        %192 = sbr.rel (%p190) target = $region16
      $region15: #{simclr_forward.1} parent=11 // pred_region
        _
      $region16: #{simclr_forward.1} parent=11 // pred_fallthru
        _
      // Predicated region
      $region17: #{simclr_forward.1} parent=11 // pred_check
        %p193 = pneg %p81
      $region18: #{simclr_forward.1} parent=11 // pred_check_branch
        %195 = sbr.rel (%p193) target = $region20
      $region19: #{simclr_forward.1} parent=11 // pred_region
        _
      $region20: #{simclr_forward.1} parent=11 // pred_fallthru
        _
      // Predicated region
      $region21: #{simclr_forward.1} parent=11 // pred_check
        %p196 = pneg %p102
      $region22: #{simclr_forward.1} parent=11 // pred_check_branch
        %198 = sbr.rel (%p196) target = $region24
      $region23: #{simclr_forward.1} parent=11 // pred_region
        _
      $region24: #{simclr_forward.1} parent=11 // pred_fallthru
        _
      // Predicated region
      $region25: #{simclr_forward.1} parent=11 // pred_check
        %p199 = pneg %p123
      $region26: #{simclr_forward.1} parent=11 // pred_check_branch
        %201 = sbr.rel (%p199) target = $region28
      $region27: #{simclr_forward.1} parent=11 // pred_region
        _
      $region28: #{simclr_forward.1} parent=11 // pred_fallthru
        _
    $region12: #{simclr_forward.1} parent=5 // pred_fallthru
      _
    %p202 = scmp.lt.s32.totalorder %s13, 2
    // Predicated region
    $region29: #{simclr_forward.1} parent=5 // pred_check
      %p203 = pneg %p202
    $region30: #{simclr_forward.1} parent=5 // pred_check_branch
      %205 = sbr.rel (%p203) target = $region32
    $region31: #{simclr_forward.1} parent=5 // pred_region
      // Predicated region
      $region33: #{simclr_forward.1} parent=31 // pred_check
        %p206 = pneg %p33
      $region34: #{simclr_forward.1} parent=31 // pred_check_branch
        %208 = sbr.rel (%p206) target = $region36
      $region35: #{simclr_forward.1} parent=31 // pred_region
        %s209 = smul.u32 8, %s13
        %p210 = scmp.lt.s32.totalorder %s209, 15
        %s211 = scalar_select %p210, %s209, 15
        %s212 = smul.addr %s211, 4
        %s213 = smul.addr %s212, 4
        %s214 = scalar_lea.vmem %s0, %s213
        %s215 = smul.u32 8, %s13
      $region36: #{simclr_forward.1} parent=31 // pred_fallthru
        _
    $region32: #{simclr_forward.1} parent=5 // pred_fallthru
      _
    %p216 = scmp.le.s32.totalorder 1, %s13
    %p217 = scmp.lt.s32.totalorder %s13, 3
    %p218 = pnand %p216, %p217
    %p219 = pneg %p218
    // Predicated region
    $region37: #{simclr_forward.1} parent=5 // pred_check
      _
    $region38: #{simclr_forward.1} parent=5 // pred_check_branch
      %221 = sbr.rel (%p218) target = $region40
    $region39: #{simclr_forward.1} parent=5 // pred_region
      %s222 = ssub.s32 %s13, 1
      %s223 = smul.u32 8, %s18
      %p224 = scmp.lt.s32.totalorder %s223, 15
      %s225 = scalar_select %p224, %s223, 15
      %s226 = smul.addr %s225, 4
      %s227 = smul.addr %s226, 4
      %s228 = scalar_lea.vmem %s0, %s227
      %p229 = pneg %p39
      %p230 = pneg %p36
      %p231 = pneg %p60
      %p232 = pneg %p57
      %p233 = pneg %p81
      %p234 = pneg %p78
      %p235 = pneg %p102
      %p236 = pneg %p99
      %p237 = pneg %p123
      %p238 = pneg %p120
      %p239 = pneg %p149
      %p240 = pneg %p146
      %p241 = scmp.lt.s32.totalorder %s18, 1
      %s242 = scalar_select %p241, %s18, 1
      %s243 = smul.addr %s242, 8
      %s244 = scalar_lea.vmem %s5, %s243
      %p245 = pneg %p175
      %p246 = pneg %p172
      %p247 = scmp.lt.s32.totalorder %s18, 1
      %s248 = scalar_select %p247, %s18, 1
      %s249 = smul.addr %s248, 8
      %s250 = scalar_lea.vmem %s6, %s249
      %s251 = smul.u32 8, %s18
      %p252 = scmp.lt.s32.totalorder %s251, 15
      %s253 = scalar_select %p252, %s251, 15
      %s254 = smul.addr %s253, 4
      %s255 = smul.addr %s254, 4
      %s256 = scalar_lea.vmem %s0, %s255
      %s257 = smul.u32 8, %s18
      %p258 = scmp.lt.s32.totalorder %s18, 1
      %s259 = scalar_select %p258, %s18, 1
      %s260 = smul.addr %s259, 8
      %s261 = scalar_lea.vmem %s5, %s260
      %p262 = scmp.lt.s32.totalorder %s18, 1
      %s263 = scalar_select %p262, %s18, 1
      %s264 = smul.addr %s263, 8
      %s265 = scalar_lea.vmem %s6, %s264
      %267 = vst [vmem:[#allocation2] sm:$0xff] 0.0
      %v268 = vld [vmem:[%s256] sm:$0xff]
      %v269 = vld [vmem:[%s256 + $0x8] sm:$0xff]
      %v270 = vld [vmem:[%s256 + $0x10] sm:$0xff]
      %v271 = vld [vmem:[%s256 + $0x18] sm:$0xff]
      %v272 = vld [vmem:[%s256 + $0x20] sm:$0xff]
      %v273 = vld [vmem:[%s256 + $0x28] sm:$0xff]
      %v274 = vld [vmem:[%s256 + $0x30] sm:$0xff]
      %v275 = vld [vmem:[%s256 + $0x38] sm:$0xff]
      %v276 = vld [vmem:[%s256 + $0x40] sm:$0xff]
      %v277 = vld [vmem:[%s256 + $0x48] sm:$0xff]
      %v278 = vld [vmem:[%s256 + $0x50] sm:$0xff]
      %v279 = vld [vmem:[%s256 + $0x58] sm:$0xff]
      %v280 = vld [vmem:[%s256 + $0x60] sm:$0xff]
      %v281 = vld [vmem:[%s256 + $0x68] sm:$0xff]
      %v282 = vld [vmem:[%s256 + $0x70] sm:$0xff]
      %v283 = vld [vmem:[%s256 + $0x78] sm:$0xff]
      %v284 = vld [vmem:[%s2] sm:$0xf]
      %v285 = vld [vmem:[%s2 + $0x4] sm:$0xf]
      %v286 = vld [vmem:[%s2 + $0x8] sm:$0xf]
      %v287 = vld [vmem:[%s2 + $0xc] sm:$0xf]
      %v288 = vld [vmem:[%s2 + $0x10] sm:$0xf]
      %v289 = vld [vmem:[%s2 + $0x14] sm:$0xf]
      %v290 = vld [vmem:[%s2 + $0x18] sm:$0xf]
      %v291 = vld [vmem:[%s2 + $0x1c] sm:$0xf]
      %v292 = vld [vmem:[%s2 + $0x20] sm:$0xf]
      %v293 = vld [vmem:[%s2 + $0x24] sm:$0xf]
      %v294 = vld [vmem:[%s2 + $0x28] sm:$0xf]
      %v295 = vld [vmem:[%s2 + $0x2c] sm:$0xf]
      %v296 = vld [vmem:[%s2 + $0x30] sm:$0xf]
      %v297 = vld [vmem:[%s2 + $0x34] sm:$0xf]
      %v298 = vld [vmem:[%s2 + $0x38] sm:$0xf]
      %v299 = vld [vmem:[%s2 + $0x3c] sm:$0xf]
      %v316 = vunpack.c.l.b16 %v268
      %v317 = vunpack.c.h.b16 %v268
      %v318 = vunpack.c.l.b16 %v269
      %v319 = vunpack.c.l.b16 %v270
      %v320 = vunpack.c.h.b16 %v270
      %v321 = vunpack.c.l.b16 %v271
      %v322 = vunpack.c.l.b16 %v272
      %v323 = vunpack.c.h.b16 %v272
      %v324 = vunpack.c.l.b16 %v273
      %v325 = vunpack.c.l.b16 %v274
      %v326 = vunpack.c.h.b16 %v274
      %v327 = vunpack.c.l.b16 %v275
      %v328 = vunpack.c.l.b16 %v276
      %v329 = vunpack.c.h.b16 %v276
      %v330 = vunpack.c.l.b16 %v277
      %v331 = vunpack.c.l.b16 %v278
      %v332 = vunpack.c.h.b16 %v278
      %v333 = vunpack.c.l.b16 %v279
      %v334 = vunpack.c.l.b16 %v280
      %v335 = vunpack.c.h.b16 %v280
      %v336 = vunpack.c.l.b16 %v281
      %v337 = vunpack.c.l.b16 %v282
      %v338 = vunpack.c.h.b16 %v282
      %v339 = vunpack.c.l.b16 %v283
      %v340 = vpack.c.b16 %v316, %v316
      %v341 = vpack.c.b16 %v317, %v317
      %v342 = vpack.c.b16 %v318, %v318
      %v343 = vpack.c.b16 %v319, %v319
      %v344 = vpack.c.b16 %v320, %v320
      %v345 = vpack.c.b16 %v321, %v321
      %v346 = vpack.c.b16 %v322, %v322
      %v347 = vpack.c.b16 %v323, %v323
      %v348 = vpack.c.b16 %v324, %v324
      %v349 = vpack.c.b16 %v325, %v325
      %v350 = vpack.c.b16 %v326, %v326
      %v351 = vpack.c.b16 %v327, %v327
      %v352 = vpack.c.b16 %v328, %v328
      %v353 = vpack.c.b16 %v329, %v329
      %v354 = vpack.c.b16 %v330, %v330
      %v355 = vpack.c.b16 %v331, %v331
      %v356 = vpack.c.b16 %v332, %v332
      %v357 = vpack.c.b16 %v333, %v333
      %v358 = vpack.c.b16 %v334, %v334
      %v359 = vpack.c.b16 %v335, %v335
      %v360 = vpack.c.b16 %v336, %v336
      %v361 = vpack.c.b16 %v337, %v337
      %v362 = vpack.c.b16 %v338, %v338
      %v363 = vpack.c.b16 %v339, %v339
      %v364 = vunpack.c.h.b16 %v269
      %v365 = vunpack.c.h.b16 %v271
      %v366 = vunpack.c.h.b16 %v273
      %v367 = vunpack.c.h.b16 %v275
      %v368 = vunpack.c.h.b16 %v277
      %v369 = vunpack.c.h.b16 %v279
      %v370 = vunpack.c.h.b16 %v281
      %v371 = vunpack.c.h.b16 %v283
      %v372 = vpack.c.b16 %v364, %v364
      %v373 = vpack.c.b16 %v365, %v365
      %v374 = vpack.c.b16 %v366, %v366
      %v375 = vpack.c.b16 %v367, %v367
      %v376 = vpack.c.b16 %v368, %v368
      %v377 = vpack.c.b16 %v369, %v369
      %v378 = vpack.c.b16 %v370, %v370
      %v379 = vpack.c.b16 %v371, %v371
      %380 = vrot.lane.b32.xlu0 %v340, 127
      %v381 = vpop.permute.xlu0 %380
      %382 = vrot.lane.b32.xlu0 %v341, 127
      %v383 = vpop.permute.xlu0 %382
      %384 = vrot.lane.b32.xlu0 %v342, 127
      %v385 = vpop.permute.xlu0 %384
      %386 = vrot.lane.b32.xlu0 %v372, 127
      %v387 = vpop.permute.xlu0 %386
      %388 = vrot.lane.b32.xlu0 %v343, 127
      %v389 = vpop.permute.xlu0 %388
      %390 = vrot.lane.b32.xlu0 %v344, 127
      %v391 = vpop.permute.xlu0 %390
      %392 = vrot.lane.b32.xlu0 %v345, 127
      %v393 = vpop.permute.xlu0 %392
      %394 = vrot.lane.b32.xlu0 %v373, 127
      %v395 = vpop.permute.xlu0 %394
      %396 = vrot.lane.b32.xlu0 %v346, 127
      %v397 = vpop.permute.xlu0 %396
      %398 = vrot.lane.b32.xlu0 %v347, 127
      %v399 = vpop.permute.xlu0 %398
      %400 = vrot.lane.b32.xlu0 %v348, 127
      %v401 = vpop.permute.xlu0 %400
      %402 = vrot.lane.b32.xlu0 %v374, 127
      %v403 = vpop.permute.xlu0 %402
      %404 = vrot.lane.b32.xlu0 %v349, 127
      %v405 = vpop.permute.xlu0 %404
      %406 = vrot.lane.b32.xlu0 %v350, 127
      %v407 = vpop.permute.xlu0 %406
      %408 = vrot.lane.b32.xlu0 %v351, 127
      %v409 = vpop.permute.xlu0 %408
      %410 = vrot.lane.b32.xlu0 %v375, 127
      %v411 = vpop.permute.xlu0 %410
      %412 = vrot.lane.b32.xlu0 %v352, 127
      %v413 = vpop.permute.xlu0 %412
      %414 = vrot.lane.b32.xlu0 %v353, 127
      %v415 = vpop.permute.xlu0 %414
      %416 = vrot.lane.b32.xlu0 %v354, 127
      %v417 = vpop.permute.xlu0 %416
      %418 = vrot.lane.b32.xlu0 %v376, 127
      %v419 = vpop.permute.xlu0 %418
      %420 = vrot.lane.b32.xlu0 %v355, 127
      %v421 = vpop.permute.xlu0 %420
      %422 = vrot.lane.b32.xlu0 %v356, 127
      %v423 = vpop.permute.xlu0 %422
      %424 = vrot.lane.b32.xlu0 %v357, 127
      %v425 = vpop.permute.xlu0 %424
      %426 = vrot.lane.b32.xlu0 %v377, 127
      %v427 = vpop.permute.xlu0 %426
      %428 = vrot.lane.b32.xlu0 %v358, 127
      %v429 = vpop.permute.xlu0 %428
      %430 = vrot.lane.b32.xlu0 %v359, 127
      %v431 = vpop.permute.xlu0 %430
      %432 = vrot.lane.b32.xlu0 %v360, 127
      %v433 = vpop.permute.xlu0 %432
      %434 = vrot.lane.b32.xlu0 %v378, 127
      %v435 = vpop.permute.xlu0 %434
      %436 = vrot.lane.b32.xlu0 %v361, 127
      %v437 = vpop.permute.xlu0 %436
      %438 = vrot.lane.b32.xlu0 %v362, 127
      %v439 = vpop.permute.xlu0 %438
      %440 = vrot.lane.b32.xlu0 %v363, 127
      %v441 = vpop.permute.xlu0 %440
      %442 = vrot.lane.b32.xlu0 %v379, 127
      %v443 = vpop.permute.xlu0 %442
      %vm444 = vcmask 1039360
      %v445 = vsel %vm444, %v381, %v383
      %v446 = vsel %vm444, %v383, %v385
      %v447 = vsel %vm444, %v385, %v387
      %v448 = vsel %vm444, %v389, %v391
      %v449 = vsel %vm444, %v391, %v393
      %v450 = vsel %vm444, %v393, %v395
      %v451 = vsel %vm444, %v397, %v399
      %v452 = vsel %vm444, %v399, %v401
      %v453 = vsel %vm444, %v401, %v403
      %v454 = vsel %vm444, %v405, %v407
      %v455 = vsel %vm444, %v407, %v409
      %v456 = vsel %vm444, %v409, %v411
      %v457 = vsel %vm444, %v413, %v415
      %v458 = vsel %vm444, %v415, %v417
      %v459 = vsel %vm444, %v417, %v419
      %v460 = vsel %vm444, %v421, %v423
      %v461 = vsel %vm444, %v423, %v425
      %v462 = vsel %vm444, %v425, %v427
      %v463 = vsel %vm444, %v429, %v431
      %v464 = vsel %vm444, %v431, %v433
      %v465 = vsel %vm444, %v433, %v435
      %v466 = vsel %vm444, %v437, %v439
      %v467 = vsel %vm444, %v439, %v441
      %v468 = vsel %vm444, %v441, %v443
      %469 = vrot.lane.b32.xlu0 %v340, 126
      %v470 = vpop.permute.xlu0 %469
      %471 = vrot.lane.b32.xlu0 %v341, 126
      %v472 = vpop.permute.xlu0 %471
      %473 = vrot.lane.b32.xlu0 %v342, 126
      %v474 = vpop.permute.xlu0 %473
      %475 = vrot.lane.b32.xlu0 %v372, 126
      %v476 = vpop.permute.xlu0 %475
      %477 = vrot.lane.b32.xlu0 %v343, 126
      %v478 = vpop.permute.xlu0 %477
      %479 = vrot.lane.b32.xlu0 %v344, 126
      %v480 = vpop.permute.xlu0 %479
      %481 = vrot.lane.b32.xlu0 %v345, 126
      %v482 = vpop.permute.xlu0 %481
      %483 = vrot.lane.b32.xlu0 %v373, 126
      %v484 = vpop.permute.xlu0 %483
      %485 = vrot.lane.b32.xlu0 %v346, 126
      %v486 = vpop.permute.xlu0 %485
      %487 = vrot.lane.b32.xlu0 %v347, 126
      %v488 = vpop.permute.xlu0 %487
      %489 = vrot.lane.b32.xlu0 %v348, 126
      %v490 = vpop.permute.xlu0 %489
      %491 = vrot.lane.b32.xlu0 %v374, 126
      %v492 = vpop.permute.xlu0 %491
      %493 = vrot.lane.b32.xlu0 %v349, 126
      %v494 = vpop.permute.xlu0 %493
      %495 = vrot.lane.b32.xlu0 %v350, 126
      %v496 = vpop.permute.xlu0 %495
      %497 = vrot.lane.b32.xlu0 %v351, 126
      %v498 = vpop.permute.xlu0 %497
      %499 = vrot.lane.b32.xlu0 %v375, 126
      %v500 = vpop.permute.xlu0 %499
      %501 = vrot.lane.b32.xlu0 %v352, 126
      %v502 = vpop.permute.xlu0 %501
      %503 = vrot.lane.b32.xlu0 %v353, 126
      %v504 = vpop.permute.xlu0 %503
      %505 = vrot.lane.b32.xlu0 %v354, 126
      %v506 = vpop.permute.xlu0 %505
      %507 = vrot.lane.b32.xlu0 %v376, 126
      %v508 = vpop.permute.xlu0 %507
      %509 = vrot.lane.b32.xlu0 %v355, 126
      %v510 = vpop.permute.xlu0 %509
      %511 = vrot.lane.b32.xlu0 %v356, 126
      %v512 = vpop.permute.xlu0 %511
      %513 = vrot.lane.b32.xlu0 %v357, 126
      %v514 = vpop.permute.xlu0 %513
      %515 = vrot.lane.b32.xlu0 %v377, 126
      %v516 = vpop.permute.xlu0 %515
      %517 = vrot.lane.b32.xlu0 %v358, 126
      %v518 = vpop.permute.xlu0 %517
      %519 = vrot.lane.b32.xlu0 %v359, 126
      %v520 = vpop.permute.xlu0 %519
      %521 = vrot.lane.b32.xlu0 %v360, 126
      %v522 = vpop.permute.xlu0 %521
      %523 = vrot.lane.b32.xlu0 %v378, 126
      %v524 = vpop.permute.xlu0 %523
      %525 = vrot.lane.b32.xlu0 %v361, 126
      %v526 = vpop.permute.xlu0 %525
      %527 = vrot.lane.b32.xlu0 %v362, 126
      %v528 = vpop.permute.xlu0 %527
      %529 = vrot.lane.b32.xlu0 %v363, 126
      %v530 = vpop.permute.xlu0 %529
      %531 = vrot.lane.b32.xlu0 %v379, 126
      %v532 = vpop.permute.xlu0 %531
      %vm533 = vcmask 1031168
      %v534 = vsel %vm533, %v470, %v472
      %v535 = vsel %vm533, %v472, %v474
      %v536 = vsel %vm533, %v474, %v476
      %v537 = vsel %vm533, %v478, %v480
      %v538 = vsel %vm533, %v480, %v482
      %v539 = vsel %vm533, %v482, %v484
      %v540 = vsel %vm533, %v486, %v488
      %v541 = vsel %vm533, %v488, %v490
      %v542 = vsel %vm533, %v490, %v492
      %v543 = vsel %vm533, %v494, %v496
      %v544 = vsel %vm533, %v496, %v498
      %v545 = vsel %vm533, %v498, %v500
      %v546 = vsel %vm533, %v502, %v504
      %v547 = vsel %vm533, %v504, %v506
      %v548 = vsel %vm533, %v506, %v508
      %v549 = vsel %vm533, %v510, %v512
      %v550 = vsel %vm533, %v512, %v514
      %v551 = vsel %vm533, %v514, %v516
      %v552 = vsel %vm533, %v518, %v520
      %v553 = vsel %vm533, %v520, %v522
      %v554 = vsel %vm533, %v522, %v524
      %v555 = vsel %vm533, %v526, %v528
      %v556 = vsel %vm533, %v528, %v530
      %v557 = vsel %vm533, %v530, %v532
      %558 = vrot.lane.b32.xlu0 %v340, 110
      %v559 = vpop.permute.xlu0 %558
      %560 = vrot.lane.b32.xlu0 %v341, 110
      %v561 = vpop.permute.xlu0 %560
      %562 = vrot.lane.b32.xlu0 %v342, 110
      %v563 = vpop.permute.xlu0 %562
      %564 = vrot.lane.b32.xlu0 %v372, 110
      %v565 = vpop.permute.xlu0 %564
      %566 = vrot.lane.b32.xlu0 %v343, 110
      %v567 = vpop.permute.xlu0 %566
      %568 = vrot.lane.b32.xlu0 %v344, 110
      %v569 = vpop.permute.xlu0 %568
      %570 = vrot.lane.b32.xlu0 %v345, 110
      %v571 = vpop.permute.xlu0 %570
      %572 = vrot.lane.b32.xlu0 %v373, 110
      %v573 = vpop.permute.xlu0 %572
      %574 = vrot.lane.b32.xlu0 %v346, 110
      %v575 = vpop.permute.xlu0 %574
      %576 = vrot.lane.b32.xlu0 %v347, 110
      %v577 = vpop.permute.xlu0 %576
      %578 = vrot.lane.b32.xlu0 %v348, 110
      %v579 = vpop.permute.xlu0 %578
      %580 = vrot.lane.b32.xlu0 %v374, 110
      %v581 = vpop.permute.xlu0 %580
      %582 = vrot.lane.b32.xlu0 %v349, 110
      %v583 = vpop.permute.xlu0 %582
      %584 = vrot.lane.b32.xlu0 %v350, 110
      %v585 = vpop.permute.xlu0 %584
      %586 = vrot.lane.b32.xlu0 %v351, 110
      %v587 = vpop.permute.xlu0 %586
      %588 = vrot.lane.b32.xlu0 %v375, 110
      %v589 = vpop.permute.xlu0 %588
      %590 = vrot.lane.b32.xlu0 %v352, 110
      %v591 = vpop.permute.xlu0 %590
      %592 = vrot.lane.b32.xlu0 %v353, 110
      %v593 = vpop.permute.xlu0 %592
      %594 = vrot.lane.b32.xlu0 %v354, 110
      %v595 = vpop.permute.xlu0 %594
      %596 = vrot.lane.b32.xlu0 %v376, 110
      %v597 = vpop.permute.xlu0 %596
      %598 = vrot.lane.b32.xlu0 %v355, 110
      %v599 = vpop.permute.xlu0 %598
      %600 = vrot.lane.b32.xlu0 %v356, 110
      %v601 = vpop.permute.xlu0 %600
      %602 = vrot.lane.b32.xlu0 %v357, 110
      %v603 = vpop.permute.xlu0 %602
      %604 = vrot.lane.b32.xlu0 %v377, 110
      %v605 = vpop.permute.xlu0 %604
      %606 = vrot.lane.b32.xlu0 %v358, 110
      %v607 = vpop.permute.xlu0 %606
      %608 = vrot.lane.b32.xlu0 %v359, 110
      %v609 = vpop.permute.xlu0 %608
      %610 = vrot.lane.b32.xlu0 %v360, 110
      %v611 = vpop.permute.xlu0 %610
      %612 = vrot.lane.b32.xlu0 %v378, 110
      %v613 = vpop.permute.xlu0 %612
      %614 = vrot.lane.b32.xlu0 %v361, 110
      %v615 = vpop.permute.xlu0 %614
      %616 = vrot.lane.b32.xlu0 %v362, 110
      %v617 = vpop.permute.xlu0 %616
      %618 = vrot.lane.b32.xlu0 %v363, 110
      %v619 = vpop.permute.xlu0 %618
      %620 = vrot.lane.b32.xlu0 %v379, 110
      %v621 = vpop.permute.xlu0 %620
      %vm622 = vcmask 900096
      %v623 = vsel %vm622, %v559, %v561
      %v624 = vsel %vm622, %v561, %v563
      %v625 = vsel %vm622, %v563, %v565
      %v626 = vsel %vm622, %v567, %v569
      %v627 = vsel %vm622, %v569, %v571
      %v628 = vsel %vm622, %v571, %v573
      %v629 = vsel %vm622, %v575, %v577
      %v630 = vsel %vm622, %v577, %v579
      %v631 = vsel %vm622, %v579, %v581
      %v632 = vsel %vm622, %v583, %v585
      %v633 = vsel %vm622, %v585, %v587
      %v634 = vsel %vm622, %v587, %v589
      %v635 = vsel %vm622, %v591, %v593
      %v636 = vsel %vm622, %v593, %v595
      %v637 = vsel %vm622, %v595, %v597
      %v638 = vsel %vm622, %v599, %v601
      %v639 = vsel %vm622, %v601, %v603
      %v640 = vsel %vm622, %v603, %v605
      %v641 = vsel %vm622, %v607, %v609
      %v642 = vsel %vm622, %v609, %v611
      %v643 = vsel %vm622, %v611, %v613
      %v644 = vsel %vm622, %v615, %v617
      %v645 = vsel %vm622, %v617, %v619
      %v646 = vsel %vm622, %v619, %v621
      %647 = vrot.lane.b32.xlu0 %v340, 109
      %v648 = vpop.permute.xlu0 %647
      %649 = vrot.lane.b32.xlu0 %v341, 109
      %v650 = vpop.permute.xlu0 %649
      %651 = vrot.lane.b32.xlu0 %v342, 109
      %v652 = vpop.permute.xlu0 %651
      %653 = vrot.lane.b32.xlu0 %v372, 109
      %v654 = vpop.permute.xlu0 %653
      %655 = vrot.lane.b32.xlu0 %v343, 109
      %v656 = vpop.permute.xlu0 %655
      %657 = vrot.lane.b32.xlu0 %v344, 109
      %v658 = vpop.permute.xlu0 %657
      %659 = vrot.lane.b32.xlu0 %v345, 109
      %v660 = vpop.permute.xlu0 %659
      %661 = vrot.lane.b32.xlu0 %v373, 109
      %v662 = vpop.permute.xlu0 %661
      %663 = vrot.lane.b32.xlu0 %v346, 109
      %v664 = vpop.permute.xlu0 %663
      %665 = vrot.lane.b32.xlu0 %v347, 109
      %v666 = vpop.permute.xlu0 %665
      %667 = vrot.lane.b32.xlu0 %v348, 109
      %v668 = vpop.permute.xlu0 %667
      %669 = vrot.lane.b32.xlu0 %v374, 109
      %v670 = vpop.permute.xlu0 %669
      %671 = vrot.lane.b32.xlu0 %v349, 109
      %v672 = vpop.permute.xlu0 %671
      %673 = vrot.lane.b32.xlu0 %v350, 109
      %v674 = vpop.permute.xlu0 %673
      %675 = vrot.lane.b32.xlu0 %v351, 109
      %v676 = vpop.permute.xlu0 %675
      %677 = vrot.lane.b32.xlu0 %v375, 109
      %v678 = vpop.permute.xlu0 %677
      %679 = vrot.lane.b32.xlu0 %v352, 109
      %v680 = vpop.permute.xlu0 %679
      %681 = vrot.lane.b32.xlu0 %v353, 109
      %v682 = vpop.permute.xlu0 %681
      %683 = vrot.lane.b32.xlu0 %v354, 109
      %v684 = vpop.permute.xlu0 %683
      %685 = vrot.lane.b32.xlu0 %v376, 109
      %v686 = vpop.permute.xlu0 %685
      %687 = vrot.lane.b32.xlu0 %v355, 109
      %v688 = vpop.permute.xlu0 %687
      %689 = vrot.lane.b32.xlu0 %v356, 109
      %v690 = vpop.permute.xlu0 %689
      %691 = vrot.lane.b32.xlu0 %v357, 109
      %v692 = vpop.permute.xlu0 %691
      %693 = vrot.lane.b32.xlu0 %v377, 109
      %v694 = vpop.permute.xlu0 %693
      %695 = vrot.lane.b32.xlu0 %v358, 109
      %v696 = vpop.permute.xlu0 %695
      %697 = vrot.lane.b32.xlu0 %v359, 109
      %v698 = vpop.permute.xlu0 %697
      %699 = vrot.lane.b32.xlu0 %v360, 109
      %v700 = vpop.permute.xlu0 %699
      %701 = vrot.lane.b32.xlu0 %v378, 109
      %v702 = vpop.permute.xlu0 %701
      %703 = vrot.lane.b32.xlu0 %v361, 109
      %v704 = vpop.permute.xlu0 %703
      %705 = vrot.lane.b32.xlu0 %v362, 109
      %v706 = vpop.permute.xlu0 %705
      %707 = vrot.lane.b32.xlu0 %v363, 109
      %v708 = vpop.permute.xlu0 %707
      %709 = vrot.lane.b32.xlu0 %v379, 109
      %v710 = vpop.permute.xlu0 %709
      %vm711 = vcmask 891904
      %v712 = vsel %vm711, %v648, %v650
      %v713 = vsel %vm711, %v650, %v652
      %v714 = vsel %vm711, %v652, %v654
      %v715 = vsel %vm711, %v656, %v658
      %v716 = vsel %vm711, %v658, %v660
      %v717 = vsel %vm711, %v660, %v662
      %v718 = vsel %vm711, %v664, %v666
      %v719 = vsel %vm711, %v666, %v668
      %v720 = vsel %vm711, %v668, %v670
      %v721 = vsel %vm711, %v672, %v674
      %v722 = vsel %vm711, %v674, %v676
      %v723 = vsel %vm711, %v676, %v678
      %v724 = vsel %vm711, %v680, %v682
      %v725 = vsel %vm711, %v682, %v684
      %v726 = vsel %vm711, %v684, %v686
      %v727 = vsel %vm711, %v688, %v690
      %v728 = vsel %vm711, %v690, %v692
      %v729 = vsel %vm711, %v692, %v694
      %v730 = vsel %vm711, %v696, %v698
      %v731 = vsel %vm711, %v698, %v700
      %v732 = vsel %vm711, %v700, %v702
      %v733 = vsel %vm711, %v704, %v706
      %v734 = vsel %vm711, %v706, %v708
      %v735 = vsel %vm711, %v708, %v710
      %736 = vrot.lane.b32.xlu0 %v340, 108
      %v737 = vpop.permute.xlu0 %736
      %738 = vrot.lane.b32.xlu0 %v341, 108
      %v739 = vpop.permute.xlu0 %738
      %740 = vrot.lane.b32.xlu0 %v342, 108
      %v741 = vpop.permute.xlu0 %740
      %742 = vrot.lane.b32.xlu0 %v372, 108
      %v743 = vpop.permute.xlu0 %742
      %744 = vrot.lane.b32.xlu0 %v343, 108
      %v745 = vpop.permute.xlu0 %744
      %746 = vrot.lane.b32.xlu0 %v344, 108
      %v747 = vpop.permute.xlu0 %746
      %748 = vrot.lane.b32.xlu0 %v345, 108
      %v749 = vpop.permute.xlu0 %748
      %750 = vrot.lane.b32.xlu0 %v373, 108
      %v751 = vpop.permute.xlu0 %750
      %752 = vrot.lane.b32.xlu0 %v346, 108
      %v753 = vpop.permute.xlu0 %752
      %754 = vrot.lane.b32.xlu0 %v347, 108
      %v755 = vpop.permute.xlu0 %754
      %756 = vrot.lane.b32.xlu0 %v348, 108
      %v757 = vpop.permute.xlu0 %756
      %758 = vrot.lane.b32.xlu0 %v374, 108
      %v759 = vpop.permute.xlu0 %758
      %760 = vrot.lane.b32.xlu0 %v349, 108
      %v761 = vpop.permute.xlu0 %760
      %762 = vrot.lane.b32.xlu0 %v350, 108
      %v763 = vpop.permute.xlu0 %762
      %764 = vrot.lane.b32.xlu0 %v351, 108
      %v765 = vpop.permute.xlu0 %764
      %766 = vrot.lane.b32.xlu0 %v375, 108
      %v767 = vpop.permute.xlu0 %766
      %768 = vrot.lane.b32.xlu0 %v352, 108
      %v769 = vpop.permute.xlu0 %768
      %770 = vrot.lane.b32.xlu0 %v353, 108
      %v771 = vpop.permute.xlu0 %770
      %772 = vrot.lane.b32.xlu0 %v354, 108
      %v773 = vpop.permute.xlu0 %772
      %774 = vrot.lane.b32.xlu0 %v376, 108
      %v775 = vpop.permute.xlu0 %774
      %776 = vrot.lane.b32.xlu0 %v355, 108
      %v777 = vpop.permute.xlu0 %776
      %778 = vrot.lane.b32.xlu0 %v356, 108
      %v779 = vpop.permute.xlu0 %778
      %780 = vrot.lane.b32.xlu0 %v357, 108
      %v781 = vpop.permute.xlu0 %780
      %782 = vrot.lane.b32.xlu0 %v377, 108
      %v783 = vpop.permute.xlu0 %782
      %784 = vrot.lane.b32.xlu0 %v358, 108
      %v785 = vpop.permute.xlu0 %784
      %786 = vrot.lane.b32.xlu0 %v359, 108
      %v787 = vpop.permute.xlu0 %786
      %788 = vrot.lane.b32.xlu0 %v360, 108
      %v789 = vpop.permute.xlu0 %788
      %790 = vrot.lane.b32.xlu0 %v378, 108
      %v791 = vpop.permute.xlu0 %790
      %792 = vrot.lane.b32.xlu0 %v361, 108
      %v793 = vpop.permute.xlu0 %792
      %794 = vrot.lane.b32.xlu0 %v362, 108
      %v795 = vpop.permute.xlu0 %794
      %796 = vrot.lane.b32.xlu0 %v363, 108
      %v797 = vpop.permute.xlu0 %796
      %798 = vrot.lane.b32.xlu0 %v379, 108
      %v799 = vpop.permute.xlu0 %798
      %vm800 = vcmask 883712
      %v801 = vsel %vm800, %v737, %v739
      %v802 = vsel %vm800, %v739, %v741
      %v803 = vsel %vm800, %v741, %v743
      %v804 = vsel %vm800, %v745, %v747
      %v805 = vsel %vm800, %v747, %v749
      %v806 = vsel %vm800, %v749, %v751
      %v807 = vsel %vm800, %v753, %v755
      %v808 = vsel %vm800, %v755, %v757
      %v809 = vsel %vm800, %v757, %v759
      %v810 = vsel %vm800, %v761, %v763
      %v811 = vsel %vm800, %v763, %v765
      %v812 = vsel %vm800, %v765, %v767
      %v813 = vsel %vm800, %v769, %v771
      %v814 = vsel %vm800, %v771, %v773
      %v815 = vsel %vm800, %v773, %v775
      %v816 = vsel %vm800, %v777, %v779
      %v817 = vsel %vm800, %v779, %v781
      %v818 = vsel %vm800, %v781, %v783
      %v819 = vsel %vm800, %v785, %v787
      %v820 = vsel %vm800, %v787, %v789
      %v821 = vsel %vm800, %v789, %v791
      %v822 = vsel %vm800, %v793, %v795
      %v823 = vsel %vm800, %v795, %v797
      %v824 = vsel %vm800, %v797, %v799
      %825 = vrot.lane.b32.xlu0 %v340, 92
      %v826 = vpop.permute.xlu0 %825
      %827 = vrot.lane.b32.xlu0 %v341, 92
      %v828 = vpop.permute.xlu0 %827
      %829 = vrot.lane.b32.xlu0 %v342, 92
      %v830 = vpop.permute.xlu0 %829
      %831 = vrot.lane.b32.xlu0 %v372, 92
      %v832 = vpop.permute.xlu0 %831
      %833 = vrot.lane.b32.xlu0 %v343, 92
      %v834 = vpop.permute.xlu0 %833
      %835 = vrot.lane.b32.xlu0 %v344, 92
      %v836 = vpop.permute.xlu0 %835
      %837 = vrot.lane.b32.xlu0 %v345, 92
      %v838 = vpop.permute.xlu0 %837
      %839 = vrot.lane.b32.xlu0 %v373, 92
      %v840 = vpop.permute.xlu0 %839
      %841 = vrot.lane.b32.xlu0 %v346, 92
      %v842 = vpop.permute.xlu0 %841
      %843 = vrot.lane.b32.xlu0 %v347, 92
      %v844 = vpop.permute.xlu0 %843
      %845 = vrot.lane.b32.xlu0 %v348, 92
      %v846 = vpop.permute.xlu0 %845
      %847 = vrot.lane.b32.xlu0 %v374, 92
      %v848 = vpop.permute.xlu0 %847
      %849 = vrot.lane.b32.xlu0 %v349, 92
      %v850 = vpop.permute.xlu0 %849
      %851 = vrot.lane.b32.xlu0 %v350, 92
      %v852 = vpop.permute.xlu0 %851
      %853 = vrot.lane.b32.xlu0 %v351, 92
      %v854 = vpop.permute.xlu0 %853
      %855 = vrot.lane.b32.xlu0 %v375, 92
      %v856 = vpop.permute.xlu0 %855
      %857 = vrot.lane.b32.xlu0 %v352, 92
      %v858 = vpop.permute.xlu0 %857
      %859 = vrot.lane.b32.xlu0 %v353, 92
      %v860 = vpop.permute.xlu0 %859
      %861 = vrot.lane.b32.xlu0 %v354, 92
      %v862 = vpop.permute.xlu0 %861
      %863 = vrot.lane.b32.xlu0 %v376, 92
      %v864 = vpop.permute.xlu0 %863
      %865 = vrot.lane.b32.xlu0 %v355, 92
      %v866 = vpop.permute.xlu0 %865
      %867 = vrot.lane.b32.xlu0 %v356, 92
      %v868 = vpop.permute.xlu0 %867
      %869 = vrot.lane.b32.xlu0 %v357, 92
      %v870 = vpop.permute.xlu0 %869
      %871 = vrot.lane.b32.xlu0 %v377, 92
      %v872 = vpop.permute.xlu0 %871
      %873 = vrot.lane.b32.xlu0 %v358, 92
      %v874 = vpop.permute.xlu0 %873
      %875 = vrot.lane.b32.xlu0 %v359, 92
      %v876 = vpop.permute.xlu0 %875
      %877 = vrot.lane.b32.xlu0 %v360, 92
      %v878 = vpop.permute.xlu0 %877
      %879 = vrot.lane.b32.xlu0 %v378, 92
      %v880 = vpop.permute.xlu0 %879
      %881 = vrot.lane.b32.xlu0 %v361, 92
      %v882 = vpop.permute.xlu0 %881
      %883 = vrot.lane.b32.xlu0 %v362, 92
      %v884 = vpop.permute.xlu0 %883
      %885 = vrot.lane.b32.xlu0 %v363, 92
      %v886 = vpop.permute.xlu0 %885
      %887 = vrot.lane.b32.xlu0 %v379, 92
      %v888 = vpop.permute.xlu0 %887
      %vm889 = vcmask 752640
      %v890 = vsel %vm889, %v826, %v828
      %v891 = vsel %vm889, %v828, %v830
      %v892 = vsel %vm889, %v830, %v832
      %v893 = vsel %vm889, %v834, %v836
      %v894 = vsel %vm889, %v836, %v838
      %v895 = vsel %vm889, %v838, %v840
      %v896 = vsel %vm889, %v842, %v844
      %v897 = vsel %vm889, %v844, %v846
      %v898 = vsel %vm889, %v846, %v848
      %v899 = vsel %vm889, %v850, %v852
      %v900 = vsel %vm889, %v852, %v854
      %v901 = vsel %vm889, %v854, %v856
      %v902 = vsel %vm889, %v858, %v860
      %v903 = vsel %vm889, %v860, %v862
      %v904 = vsel %vm889, %v862, %v864
      %v905 = vsel %vm889, %v866, %v868
      %v906 = vsel %vm889, %v868, %v870
      %v907 = vsel %vm889, %v870, %v872
      %v908 = vsel %vm889, %v874, %v876
      %v909 = vsel %vm889, %v876, %v878
      %v910 = vsel %vm889, %v878, %v880
      %v911 = vsel %vm889, %v882, %v884
      %v912 = vsel %vm889, %v884, %v886
      %v913 = vsel %vm889, %v886, %v888
      %914 = vrot.lane.b32.xlu0 %v340, 91
      %v915 = vpop.permute.xlu0 %914
      %916 = vrot.lane.b32.xlu0 %v341, 91
      %v917 = vpop.permute.xlu0 %916
      %918 = vrot.lane.b32.xlu0 %v342, 91
      %v919 = vpop.permute.xlu0 %918
      %920 = vrot.lane.b32.xlu0 %v372, 91
      %v921 = vpop.permute.xlu0 %920
      %922 = vrot.lane.b32.xlu0 %v343, 91
      %v923 = vpop.permute.xlu0 %922
      %924 = vrot.lane.b32.xlu0 %v344, 91
      %v925 = vpop.permute.xlu0 %924
      %926 = vrot.lane.b32.xlu0 %v345, 91
      %v927 = vpop.permute.xlu0 %926
      %928 = vrot.lane.b32.xlu0 %v373, 91
      %v929 = vpop.permute.xlu0 %928
      %930 = vrot.lane.b32.xlu0 %v346, 91
      %v931 = vpop.permute.xlu0 %930
      %932 = vrot.lane.b32.xlu0 %v347, 91
      %v933 = vpop.permute.xlu0 %932
      %934 = vrot.lane.b32.xlu0 %v348, 91
      %v935 = vpop.permute.xlu0 %934
      %936 = vrot.lane.b32.xlu0 %v374, 91
      %v937 = vpop.permute.xlu0 %936
      %938 = vrot.lane.b32.xlu0 %v349, 91
      %v939 = vpop.permute.xlu0 %938
      %940 = vrot.lane.b32.xlu0 %v350, 91
      %v941 = vpop.permute.xlu0 %940
      %942 = vrot.lane.b32.xlu0 %v351, 91
      %v943 = vpop.permute.xlu0 %942
      %944 = vrot.lane.b32.xlu0 %v375, 91
      %v945 = vpop.permute.xlu0 %944
      %946 = vrot.lane.b32.xlu0 %v352, 91
      %v947 = vpop.permute.xlu0 %946
      %948 = vrot.lane.b32.xlu0 %v353, 91
      %v949 = vpop.permute.xlu0 %948
      %950 = vrot.lane.b32.xlu0 %v354, 91
      %v951 = vpop.permute.xlu0 %950
      %952 = vrot.lane.b32.xlu0 %v376, 91
      %v953 = vpop.permute.xlu0 %952
      %954 = vrot.lane.b32.xlu0 %v355, 91
      %v955 = vpop.permute.xlu0 %954
      %956 = vrot.lane.b32.xlu0 %v356, 91
      %v957 = vpop.permute.xlu0 %956
      %958 = vrot.lane.b32.xlu0 %v357, 91
      %v959 = vpop.permute.xlu0 %958
      %960 = vrot.lane.b32.xlu0 %v377, 91
      %v961 = vpop.permute.xlu0 %960
      %962 = vrot.lane.b32.xlu0 %v358, 91
      %v963 = vpop.permute.xlu0 %962
      %964 = vrot.lane.b32.xlu0 %v359, 91
      %v965 = vpop.permute.xlu0 %964
      %966 = vrot.lane.b32.xlu0 %v360, 91
      %v967 = vpop.permute.xlu0 %966
      %968 = vrot.lane.b32.xlu0 %v378, 91
      %v969 = vpop.permute.xlu0 %968
      %970 = vrot.lane.b32.xlu0 %v361, 91
      %v971 = vpop.permute.xlu0 %970
      %972 = vrot.lane.b32.xlu0 %v362, 91
      %v973 = vpop.permute.xlu0 %972
      %974 = vrot.lane.b32.xlu0 %v363, 91
      %v975 = vpop.permute.xlu0 %974
      %976 = vrot.lane.b32.xlu0 %v379, 91
      %v977 = vpop.permute.xlu0 %976
      %vm978 = vcmask 744448
      %v979 = vsel %vm978, %v915, %v917
      %v980 = vsel %vm978, %v917, %v919
      %v981 = vsel %vm978, %v919, %v921
      %v982 = vsel %vm978, %v923, %v925
      %v983 = vsel %vm978, %v925, %v927
      %v984 = vsel %vm978, %v927, %v929
      %v985 = vsel %vm978, %v931, %v933
      %v986 = vsel %vm978, %v933, %v935
      %v987 = vsel %vm978, %v935, %v937
      %v988 = vsel %vm978, %v939, %v941
      %v989 = vsel %vm978, %v941, %v943
      %v990 = vsel %vm978, %v943, %v945
      %v991 = vsel %vm978, %v947, %v949
      %v992 = vsel %vm978, %v949, %v951
      %v993 = vsel %vm978, %v951, %v953
      %v994 = vsel %vm978, %v955, %v957
      %v995 = vsel %vm978, %v957, %v959
      %v996 = vsel %vm978, %v959, %v961
      %v997 = vsel %vm978, %v963, %v965
      %v998 = vsel %vm978, %v965, %v967
      %v999 = vsel %vm978, %v967, %v969
      %v1000 = vsel %vm978, %v971, %v973
      %v1001 = vsel %vm978, %v973, %v975
      %v1002 = vsel %vm978, %v975, %v977
      %1003 = vrot.lane.b32.xlu0 %v340, 90
      %v1004 = vpop.permute.xlu0 %1003
      %1005 = vrot.lane.b32.xlu0 %v341, 90
      %v1006 = vpop.permute.xlu0 %1005
      %1007 = vrot.lane.b32.xlu0 %v342, 90
      %v1008 = vpop.permute.xlu0 %1007
      %1009 = vrot.lane.b32.xlu0 %v372, 90
      %v1010 = vpop.permute.xlu0 %1009
      %1011 = vrot.lane.b32.xlu0 %v343, 90
      %v1012 = vpop.permute.xlu0 %1011
      %1013 = vrot.lane.b32.xlu0 %v344, 90
      %v1014 = vpop.permute.xlu0 %1013
      %1015 = vrot.lane.b32.xlu0 %v345, 90
      %v1016 = vpop.permute.xlu0 %1015
      %1017 = vrot.lane.b32.xlu0 %v373, 90
      %v1018 = vpop.permute.xlu0 %1017
      %1019 = vrot.lane.b32.xlu0 %v346, 90
      %v1020 = vpop.permute.xlu0 %1019
      %1021 = vrot.lane.b32.xlu0 %v347, 90
      %v1022 = vpop.permute.xlu0 %1021
      %1023 = vrot.lane.b32.xlu0 %v348, 90
      %v1024 = vpop.permute.xlu0 %1023
      %1025 = vrot.lane.b32.xlu0 %v374, 90
      %v1026 = vpop.permute.xlu0 %1025
      %1027 = vrot.lane.b32.xlu0 %v349, 90
      %v1028 = vpop.permute.xlu0 %1027
      %1029 = vrot.lane.b32.xlu0 %v350, 90
      %v1030 = vpop.permute.xlu0 %1029
      %1031 = vrot.lane.b32.xlu0 %v351, 90
      %v1032 = vpop.permute.xlu0 %1031
      %1033 = vrot.lane.b32.xlu0 %v375, 90
      %v1034 = vpop.permute.xlu0 %1033
      %1035 = vrot.lane.b32.xlu0 %v352, 90
      %v1036 = vpop.permute.xlu0 %1035
      %1037 = vrot.lane.b32.xlu0 %v353, 90
      %v1038 = vpop.permute.xlu0 %1037
      %1039 = vrot.lane.b32.xlu0 %v354, 90
      %v1040 = vpop.permute.xlu0 %1039
      %1041 = vrot.lane.b32.xlu0 %v376, 90
      %v1042 = vpop.permute.xlu0 %1041
      %1043 = vrot.lane.b32.xlu0 %v355, 90
      %v1044 = vpop.permute.xlu0 %1043
      %1045 = vrot.lane.b32.xlu0 %v356, 90
      %v1046 = vpop.permute.xlu0 %1045
      %1047 = vrot.lane.b32.xlu0 %v357, 90
      %v1048 = vpop.permute.xlu0 %1047
      %1049 = vrot.lane.b32.xlu0 %v377, 90
      %v1050 = vpop.permute.xlu0 %1049
      %1051 = vrot.lane.b32.xlu0 %v358, 90
      %v1052 = vpop.permute.xlu0 %1051
      %1053 = vrot.lane.b32.xlu0 %v359, 90
      %v1054 = vpop.permute.xlu0 %1053
      %1055 = vrot.lane.b32.xlu0 %v360, 90
      %v1056 = vpop.permute.xlu0 %1055
      %1057 = vrot.lane.b32.xlu0 %v378, 90
      %v1058 = vpop.permute.xlu0 %1057
      %1059 = vrot.lane.b32.xlu0 %v361, 90
      %v1060 = vpop.permute.xlu0 %1059
      %1061 = vrot.lane.b32.xlu0 %v362, 90
      %v1062 = vpop.permute.xlu0 %1061
      %1063 = vrot.lane.b32.xlu0 %v363, 90
      %v1064 = vpop.permute.xlu0 %1063
      %1065 = vrot.lane.b32.xlu0 %v379, 90
      %v1066 = vpop.permute.xlu0 %1065
      %vm1067 = vcmask 736256
      %v1068 = vsel %vm1067, %v1004, %v1006
      %v1069 = vsel %vm1067, %v1006, %v1008
      %v1070 = vsel %vm1067, %v1008, %v1010
      %v1071 = vsel %vm1067, %v1012, %v1014
      %v1072 = vsel %vm1067, %v1014, %v1016
      %v1073 = vsel %vm1067, %v1016, %v1018
      %v1074 = vsel %vm1067, %v1020, %v1022
      %v1075 = vsel %vm1067, %v1022, %v1024
      %v1076 = vsel %vm1067, %v1024, %v1026
      %v1077 = vsel %vm1067, %v1028, %v1030
      %v1078 = vsel %vm1067, %v1030, %v1032
      %v1079 = vsel %vm1067, %v1032, %v1034
      %v1080 = vsel %vm1067, %v1036, %v1038
      %v1081 = vsel %vm1067, %v1038, %v1040
      %v1082 = vsel %vm1067, %v1040, %v1042
      %v1083 = vsel %vm1067, %v1044, %v1046
      %v1084 = vsel %vm1067, %v1046, %v1048
      %v1085 = vsel %vm1067, %v1048, %v1050
      %v1086 = vsel %vm1067, %v1052, %v1054
      %v1087 = vsel %vm1067, %v1054, %v1056
      %v1088 = vsel %vm1067, %v1056, %v1058
      %v1089 = vsel %vm1067, %v1060, %v1062
      %v1090 = vsel %vm1067, %v1062, %v1064
      %v1091 = vsel %vm1067, %v1064, %v1066
      %vm1092 = vcmask 1043456
      %v1095 = vsel %vm1092, %v340, %v445
      %v1099 = vsel %vm1092, %v341, %v446
      %v1103 = vsel %vm1092, %v342, %v447
      %v1107 = vsel %vm1092, %v343, %v448
      %v1111 = vsel %vm1092, %v344, %v449
      %v1115 = vsel %vm1092, %v345, %v450
      %v1119 = vsel %vm1092, %v346, %v451
      %v1123 = vsel %vm1092, %v347, %v452
      %v1127 = vsel %vm1092, %v348, %v453
      %v1131 = vsel %vm1092, %v349, %v454
      %v1135 = vsel %vm1092, %v350, %v455
      %v1139 = vsel %vm1092, %v351, %v456
      %v1143 = vsel %vm1092, %v352, %v457
      %v1147 = vsel %vm1092, %v353, %v458
      %v1151 = vsel %vm1092, %v354, %v459
      %v1155 = vsel %vm1092, %v355, %v460
      %v1159 = vsel %vm1092, %v356, %v461
      %v1163 = vsel %vm1092, %v357, %v462
      %v1167 = vsel %vm1092, %v358, %v463
      %v1171 = vsel %vm1092, %v359, %v464
      %v1175 = vsel %vm1092, %v360, %v465
      %v1179 = vsel %vm1092, %v361, %v466
      %v1183 = vsel %vm1092, %v362, %v467
      %v1187 = vsel %vm1092, %v363, %v468
      %v1191 = vsel %vm1092, %v534, %v623
      %v1195 = vsel %vm1092, %v535, %v624
      %v1199 = vsel %vm1092, %v536, %v625
      %v1203 = vsel %vm1092, %v537, %v626
      %v1207 = vsel %vm1092, %v538, %v627
      %v1211 = vsel %vm1092, %v539, %v628
      %v1215 = vsel %vm1092, %v540, %v629
      %v1219 = vsel %vm1092, %v541, %v630
      %v1223 = vsel %vm1092, %v542, %v631
      %v1227 = vsel %vm1092, %v543, %v632
      %v1231 = vsel %vm1092, %v544, %v633
      %v1235 = vsel %vm1092, %v545, %v634
      %v1239 = vsel %vm1092, %v546, %v635
      %v1243 = vsel %vm1092, %v547, %v636
      %v1247 = vsel %vm1092, %v548, %v637
      %v1251 = vsel %vm1092, %v549, %v638
      %v1255 = vsel %vm1092, %v550, %v639
      %v1259 = vsel %vm1092, %v551, %v640
      %v1263 = vsel %vm1092, %v552, %v641
      %v1267 = vsel %vm1092, %v553, %v642
      %v1271 = vsel %vm1092, %v554, %v643
      %v1275 = vsel %vm1092, %v555, %v644
      %v1279 = vsel %vm1092, %v556, %v645
      %v1283 = vsel %vm1092, %v557, %v646
      %v1287 = vsel %vm1092, %v712, %v801
      %v1291 = vsel %vm1092, %v713, %v802
      %v1295 = vsel %vm1092, %v714, %v803
      %v1299 = vsel %vm1092, %v715, %v804
      %v1303 = vsel %vm1092, %v716, %v805
      %v1307 = vsel %vm1092, %v717, %v806
      %v1311 = vsel %vm1092, %v718, %v807
      %v1315 = vsel %vm1092, %v719, %v808
      %v1319 = vsel %vm1092, %v720, %v809
      %v1323 = vsel %vm1092, %v721, %v810
      %v1327 = vsel %vm1092, %v722, %v811
      %v1331 = vsel %vm1092, %v723, %v812
      %v1335 = vsel %vm1092, %v724, %v813
      %v1339 = vsel %vm1092, %v725, %v814
      %v1343 = vsel %vm1092, %v726, %v815
      %v1347 = vsel %vm1092, %v727, %v816
      %v1351 = vsel %vm1092, %v728, %v817
      %v1355 = vsel %vm1092, %v729, %v818
      %v1359 = vsel %vm1092, %v730, %v819
      %v1363 = vsel %vm1092, %v731, %v820
      %v1367 = vsel %vm1092, %v732, %v821
      %v1371 = vsel %vm1092, %v733, %v822
      %v1375 = vsel %vm1092, %v734, %v823
      %v1379 = vsel %vm1092, %v735, %v824
      %v1383 = vsel %vm1092, %v890, %v979
      %v1387 = vsel %vm1092, %v891, %v980
      %v1391 = vsel %vm1092, %v892, %v981
      %v1395 = vsel %vm1092, %v893, %v982
      %v1399 = vsel %vm1092, %v894, %v983
      %v1403 = vsel %vm1092, %v895, %v984
      %v1407 = vsel %vm1092, %v896, %v985
      %v1411 = vsel %vm1092, %v897, %v986
      %v1415 = vsel %vm1092, %v898, %v987
      %v1419 = vsel %vm1092, %v899, %v988
      %v1423 = vsel %vm1092, %v900, %v989
      %v1427 = vsel %vm1092, %v901, %v990
      %v1431 = vsel %vm1092, %v902, %v991
      %v1435 = vsel %vm1092, %v903, %v992
      %v1439 = vsel %vm1092, %v904, %v993
      %v1443 = vsel %vm1092, %v905, %v994
      %v1447 = vsel %vm1092, %v906, %v995
      %v1451 = vsel %vm1092, %v907, %v996
      %v1455 = vsel %vm1092, %v908, %v997
      %v1459 = vsel %vm1092, %v909, %v998
      %v1463 = vsel %vm1092, %v910, %v999
      %v1467 = vsel %vm1092, %v911, %v1000
      %v1471 = vsel %vm1092, %v912, %v1001
      %v1475 = vsel %vm1092, %v913, %v1002
      %v1493 = vunpack.c.l.b16 %v284
      %v1494 = vunpack.c.l.b16 %v285
      %v1495 = vunpack.c.l.b16 %v286
      %v1496 = vunpack.c.l.b16 %v287
      %v1497 = vunpack.c.l.b16 %v288
      %v1498 = vunpack.c.l.b16 %v289
      %v1499 = vunpack.c.l.b16 %v290
      %v1500 = vunpack.c.l.b16 %v291
      %v1501 = vunpack.c.l.b16 %v292
      %v1502 = vunpack.c.l.b16 %v293
      %v1503 = vunpack.c.l.b16 %v294
      %v1504 = vunpack.c.l.b16 %v295
      %v1505 = vunpack.c.l.b16 %v296
      %v1506 = vunpack.c.l.b16 %v297
      %v1507 = vunpack.c.l.b16 %v298
      %v1508 = vunpack.c.l.b16 %v299
      %v1509 = vpack.c.b16 %v1494, %v1493
      %v1510 = vpack.c.b16 %v1496, %v1495
      %v1511 = vpack.c.b16 %v1498, %v1497
      %v1512 = vpack.c.b16 %v1500, %v1499
      %v1513 = vpack.c.b16 %v1502, %v1501
      %v1514 = vpack.c.b16 %v1504, %v1503
      %v1515 = vpack.c.b16 %v1506, %v1505
      %v1516 = vpack.c.b16 %v1508, %v1507
      %vm1517 = vcmask 588800
      %v1519 = vsel %vm1517, %v1509, 0
      %v1522 = vsel %vm1517, %v1510, 0
      %v1525 = vsel %vm1517, %v1511, 0
      %v1528 = vsel %vm1517, %v1512, 0
      %v1531 = vsel %vm1517, %v1513, 0
      %v1534 = vsel %vm1517, %v1514, 0
      %v1537 = vsel %vm1517, %v1515, 0
      %v1540 = vsel %vm1517, %v1516, 0
      %v1543 = vsel %vm1092, %v1068, 0
      %v1546 = vsel %vm1092, %v1069, 0
      %v1549 = vsel %vm1092, %v1070, 0
      %1551 = vmatpush.bf16.msra.mxu0 0
      %1552 = vmatpush.bf16.msra.mxu0 0
      %1553 = vmatpush.bf16.msra.mxu0 0
      %1554 = vmatpush.bf16.msra.mxu0 %v1543
      %1555 = vmatpush.bf16.msra.mxu0 %v1383
      %1556 = vmatpush.bf16.msra.mxu0 %v1287
      %1557 = vmatpush.bf16.msra.mxu0 %v1191
      %1558 = vmatpush.bf16.msra.mxu0 %v1095
      %1559 = vmatmul.bf16.gmra.mxu0 %v1519
      %v1560 = vpop.f32.mrf.mxu0
      %v1561 = vadd.f32 0.0, %v1560
      %v1562 = vpop.f32.mrf.mxu0
      %v1563 = vadd.f32 0.0, %v1562
      %1564 = vmatmul.bf16.gmra.mxu0 %v1522
      %v1565 = vpop.f32.mrf.mxu0
      %v1566 = vadd.f32 0.0, %v1565
      %v1567 = vpop.f32.mrf.mxu0
      %v1568 = vadd.f32 0.0, %v1567
      %1569 = vmatmul.bf16.gmra.mxu0 %v1525
      %v1570 = vpop.f32.mrf.mxu0
      %v1571 = vadd.f32 0.0, %v1570
      %v1572 = vpop.f32.mrf.mxu0
      %v1573 = vadd.f32 0.0, %v1572
      %1574 = vmatmul.bf16.gmra.mxu0 %v1528
      %v1575 = vpop.f32.mrf.mxu0
      %v1576 = vadd.f32 0.0, %v1575
      %v1577 = vpop.f32.mrf.mxu0
      %v1578 = vadd.f32 0.0, %v1577
      %1579 = vmatmul.bf16.gmra.mxu0 %v1531
      %v1580 = vpop.f32.mrf.mxu0
      %v1581 = vadd.f32 0.0, %v1580
      %v1582 = vpop.f32.mrf.mxu0
      %v1583 = vadd.f32 0.0, %v1582
      %1584 = vmatmul.bf16.gmra.mxu0 %v1534
      %v1585 = vpop.f32.mrf.mxu0
      %v1586 = vadd.f32 0.0, %v1585
      %v1587 = vpop.f32.mrf.mxu0
      %v1588 = vadd.f32 0.0, %v1587
      %1589 = vmatmul.bf16.gmra.mxu0 %v1537
      %v1590 = vpop.f32.mrf.mxu0
      %v1591 = vadd.f32 0.0, %v1590
      %v1592 = vpop.f32.mrf.mxu0
      %v1593 = vadd.f32 0.0, %v1592
      %1594 = vmatmul.bf16.gmra.mxu0 %v1540
      %v1595 = vpop.f32.mrf.mxu0
      %v1596 = vadd.f32 0.0, %v1595
      %v1597 = vpop.f32.mrf.mxu0
      %v1598 = vadd.f32 0.0, %v1597
      %1599 = vdwg.mxu0
      %1600 = vmatpush.bf16.msra.mxu0 0
      %1601 = vmatpush.bf16.msra.mxu0 0
      %1602 = vmatpush.bf16.msra.mxu0 0
      %1603 = vmatpush.bf16.msra.mxu0 %v1546
      %1604 = vmatpush.bf16.msra.mxu0 %v1387
      %1605 = vmatpush.bf16.msra.mxu0 %v1291
      %1606 = vmatpush.bf16.msra.mxu0 %v1195
      %1607 = vmatpush.bf16.msra.mxu0 %v1099
      %1608 = vmatmul.bf16.gmra.mxu0 %v1519
      %v1609 = vpop.f32.mrf.mxu0
      %v1610 = vadd.f32 0.0, %v1609
      %v1611 = vpop.f32.mrf.mxu0
      %v1612 = vadd.f32 0.0, %v1611
      %1613 = vmatmul.bf16.gmra.mxu0 %v1522
      %v1614 = vpop.f32.mrf.mxu0
      %v1615 = vadd.f32 0.0, %v1614
      %v1616 = vpop.f32.mrf.mxu0
      %v1617 = vadd.f32 0.0, %v1616
      %1618 = vmatmul.bf16.gmra.mxu0 %v1525
      %v1619 = vpop.f32.mrf.mxu0
      %v1620 = vadd.f32 0.0, %v1619
      %v1621 = vpop.f32.mrf.mxu0
      %v1622 = vadd.f32 0.0, %v1621
      %1623 = vmatmul.bf16.gmra.mxu0 %v1528
      %v1624 = vpop.f32.mrf.mxu0
      %v1625 = vadd.f32 0.0, %v1624
      %v1626 = vpop.f32.mrf.mxu0
      %v1627 = vadd.f32 0.0, %v1626
      %1628 = vmatmul.bf16.gmra.mxu0 %v1531
      %v1629 = vpop.f32.mrf.mxu0
      %v1630 = vadd.f32 0.0, %v1629
      %v1631 = vpop.f32.mrf.mxu0
      %v1632 = vadd.f32 0.0, %v1631
      %1633 = vmatmul.bf16.gmra.mxu0 %v1534
      %v1634 = vpop.f32.mrf.mxu0
      %v1635 = vadd.f32 0.0, %v1634
      %v1636 = vpop.f32.mrf.mxu0
      %v1637 = vadd.f32 0.0, %v1636
      %1638 = vmatmul.bf16.gmra.mxu0 %v1537
      %v1639 = vpop.f32.mrf.mxu0
      %v1640 = vadd.f32 0.0, %v1639
      %v1641 = vpop.f32.mrf.mxu0
      %v1642 = vadd.f32 0.0, %v1641
      %1643 = vmatmul.bf16.gmra.mxu0 %v1540
      %v1644 = vpop.f32.mrf.mxu0
      %v1645 = vadd.f32 0.0, %v1644
      %v1646 = vpop.f32.mrf.mxu0
      %v1647 = vadd.f32 0.0, %v1646
      %1648 = vdwg.mxu0
      %1649 = vmatpush.bf16.msra.mxu0 0
      %1650 = vmatpush.bf16.msra.mxu0 0
      %1651 = vmatpush.bf16.msra.mxu0 0
      %1652 = vmatpush.bf16.msra.mxu0 %v1549
      %1653 = vmatpush.bf16.msra.mxu0 %v1391
      %1654 = vmatpush.bf16.msra.mxu0 %v1295
      %1655 = vmatpush.bf16.msra.mxu0 %v1199
      %1656 = vmatpush.bf16.msra.mxu0 %v1103
      %1657 = vmatmul.bf16.gmra.mxu0 %v1519
      %v1658 = vpop.f32.mrf.mxu0
      %v1659 = vadd.f32 0.0, %v1658
      %v1660 = vpop.f32.mrf.mxu0
      %v1661 = vadd.f32 0.0, %v1660
      %1662 = vmatmul.bf16.gmra.mxu0 %v1522
      %v1663 = vpop.f32.mrf.mxu0
      %v1664 = vadd.f32 0.0, %v1663
      %v1665 = vpop.f32.mrf.mxu0
      %v1666 = vadd.f32 0.0, %v1665
      %1667 = vmatmul.bf16.gmra.mxu0 %v1525
      %v1668 = vpop.f32.mrf.mxu0
      %v1669 = vadd.f32 0.0, %v1668
      %v1670 = vpop.f32.mrf.mxu0
      %v1671 = vadd.f32 0.0, %v1670
      %1672 = vmatmul.bf16.gmra.mxu0 %v1528
      %v1673 = vpop.f32.mrf.mxu0
      %v1674 = vadd.f32 0.0, %v1673
      %v1675 = vpop.f32.mrf.mxu0
      %v1676 = vadd.f32 0.0, %v1675
      %1677 = vmatmul.bf16.gmra.mxu0 %v1531
      %v1678 = vpop.f32.mrf.mxu0
      %v1679 = vadd.f32 0.0, %v1678
      %v1680 = vpop.f32.mrf.mxu0
      %v1681 = vadd.f32 0.0, %v1680
      %1682 = vmatmul.bf16.gmra.mxu0 %v1534
      %v1683 = vpop.f32.mrf.mxu0
      %v1684 = vadd.f32 0.0, %v1683
      %v1685 = vpop.f32.mrf.mxu0
      %v1686 = vadd.f32 0.0, %v1685
      %1687 = vmatmul.bf16.gmra.mxu0 %v1537
      %v1688 = vpop.f32.mrf.mxu0
      %v1689 = vadd.f32 0.0, %v1688
      %v1690 = vpop.f32.mrf.mxu0
      %v1691 = vadd.f32 0.0, %v1690
      %1692 = vmatmul.bf16.gmra.mxu0 %v1540
      %v1693 = vpop.f32.mrf.mxu0
      %v1694 = vadd.f32 0.0, %v1693
      %v1695 = vpop.f32.mrf.mxu0
      %v1696 = vadd.f32 0.0, %v1695
      %1697 = vdwg.mxu0
      %v1699 = vsel %vm1092, %v1071, 0
      %v1702 = vsel %vm1092, %v1072, 0
      %v1705 = vsel %vm1092, %v1073, 0
      %1707 = vmatpush.bf16.msra.mxu0 0
      %1708 = vmatpush.bf16.msra.mxu0 0
      %1709 = vmatpush.bf16.msra.mxu0 0
      %1710 = vmatpush.bf16.msra.mxu0 %v1699
      %1711 = vmatpush.bf16.msra.mxu0 %v1395
      %1712 = vmatpush.bf16.msra.mxu0 %v1299
      %1713 = vmatpush.bf16.msra.mxu0 %v1203
      %1714 = vmatpush.bf16.msra.mxu0 %v1107
      %1715 = vmatmul.bf16.gmra.mxu0 %v1519
      %v1716 = vpop.f32.mrf.mxu0
      %v1717 = vadd.f32 0.0, %v1716
      %v1718 = vpop.f32.mrf.mxu0
      %v1719 = vadd.f32 0.0, %v1718
      %1720 = vmatmul.bf16.gmra.mxu0 %v1522
      %v1721 = vpop.f32.mrf.mxu0
      %v1722 = vadd.f32 0.0, %v1721
      %v1723 = vpop.f32.mrf.mxu0
      %v1724 = vadd.f32 0.0, %v1723
      %1725 = vmatmul.bf16.gmra.mxu0 %v1525
      %v1726 = vpop.f32.mrf.mxu0
      %v1727 = vadd.f32 0.0, %v1726
      %v1728 = vpop.f32.mrf.mxu0
      %v1729 = vadd.f32 0.0, %v1728
      %1730 = vmatmul.bf16.gmra.mxu0 %v1528
      %v1731 = vpop.f32.mrf.mxu0
      %v1732 = vadd.f32 0.0, %v1731
      %v1733 = vpop.f32.mrf.mxu0
      %v1734 = vadd.f32 0.0, %v1733
      %1735 = vmatmul.bf16.gmra.mxu0 %v1531
      %v1736 = vpop.f32.mrf.mxu0
      %v1737 = vadd.f32 0.0, %v1736
      %v1738 = vpop.f32.mrf.mxu0
      %v1739 = vadd.f32 0.0, %v1738
      %1740 = vmatmul.bf16.gmra.mxu0 %v1534
      %v1741 = vpop.f32.mrf.mxu0
      %v1742 = vadd.f32 0.0, %v1741
      %v1743 = vpop.f32.mrf.mxu0
      %v1744 = vadd.f32 0.0, %v1743
      %1745 = vmatmul.bf16.gmra.mxu0 %v1537
      %v1746 = vpop.f32.mrf.mxu0
      %v1747 = vadd.f32 0.0, %v1746
      %v1748 = vpop.f32.mrf.mxu0
      %v1749 = vadd.f32 0.0, %v1748
      %1750 = vmatmul.bf16.gmra.mxu0 %v1540
      %v1751 = vpop.f32.mrf.mxu0
      %v1752 = vadd.f32 0.0, %v1751
      %v1753 = vpop.f32.mrf.mxu0
      %v1754 = vadd.f32 0.0, %v1753
      %1755 = vdwg.mxu0
      %1756 = vmatpush.bf16.msra.mxu0 0
      %1757 = vmatpush.bf16.msra.mxu0 0
      %1758 = vmatpush.bf16.msra.mxu0 0
      %1759 = vmatpush.bf16.msra.mxu0 %v1702
      %1760 = vmatpush.bf16.msra.mxu0 %v1399
      %1761 = vmatpush.bf16.msra.mxu0 %v1303
      %1762 = vmatpush.bf16.msra.mxu0 %v1207
      %1763 = vmatpush.bf16.msra.mxu0 %v1111
      %1764 = vmatmul.bf16.gmra.mxu0 %v1519
      %v1765 = vpop.f32.mrf.mxu0
      %v1766 = vadd.f32 0.0, %v1765
      %v1767 = vpop.f32.mrf.mxu0
      %v1768 = vadd.f32 0.0, %v1767
      %1769 = vmatmul.bf16.gmra.mxu0 %v1522
      %v1770 = vpop.f32.mrf.mxu0
      %v1771 = vadd.f32 0.0, %v1770
      %v1772 = vpop.f32.mrf.mxu0
      %v1773 = vadd.f32 0.0, %v1772
      %1774 = vmatmul.bf16.gmra.mxu0 %v1525
      %v1775 = vpop.f32.mrf.mxu0
      %v1776 = vadd.f32 0.0, %v1775
      %v1777 = vpop.f32.mrf.mxu0
      %v1778 = vadd.f32 0.0, %v1777
      %1779 = vmatmul.bf16.gmra.mxu0 %v1528
      %v1780 = vpop.f32.mrf.mxu0
      %v1781 = vadd.f32 0.0, %v1780
      %v1782 = vpop.f32.mrf.mxu0
      %v1783 = vadd.f32 0.0, %v1782
      %1784 = vmatmul.bf16.gmra.mxu0 %v1531
      %v1785 = vpop.f32.mrf.mxu0
      %v1786 = vadd.f32 0.0, %v1785
      %v1787 = vpop.f32.mrf.mxu0
      %v1788 = vadd.f32 0.0, %v1787
      %1789 = vmatmul.bf16.gmra.mxu0 %v1534
      %v1790 = vpop.f32.mrf.mxu0
      %v1791 = vadd.f32 0.0, %v1790
      %v1792 = vpop.f32.mrf.mxu0
      %v1793 = vadd.f32 0.0, %v1792
      %1794 = vmatmul.bf16.gmra.mxu0 %v1537
      %v1795 = vpop.f32.mrf.mxu0
      %v1796 = vadd.f32 0.0, %v1795
      %v1797 = vpop.f32.mrf.mxu0
      %v1798 = vadd.f32 0.0, %v1797
      %1799 = vmatmul.bf16.gmra.mxu0 %v1540
      %v1800 = vpop.f32.mrf.mxu0
      %v1801 = vadd.f32 0.0, %v1800
      %v1802 = vpop.f32.mrf.mxu0
      %v1803 = vadd.f32 0.0, %v1802
      %1804 = vdwg.mxu0
      %1805 = vmatpush.bf16.msra.mxu0 0
      %1806 = vmatpush.bf16.msra.mxu0 0
      %1807 = vmatpush.bf16.msra.mxu0 0
      %1808 = vmatpush.bf16.msra.mxu0 %v1705
      %1809 = vmatpush.bf16.msra.mxu0 %v1403
      %1810 = vmatpush.bf16.msra.mxu0 %v1307
      %1811 = vmatpush.bf16.msra.mxu0 %v1211
      %1812 = vmatpush.bf16.msra.mxu0 %v1115
      %1813 = vmatmul.bf16.gmra.mxu0 %v1519
      %v1814 = vpop.f32.mrf.mxu0
      %v1815 = vadd.f32 0.0, %v1814
      %v1816 = vpop.f32.mrf.mxu0
      %v1817 = vadd.f32 0.0, %v1816
      %1818 = vmatmul.bf16.gmra.mxu0 %v1522
      %v1819 = vpop.f32.mrf.mxu0
      %v1820 = vadd.f32 0.0, %v1819
      %v1821 = vpop.f32.mrf.mxu0
      %v1822 = vadd.f32 0.0, %v1821
      %1823 = vmatmul.bf16.gmra.mxu0 %v1525
      %v1824 = vpop.f32.mrf.mxu0
      %v1825 = vadd.f32 0.0, %v1824
      %v1826 = vpop.f32.mrf.mxu0
      %v1827 = vadd.f32 0.0, %v1826
      %1828 = vmatmul.bf16.gmra.mxu0 %v1528
      %v1829 = vpop.f32.mrf.mxu0
      %v1830 = vadd.f32 0.0, %v1829
      %v1831 = vpop.f32.mrf.mxu0
      %v1832 = vadd.f32 0.0, %v1831
      %1833 = vmatmul.bf16.gmra.mxu0 %v1531
      %v1834 = vpop.f32.mrf.mxu0
      %v1835 = vadd.f32 0.0, %v1834
      %v1836 = vpop.f32.mrf.mxu0
      %v1837 = vadd.f32 0.0, %v1836
      %1838 = vmatmul.bf16.gmra.mxu0 %v1534
      %v1839 = vpop.f32.mrf.mxu0
      %v1840 = vadd.f32 0.0, %v1839
      %v1841 = vpop.f32.mrf.mxu0
      %v1842 = vadd.f32 0.0, %v1841
      %1843 = vmatmul.bf16.gmra.mxu0 %v1537
      %v1844 = vpop.f32.mrf.mxu0
      %v1845 = vadd.f32 0.0, %v1844
      %v1846 = vpop.f32.mrf.mxu0
      %v1847 = vadd.f32 0.0, %v1846
      %1848 = vmatmul.bf16.gmra.mxu0 %v1540
      %v1849 = vpop.f32.mrf.mxu0
      %v1850 = vadd.f32 0.0, %v1849
      %v1851 = vpop.f32.mrf.mxu0
      %v1852 = vadd.f32 0.0, %v1851
      %1853 = vdwg.mxu0
      %v1855 = vsel %vm1092, %v1074, 0
      %v1858 = vsel %vm1092, %v1075, 0
      %v1861 = vsel %vm1092, %v1076, 0
      %1863 = vmatpush.bf16.msra.mxu0 0
      %1864 = vmatpush.bf16.msra.mxu0 0
      %1865 = vmatpush.bf16.msra.mxu0 0
      %1866 = vmatpush.bf16.msra.mxu0 %v1855
      %1867 = vmatpush.bf16.msra.mxu0 %v1407
      %1868 = vmatpush.bf16.msra.mxu0 %v1311
      %1869 = vmatpush.bf16.msra.mxu0 %v1215
      %1870 = vmatpush.bf16.msra.mxu0 %v1119
      %1871 = vmatmul.bf16.gmra.mxu0 %v1519
      %v1872 = vpop.f32.mrf.mxu0
      %v1873 = vadd.f32 0.0, %v1872
      %v1874 = vpop.f32.mrf.mxu0
      %v1875 = vadd.f32 0.0, %v1874
      %1876 = vmatmul.bf16.gmra.mxu0 %v1522
      %v1877 = vpop.f32.mrf.mxu0
      %v1878 = vadd.f32 0.0, %v1877
      %v1879 = vpop.f32.mrf.mxu0
      %v1880 = vadd.f32 0.0, %v1879
      %1881 = vmatmul.bf16.gmra.mxu0 %v1525
      %v1882 = vpop.f32.mrf.mxu0
      %v1883 = vadd.f32 0.0, %v1882
      %v1884 = vpop.f32.mrf.mxu0
      %v1885 = vadd.f32 0.0, %v1884
      %1886 = vmatmul.bf16.gmra.mxu0 %v1528
      %v1887 = vpop.f32.mrf.mxu0
      %v1888 = vadd.f32 0.0, %v1887
      %v1889 = vpop.f32.mrf.mxu0
      %v1890 = vadd.f32 0.0, %v1889
      %1891 = vmatmul.bf16.gmra.mxu0 %v1531
      %v1892 = vpop.f32.mrf.mxu0
      %v1893 = vadd.f32 0.0, %v1892
      %v1894 = vpop.f32.mrf.mxu0
      %v1895 = vadd.f32 0.0, %v1894
      %1896 = vmatmul.bf16.gmra.mxu0 %v1534
      %v1897 = vpop.f32.mrf.mxu0
      %v1898 = vadd.f32 0.0, %v1897
      %v1899 = vpop.f32.mrf.mxu0
      %v1900 = vadd.f32 0.0, %v1899
      %1901 = vmatmul.bf16.gmra.mxu0 %v1537
      %v1902 = vpop.f32.mrf.mxu0
      %v1903 = vadd.f32 0.0, %v1902
      %v1904 = vpop.f32.mrf.mxu0
      %v1905 = vadd.f32 0.0, %v1904
      %1906 = vmatmul.bf16.gmra.mxu0 %v1540
      %v1907 = vpop.f32.mrf.mxu0
      %v1908 = vadd.f32 0.0, %v1907
      %v1909 = vpop.f32.mrf.mxu0
      %v1910 = vadd.f32 0.0, %v1909
      %1911 = vdwg.mxu0
      %1912 = vmatpush.bf16.msra.mxu0 0
      %1913 = vmatpush.bf16.msra.mxu0 0
      %1914 = vmatpush.bf16.msra.mxu0 0
      %1915 = vmatpush.bf16.msra.mxu0 %v1858
      %1916 = vmatpush.bf16.msra.mxu0 %v1411
      %1917 = vmatpush.bf16.msra.mxu0 %v1315
      %1918 = vmatpush.bf16.msra.mxu0 %v1219
      %1919 = vmatpush.bf16.msra.mxu0 %v1123
      %1920 = vmatmul.bf16.gmra.mxu0 %v1519
      %v1921 = vpop.f32.mrf.mxu0
      %v1922 = vadd.f32 0.0, %v1921
      %v1923 = vpop.f32.mrf.mxu0
      %v1924 = vadd.f32 0.0, %v1923
      %1925 = vmatmul.bf16.gmra.mxu0 %v1522
      %v1926 = vpop.f32.mrf.mxu0
      %v1927 = vadd.f32 0.0, %v1926
      %v1928 = vpop.f32.mrf.mxu0
      %v1929 = vadd.f32 0.0, %v1928
      %1930 = vmatmul.bf16.gmra.mxu0 %v1525
      %v1931 = vpop.f32.mrf.mxu0
      %v1932 = vadd.f32 0.0, %v1931
      %v1933 = vpop.f32.mrf.mxu0
      %v1934 = vadd.f32 0.0, %v1933
      %1935 = vmatmul.bf16.gmra.mxu0 %v1528
      %v1936 = vpop.f32.mrf.mxu0
      %v1937 = vadd.f32 0.0, %v1936
      %v1938 = vpop.f32.mrf.mxu0
      %v1939 = vadd.f32 0.0, %v1938
      %1940 = vmatmul.bf16.gmra.mxu0 %v1531
      %v1941 = vpop.f32.mrf.mxu0
      %v1942 = vadd.f32 0.0, %v1941
      %v1943 = vpop.f32.mrf.mxu0
      %v1944 = vadd.f32 0.0, %v1943
      %1945 = vmatmul.bf16.gmra.mxu0 %v1534
      %v1946 = vpop.f32.mrf.mxu0
      %v1947 = vadd.f32 0.0, %v1946
      %v1948 = vpop.f32.mrf.mxu0
      %v1949 = vadd.f32 0.0, %v1948
      %1950 = vmatmul.bf16.gmra.mxu0 %v1537
      %v1951 = vpop.f32.mrf.mxu0
      %v1952 = vadd.f32 0.0, %v1951
      %v1953 = vpop.f32.mrf.mxu0
      %v1954 = vadd.f32 0.0, %v1953
      %1955 = vmatmul.bf16.gmra.mxu0 %v1540
      %v1956 = vpop.f32.mrf.mxu0
      %v1957 = vadd.f32 0.0, %v1956
      %v1958 = vpop.f32.mrf.mxu0
      %v1959 = vadd.f32 0.0, %v1958
      %1960 = vdwg.mxu0
      %1961 = vmatpush.bf16.msra.mxu0 0
      %1962 = vmatpush.bf16.msra.mxu0 0
      %1963 = vmatpush.bf16.msra.mxu0 0
      %1964 = vmatpush.bf16.msra.mxu0 %v1861
      %1965 = vmatpush.bf16.msra.mxu0 %v1415
      %1966 = vmatpush.bf16.msra.mxu0 %v1319
      %1967 = vmatpush.bf16.msra.mxu0 %v1223
      %1968 = vmatpush.bf16.msra.mxu0 %v1127
      %1969 = vmatmul.bf16.gmra.mxu0 %v1519
      %v1970 = vpop.f32.mrf.mxu0
      %v1971 = vadd.f32 0.0, %v1970
      %v1972 = vpop.f32.mrf.mxu0
      %v1973 = vadd.f32 0.0, %v1972
      %1974 = vmatmul.bf16.gmra.mxu0 %v1522
      %v1975 = vpop.f32.mrf.mxu0
      %v1976 = vadd.f32 0.0, %v1975
      %v1977 = vpop.f32.mrf.mxu0
      %v1978 = vadd.f32 0.0, %v1977
      %1979 = vmatmul.bf16.gmra.mxu0 %v1525
      %v1980 = vpop.f32.mrf.mxu0
      %v1981 = vadd.f32 0.0, %v1980
      %v1982 = vpop.f32.mrf.mxu0
      %v1983 = vadd.f32 0.0, %v1982
      %1984 = vmatmul.bf16.gmra.mxu0 %v1528
      %v1985 = vpop.f32.mrf.mxu0
      %v1986 = vadd.f32 0.0, %v1985
      %v1987 = vpop.f32.mrf.mxu0
      %v1988 = vadd.f32 0.0, %v1987
      %1989 = vmatmul.bf16.gmra.mxu0 %v1531
      %v1990 = vpop.f32.mrf.mxu0
      %v1991 = vadd.f32 0.0, %v1990
      %v1992 = vpop.f32.mrf.mxu0
      %v1993 = vadd.f32 0.0, %v1992
      %1994 = vmatmul.bf16.gmra.mxu0 %v1534
      %v1995 = vpop.f32.mrf.mxu0
      %v1996 = vadd.f32 0.0, %v1995
      %v1997 = vpop.f32.mrf.mxu0
      %v1998 = vadd.f32 0.0, %v1997
      %1999 = vmatmul.bf16.gmra.mxu0 %v1537
      %v2000 = vpop.f32.mrf.mxu0
      %v2001 = vadd.f32 0.0, %v2000
      %v2002 = vpop.f32.mrf.mxu0
      %v2003 = vadd.f32 0.0, %v2002
      %2004 = vmatmul.bf16.gmra.mxu0 %v1540
      %v2005 = vpop.f32.mrf.mxu0
      %v2006 = vadd.f32 0.0, %v2005
      %v2007 = vpop.f32.mrf.mxu0
      %v2008 = vadd.f32 0.0, %v2007
      %2009 = vdwg.mxu0
      %v2011 = vsel %vm1092, %v1077, 0
      %v2014 = vsel %vm1092, %v1078, 0
      %v2017 = vsel %vm1092, %v1079, 0
      %2019 = vmatpush.bf16.msra.mxu0 0
      %2020 = vmatpush.bf16.msra.mxu0 0
      %2021 = vmatpush.bf16.msra.mxu0 0
      %2022 = vmatpush.bf16.msra.mxu0 %v2011
      %2023 = vmatpush.bf16.msra.mxu0 %v1419
      %2024 = vmatpush.bf16.msra.mxu0 %v1323
      %2025 = vmatpush.bf16.msra.mxu0 %v1227
      %2026 = vmatpush.bf16.msra.mxu0 %v1131
      %2027 = vmatmul.bf16.gmra.mxu0 %v1519
      %v2028 = vpop.f32.mrf.mxu0
      %v2029 = vadd.f32 0.0, %v2028
      %v2030 = vpop.f32.mrf.mxu0
      %v2031 = vadd.f32 0.0, %v2030
      %2032 = vmatmul.bf16.gmra.mxu0 %v1522
      %v2033 = vpop.f32.mrf.mxu0
      %v2034 = vadd.f32 0.0, %v2033
      %v2035 = vpop.f32.mrf.mxu0
      %v2036 = vadd.f32 0.0, %v2035
      %2037 = vmatmul.bf16.gmra.mxu0 %v1525
      %v2038 = vpop.f32.mrf.mxu0
      %v2039 = vadd.f32 0.0, %v2038
      %v2040 = vpop.f32.mrf.mxu0
      %v2041 = vadd.f32 0.0, %v2040
      %2042 = vmatmul.bf16.gmra.mxu0 %v1528
      %v2043 = vpop.f32.mrf.mxu0
      %v2044 = vadd.f32 0.0, %v2043
      %v2045 = vpop.f32.mrf.mxu0
      %v2046 = vadd.f32 0.0, %v2045
      %2047 = vmatmul.bf16.gmra.mxu0 %v1531
      %v2048 = vpop.f32.mrf.mxu0
      %v2049 = vadd.f32 0.0, %v2048
      %v2050 = vpop.f32.mrf.mxu0
      %v2051 = vadd.f32 0.0, %v2050
      %2052 = vmatmul.bf16.gmra.mxu0 %v1534
      %v2053 = vpop.f32.mrf.mxu0
      %v2054 = vadd.f32 0.0, %v2053
      %v2055 = vpop.f32.mrf.mxu0
      %v2056 = vadd.f32 0.0, %v2055
      %2057 = vmatmul.bf16.gmra.mxu0 %v1537
      %v2058 = vpop.f32.mrf.mxu0
      %v2059 = vadd.f32 0.0, %v2058
      %v2060 = vpop.f32.mrf.mxu0
      %v2061 = vadd.f32 0.0, %v2060
      %2062 = vmatmul.bf16.gmra.mxu0 %v1540
      %v2063 = vpop.f32.mrf.mxu0
      %v2064 = vadd.f32 0.0, %v2063
      %v2065 = vpop.f32.mrf.mxu0
      %v2066 = vadd.f32 0.0, %v2065
      %2067 = vdwg.mxu0
      %2068 = vmatpush.bf16.msra.mxu0 0
      %2069 = vmatpush.bf16.msra.mxu0 0
      %2070 = vmatpush.bf16.msra.mxu0 0
      %2071 = vmatpush.bf16.msra.mxu0 %v2014
      %2072 = vmatpush.bf16.msra.mxu0 %v1423
      %2073 = vmatpush.bf16.msra.mxu0 %v1327
      %2074 = vmatpush.bf16.msra.mxu0 %v1231
      %2075 = vmatpush.bf16.msra.mxu0 %v1135
      %2076 = vmatmul.bf16.gmra.mxu0 %v1519
      %v2077 = vpop.f32.mrf.mxu0
      %v2078 = vadd.f32 0.0, %v2077
      %v2079 = vpop.f32.mrf.mxu0
      %v2080 = vadd.f32 0.0, %v2079
      %2081 = vmatmul.bf16.gmra.mxu0 %v1522
      %v2082 = vpop.f32.mrf.mxu0
      %v2083 = vadd.f32 0.0, %v2082
      %v2084 = vpop.f32.mrf.mxu0
      %v2085 = vadd.f32 0.0, %v2084
      %2086 = vmatmul.bf16.gmra.mxu0 %v1525
      %v2087 = vpop.f32.mrf.mxu0
      %v2088 = vadd.f32 0.0, %v2087
      %v2089 = vpop.f32.mrf.mxu0
      %v2090 = vadd.f32 0.0, %v2089
      %2091 = vmatmul.bf16.gmra.mxu0 %v1528
      %v2092 = vpop.f32.mrf.mxu0
      %v2093 = vadd.f32 0.0, %v2092
      %v2094 = vpop.f32.mrf.mxu0
      %v2095 = vadd.f32 0.0, %v2094
      %2096 = vmatmul.bf16.gmra.mxu0 %v1531
      %v2097 = vpop.f32.mrf.mxu0
      %v2098 = vadd.f32 0.0, %v2097
      %v2099 = vpop.f32.mrf.mxu0
      %v2100 = vadd.f32 0.0, %v2099
      %2101 = vmatmul.bf16.gmra.mxu0 %v1534
      %v2102 = vpop.f32.mrf.mxu0
      %v2103 = vadd.f32 0.0, %v2102
      %v2104 = vpop.f32.mrf.mxu0
      %v2105 = vadd.f32 0.0, %v2104
      %2106 = vmatmul.bf16.gmra.mxu0 %v1537
      %v2107 = vpop.f32.mrf.mxu0
      %v2108 = vadd.f32 0.0, %v2107
      %v2109 = vpop.f32.mrf.mxu0
      %v2110 = vadd.f32 0.0, %v2109
      %2111 = vmatmul.bf16.gmra.mxu0 %v1540
      %v2112 = vpop.f32.mrf.mxu0
      %v2113 = vadd.f32 0.0, %v2112
      %v2114 = vpop.f32.mrf.mxu0
      %v2115 = vadd.f32 0.0, %v2114
      %2116 = vdwg.mxu0
      %2117 = vmatpush.bf16.msra.mxu0 0
      %2118 = vmatpush.bf16.msra.mxu0 0
      %2119 = vmatpush.bf16.msra.mxu0 0
      %2120 = vmatpush.bf16.msra.mxu0 %v2017
      %2121 = vmatpush.bf16.msra.mxu0 %v1427
      %2122 = vmatpush.bf16.msra.mxu0 %v1331
      %2123 = vmatpush.bf16.msra.mxu0 %v1235
      %2124 = vmatpush.bf16.msra.mxu0 %v1139
      %2125 = vmatmul.bf16.gmra.mxu0 %v1519
      %v2126 = vpop.f32.mrf.mxu0
      %v2127 = vadd.f32 0.0, %v2126
      %v2128 = vpop.f32.mrf.mxu0
      %v2129 = vadd.f32 0.0, %v2128
      %2130 = vmatmul.bf16.gmra.mxu0 %v1522
      %v2131 = vpop.f32.mrf.mxu0
      %v2132 = vadd.f32 0.0, %v2131
      %v2133 = vpop.f32.mrf.mxu0
      %v2134 = vadd.f32 0.0, %v2133
      %2135 = vmatmul.bf16.gmra.mxu0 %v1525
      %v2136 = vpop.f32.mrf.mxu0
      %v2137 = vadd.f32 0.0, %v2136
      %v2138 = vpop.f32.mrf.mxu0
      %v2139 = vadd.f32 0.0, %v2138
      %2140 = vmatmul.bf16.gmra.mxu0 %v1528
      %v2141 = vpop.f32.mrf.mxu0
      %v2142 = vadd.f32 0.0, %v2141
      %v2143 = vpop.f32.mrf.mxu0
      %v2144 = vadd.f32 0.0, %v2143
      %2145 = vmatmul.bf16.gmra.mxu0 %v1531
      %v2146 = vpop.f32.mrf.mxu0
      %v2147 = vadd.f32 0.0, %v2146
      %v2148 = vpop.f32.mrf.mxu0
      %v2149 = vadd.f32 0.0, %v2148
      %2150 = vmatmul.bf16.gmra.mxu0 %v1534
      %v2151 = vpop.f32.mrf.mxu0
      %v2152 = vadd.f32 0.0, %v2151
      %v2153 = vpop.f32.mrf.mxu0
      %v2154 = vadd.f32 0.0, %v2153
      %2155 = vmatmul.bf16.gmra.mxu0 %v1537
      %v2156 = vpop.f32.mrf.mxu0
      %v2157 = vadd.f32 0.0, %v2156
      %v2158 = vpop.f32.mrf.mxu0
      %v2159 = vadd.f32 0.0, %v2158
      %2160 = vmatmul.bf16.gmra.mxu0 %v1540
      %v2161 = vpop.f32.mrf.mxu0
      %v2162 = vadd.f32 0.0, %v2161
      %v2163 = vpop.f32.mrf.mxu0
      %v2164 = vadd.f32 0.0, %v2163
      %2165 = vdwg.mxu0
      %v2167 = vsel %vm1092, %v1080, 0
      %v2170 = vsel %vm1092, %v1081, 0
      %v2173 = vsel %vm1092, %v1082, 0
      %2175 = vmatpush.bf16.msra.mxu0 0
      %2176 = vmatpush.bf16.msra.mxu0 0
      %2177 = vmatpush.bf16.msra.mxu0 0
      %2178 = vmatpush.bf16.msra.mxu0 %v2167
      %2179 = vmatpush.bf16.msra.mxu0 %v1431
      %2180 = vmatpush.bf16.msra.mxu0 %v1335
      %2181 = vmatpush.bf16.msra.mxu0 %v1239
      %2182 = vmatpush.bf16.msra.mxu0 %v1143
      %2183 = vmatmul.bf16.gmra.mxu0 %v1519
      %v2184 = vpop.f32.mrf.mxu0
      %v2185 = vadd.f32 0.0, %v2184
      %v2186 = vpop.f32.mrf.mxu0
      %v2187 = vadd.f32 0.0, %v2186
      %2188 = vmatmul.bf16.gmra.mxu0 %v1522
      %v2189 = vpop.f32.mrf.mxu0
      %v2190 = vadd.f32 0.0, %v2189
      %v2191 = vpop.f32.mrf.mxu0
      %v2192 = vadd.f32 0.0, %v2191
      %2193 = vmatmul.bf16.gmra.mxu0 %v1525
      %v2194 = vpop.f32.mrf.mxu0
      %v2195 = vadd.f32 0.0, %v2194
      %v2196 = vpop.f32.mrf.mxu0
      %v2197 = vadd.f32 0.0, %v2196
      %2198 = vmatmul.bf16.gmra.mxu0 %v1528
      %v2199 = vpop.f32.mrf.mxu0
      %v2200 = vadd.f32 0.0, %v2199
      %v2201 = vpop.f32.mrf.mxu0
      %v2202 = vadd.f32 0.0, %v2201
      %2203 = vmatmul.bf16.gmra.mxu0 %v1531
      %v2204 = vpop.f32.mrf.mxu0
      %v2205 = vadd.f32 0.0, %v2204
      %v2206 = vpop.f32.mrf.mxu0
      %v2207 = vadd.f32 0.0, %v2206
      %2208 = vmatmul.bf16.gmra.mxu0 %v1534
      %v2209 = vpop.f32.mrf.mxu0
      %v2210 = vadd.f32 0.0, %v2209
      %v2211 = vpop.f32.mrf.mxu0
      %v2212 = vadd.f32 0.0, %v2211
      %2213 = vmatmul.bf16.gmra.mxu0 %v1537
      %v2214 = vpop.f32.mrf.mxu0
      %v2215 = vadd.f32 0.0, %v2214
      %v2216 = vpop.f32.mrf.mxu0
      %v2217 = vadd.f32 0.0, %v2216
      %2218 = vmatmul.bf16.gmra.mxu0 %v1540
      %v2219 = vpop.f32.mrf.mxu0
      %v2220 = vadd.f32 0.0, %v2219
      %v2221 = vpop.f32.mrf.mxu0
      %v2222 = vadd.f32 0.0, %v2221
      %2223 = vdwg.mxu0
      %2224 = vmatpush.bf16.msra.mxu0 0
      %2225 = vmatpush.bf16.msra.mxu0 0
      %2226 = vmatpush.bf16.msra.mxu0 0
      %2227 = vmatpush.bf16.msra.mxu0 %v2170
      %2228 = vmatpush.bf16.msra.mxu0 %v1435
      %2229 = vmatpush.bf16.msra.mxu0 %v1339
      %2230 = vmatpush.bf16.msra.mxu0 %v1243
      %2231 = vmatpush.bf16.msra.mxu0 %v1147
      %2232 = vmatmul.bf16.gmra.mxu0 %v1519
      %v2233 = vpop.f32.mrf.mxu0
      %v2234 = vadd.f32 0.0, %v2233
      %v2235 = vpop.f32.mrf.mxu0
      %v2236 = vadd.f32 0.0, %v2235
      %2237 = vmatmul.bf16.gmra.mxu0 %v1522
      %v2238 = vpop.f32.mrf.mxu0
      %v2239 = vadd.f32 0.0, %v2238
      %v2240 = vpop.f32.mrf.mxu0
      %v2241 = vadd.f32 0.0, %v2240
      %2242 = vmatmul.bf16.gmra.mxu0 %v1525
      %v2243 = vpop.f32.mrf.mxu0
      %v2244 = vadd.f32 0.0, %v2243
      %v2245 = vpop.f32.mrf.mxu0
      %v2246 = vadd.f32 0.0, %v2245
      %2247 = vmatmul.bf16.gmra.mxu0 %v1528
      %v2248 = vpop.f32.mrf.mxu0
      %v2249 = vadd.f32 0.0, %v2248
      %v2250 = vpop.f32.mrf.mxu0
      %v2251 = vadd.f32 0.0, %v2250
      %2252 = vmatmul.bf16.gmra.mxu0 %v1531
      %v2253 = vpop.f32.mrf.mxu0
      %v2254 = vadd.f32 0.0, %v2253
      %v2255 = vpop.f32.mrf.mxu0
      %v2256 = vadd.f32 0.0, %v2255
      %2257 = vmatmul.bf16.gmra.mxu0 %v1534
      %v2258 = vpop.f32.mrf.mxu0
      %v2259 = vadd.f32 0.0, %v2258
      %v2260 = vpop.f32.mrf.mxu0
      %v2261 = vadd.f32 0.0, %v2260
      %2262 = vmatmul.bf16.gmra.mxu0 %v1537
      %v2263 = vpop.f32.mrf.mxu0
      %v2264 = vadd.f32 0.0, %v2263
      %v2265 = vpop.f32.mrf.mxu0
      %v2266 = vadd.f32 0.0, %v2265
      %2267 = vmatmul.bf16.gmra.mxu0 %v1540
      %v2268 = vpop.f32.mrf.mxu0
      %v2269 = vadd.f32 0.0, %v2268
      %v2270 = vpop.f32.mrf.mxu0
      %v2271 = vadd.f32 0.0, %v2270
      %2272 = vdwg.mxu0
      %2273 = vmatpush.bf16.msra.mxu0 0
      %2274 = vmatpush.bf16.msra.mxu0 0
      %2275 = vmatpush.bf16.msra.mxu0 0
      %2276 = vmatpush.bf16.msra.mxu0 %v2173
      %2277 = vmatpush.bf16.msra.mxu0 %v1439
      %2278 = vmatpush.bf16.msra.mxu0 %v1343
      %2279 = vmatpush.bf16.msra.mxu0 %v1247
      %2280 = vmatpush.bf16.msra.mxu0 %v1151
      %2281 = vmatmul.bf16.gmra.mxu0 %v1519
      %v2282 = vpop.f32.mrf.mxu0
      %v2283 = vadd.f32 0.0, %v2282
      %v2284 = vpop.f32.mrf.mxu0
      %v2285 = vadd.f32 0.0, %v2284
      %2286 = vmatmul.bf16.gmra.mxu0 %v1522
      %v2287 = vpop.f32.mrf.mxu0
      %v2288 = vadd.f32 0.0, %v2287
      %v2289 = vpop.f32.mrf.mxu0
      %v2290 = vadd.f32 0.0, %v2289
      %2291 = vmatmul.bf16.gmra.mxu0 %v1525
      %v2292 = vpop.f32.mrf.mxu0
      %v2293 = vadd.f32 0.0, %v2292
      %v2294 = vpop.f32.mrf.mxu0
      %v2295 = vadd.f32 0.0, %v2294
      %2296 = vmatmul.bf16.gmra.mxu0 %v1528
      %v2297 = vpop.f32.mrf.mxu0
      %v2298 = vadd.f32 0.0, %v2297
      %v2299 = vpop.f32.mrf.mxu0
      %v2300 = vadd.f32 0.0, %v2299
      %2301 = vmatmul.bf16.gmra.mxu0 %v1531
      %v2302 = vpop.f32.mrf.mxu0
      %v2303 = vadd.f32 0.0, %v2302
      %v2304 = vpop.f32.mrf.mxu0
      %v2305 = vadd.f32 0.0, %v2304
      %2306 = vmatmul.bf16.gmra.mxu0 %v1534
      %v2307 = vpop.f32.mrf.mxu0
      %v2308 = vadd.f32 0.0, %v2307
      %v2309 = vpop.f32.mrf.mxu0
      %v2310 = vadd.f32 0.0, %v2309
      %2311 = vmatmul.bf16.gmra.mxu0 %v1537
      %v2312 = vpop.f32.mrf.mxu0
      %v2313 = vadd.f32 0.0, %v2312
      %v2314 = vpop.f32.mrf.mxu0
      %v2315 = vadd.f32 0.0, %v2314
      %2316 = vmatmul.bf16.gmra.mxu0 %v1540
      %v2317 = vpop.f32.mrf.mxu0
      %v2318 = vadd.f32 0.0, %v2317
      %v2319 = vpop.f32.mrf.mxu0
      %v2320 = vadd.f32 0.0, %v2319
      %2321 = vdwg.mxu0
      %v2323 = vsel %vm1092, %v1083, 0
      %v2326 = vsel %vm1092, %v1084, 0
      %v2329 = vsel %vm1092, %v1085, 0
      %2331 = vmatpush.bf16.msra.mxu0 0
      %2332 = vmatpush.bf16.msra.mxu0 0
      %2333 = vmatpush.bf16.msra.mxu0 0
      %2334 = vmatpush.bf16.msra.mxu0 %v2323
      %2335 = vmatpush.bf16.msra.mxu0 %v1443
      %2336 = vmatpush.bf16.msra.mxu0 %v1347
      %2337 = vmatpush.bf16.msra.mxu0 %v1251
      %2338 = vmatpush.bf16.msra.mxu0 %v1155
      %2339 = vmatmul.bf16.gmra.mxu0 %v1519
      %v2340 = vpop.f32.mrf.mxu0
      %v2341 = vadd.f32 0.0, %v2340
      %v2342 = vpop.f32.mrf.mxu0
      %v2343 = vadd.f32 0.0, %v2342
      %2344 = vmatmul.bf16.gmra.mxu0 %v1522
      %v2345 = vpop.f32.mrf.mxu0
      %v2346 = vadd.f32 0.0, %v2345
      %v2347 = vpop.f32.mrf.mxu0
      %v2348 = vadd.f32 0.0, %v2347
      %2349 = vmatmul.bf16.gmra.mxu0 %v1525
      %v2350 = vpop.f32.mrf.mxu0
      %v2351 = vadd.f32 0.0, %v2350
      %v2352 = vpop.f32.mrf.mxu0
      %v2353 = vadd.f32 0.0, %v2352
      %2354 = vmatmul.bf16.gmra.mxu0 %v1528
      %v2355 = vpop.f32.mrf.mxu0
      %v2356 = vadd.f32 0.0, %v2355
      %v2357 = vpop.f32.mrf.mxu0
      %v2358 = vadd.f32 0.0, %v2357
      %2359 = vmatmul.bf16.gmra.mxu0 %v1531
      %v2360 = vpop.f32.mrf.mxu0
      %v2361 = vadd.f32 0.0, %v2360
      %v2362 = vpop.f32.mrf.mxu0
      %v2363 = vadd.f32 0.0, %v2362
      %2364 = vmatmul.bf16.gmra.mxu0 %v1534
      %v2365 = vpop.f32.mrf.mxu0
      %v2366 = vadd.f32 0.0, %v2365
      %v2367 = vpop.f32.mrf.mxu0
      %v2368 = vadd.f32 0.0, %v2367
      %2369 = vmatmul.bf16.gmra.mxu0 %v1537
      %v2370 = vpop.f32.mrf.mxu0
      %v2371 = vadd.f32 0.0, %v2370
      %v2372 = vpop.f32.mrf.mxu0
      %v2373 = vadd.f32 0.0, %v2372
      %2374 = vmatmul.bf16.gmra.mxu0 %v1540
      %v2375 = vpop.f32.mrf.mxu0
      %v2376 = vadd.f32 0.0, %v2375
      %v2377 = vpop.f32.mrf.mxu0
      %v2378 = vadd.f32 0.0, %v2377
      %2379 = vdwg.mxu0
      %2380 = vmatpush.bf16.msra.mxu0 0
      %2381 = vmatpush.bf16.msra.mxu0 0
      %2382 = vmatpush.bf16.msra.mxu0 0
      %2383 = vmatpush.bf16.msra.mxu0 %v2326
      %2384 = vmatpush.bf16.msra.mxu0 %v1447
      %2385 = vmatpush.bf16.msra.mxu0 %v1351
      %2386 = vmatpush.bf16.msra.mxu0 %v1255
      %2387 = vmatpush.bf16.msra.mxu0 %v1159
      %2388 = vmatmul.bf16.gmra.mxu0 %v1519
      %v2389 = vpop.f32.mrf.mxu0
      %v2390 = vadd.f32 0.0, %v2389
      %v2391 = vpop.f32.mrf.mxu0
      %v2392 = vadd.f32 0.0, %v2391
      %2393 = vmatmul.bf16.gmra.mxu0 %v1522
      %v2394 = vpop.f32.mrf.mxu0
      %v2395 = vadd.f32 0.0, %v2394
      %v2396 = vpop.f32.mrf.mxu0
      %v2397 = vadd.f32 0.0, %v2396
      %2398 = vmatmul.bf16.gmra.mxu0 %v1525
      %v2399 = vpop.f32.mrf.mxu0
      %v2400 = vadd.f32 0.0, %v2399
      %v2401 = vpop.f32.mrf.mxu0
      %v2402 = vadd.f32 0.0, %v2401
      %2403 = vmatmul.bf16.gmra.mxu0 %v1528
      %v2404 = vpop.f32.mrf.mxu0
      %v2405 = vadd.f32 0.0, %v2404
      %v2406 = vpop.f32.mrf.mxu0
      %v2407 = vadd.f32 0.0, %v2406
      %2408 = vmatmul.bf16.gmra.mxu0 %v1531
      %v2409 = vpop.f32.mrf.mxu0
      %v2410 = vadd.f32 0.0, %v2409
      %v2411 = vpop.f32.mrf.mxu0
      %v2412 = vadd.f32 0.0, %v2411
      %2413 = vmatmul.bf16.gmra.mxu0 %v1534
      %v2414 = vpop.f32.mrf.mxu0
      %v2415 = vadd.f32 0.0, %v2414
      %v2416 = vpop.f32.mrf.mxu0
      %v2417 = vadd.f32 0.0, %v2416
      %2418 = vmatmul.bf16.gmra.mxu0 %v1537
      %v2419 = vpop.f32.mrf.mxu0
      %v2420 = vadd.f32 0.0, %v2419
      %v2421 = vpop.f32.mrf.mxu0
      %v2422 = vadd.f32 0.0, %v2421
      %2423 = vmatmul.bf16.gmra.mxu0 %v1540
      %v2424 = vpop.f32.mrf.mxu0
      %v2425 = vadd.f32 0.0, %v2424
      %v2426 = vpop.f32.mrf.mxu0
      %v2427 = vadd.f32 0.0, %v2426
      %2428 = vdwg.mxu0
      %2429 = vmatpush.bf16.msra.mxu0 0
      %2430 = vmatpush.bf16.msra.mxu0 0
      %2431 = vmatpush.bf16.msra.mxu0 0
      %2432 = vmatpush.bf16.msra.mxu0 %v2329
      %2433 = vmatpush.bf16.msra.mxu0 %v1451
      %2434 = vmatpush.bf16.msra.mxu0 %v1355
      %2435 = vmatpush.bf16.msra.mxu0 %v1259
      %2436 = vmatpush.bf16.msra.mxu0 %v1163
      %2437 = vmatmul.bf16.gmra.mxu0 %v1519
      %v2438 = vpop.f32.mrf.mxu0
      %v2439 = vadd.f32 0.0, %v2438
      %v2440 = vpop.f32.mrf.mxu0
      %v2441 = vadd.f32 0.0, %v2440
      %2442 = vmatmul.bf16.gmra.mxu0 %v1522
      %v2443 = vpop.f32.mrf.mxu0
      %v2444 = vadd.f32 0.0, %v2443
      %v2445 = vpop.f32.mrf.mxu0
      %v2446 = vadd.f32 0.0, %v2445
      %2447 = vmatmul.bf16.gmra.mxu0 %v1525
      %v2448 = vpop.f32.mrf.mxu0
      %v2449 = vadd.f32 0.0, %v2448
      %v2450 = vpop.f32.mrf.mxu0
      %v2451 = vadd.f32 0.0, %v2450
      %2452 = vmatmul.bf16.gmra.mxu0 %v1528
      %v2453 = vpop.f32.mrf.mxu0
      %v2454 = vadd.f32 0.0, %v2453
      %v2455 = vpop.f32.mrf.mxu0
      %v2456 = vadd.f32 0.0, %v2455
      %2457 = vmatmul.bf16.gmra.mxu0 %v1531
      %v2458 = vpop.f32.mrf.mxu0
      %v2459 = vadd.f32 0.0, %v2458
      %v2460 = vpop.f32.mrf.mxu0
      %v2461 = vadd.f32 0.0, %v2460
      %2462 = vmatmul.bf16.gmra.mxu0 %v1534
      %v2463 = vpop.f32.mrf.mxu0
      %v2464 = vadd.f32 0.0, %v2463
      %v2465 = vpop.f32.mrf.mxu0
      %v2466 = vadd.f32 0.0, %v2465
      %2467 = vmatmul.bf16.gmra.mxu0 %v1537
      %v2468 = vpop.f32.mrf.mxu0
      %v2469 = vadd.f32 0.0, %v2468
      %v2470 = vpop.f32.mrf.mxu0
      %v2471 = vadd.f32 0.0, %v2470
      %2472 = vmatmul.bf16.gmra.mxu0 %v1540
      %v2473 = vpop.f32.mrf.mxu0
      %v2474 = vadd.f32 0.0, %v2473
      %v2475 = vpop.f32.mrf.mxu0
      %v2476 = vadd.f32 0.0, %v2475
      %2477 = vdwg.mxu0
      %v2479 = vsel %vm1092, %v1086, 0
      %v2482 = vsel %vm1092, %v1087, 0
      %v2485 = vsel %vm1092, %v1088, 0
      %2487 = vmatpush.bf16.msra.mxu0 0
      %2488 = vmatpush.bf16.msra.mxu0 0
      %2489 = vmatpush.bf16.msra.mxu0 0
      %2490 = vmatpush.bf16.msra.mxu0 %v2479
      %2491 = vmatpush.bf16.msra.mxu0 %v1455
      %2492 = vmatpush.bf16.msra.mxu0 %v1359
      %2493 = vmatpush.bf16.msra.mxu0 %v1263
      %2494 = vmatpush.bf16.msra.mxu0 %v1167
      %2495 = vmatmul.bf16.gmra.mxu0 %v1519
      %v2496 = vpop.f32.mrf.mxu0
      %v2497 = vadd.f32 0.0, %v2496
      %v2498 = vpop.f32.mrf.mxu0
      %v2499 = vadd.f32 0.0, %v2498
      %2500 = vmatmul.bf16.gmra.mxu0 %v1522
      %v2501 = vpop.f32.mrf.mxu0
      %v2502 = vadd.f32 0.0, %v2501
      %v2503 = vpop.f32.mrf.mxu0
      %v2504 = vadd.f32 0.0, %v2503
      %2505 = vmatmul.bf16.gmra.mxu0 %v1525
      %v2506 = vpop.f32.mrf.mxu0
      %v2507 = vadd.f32 0.0, %v2506
      %v2508 = vpop.f32.mrf.mxu0
      %v2509 = vadd.f32 0.0, %v2508
      %2510 = vmatmul.bf16.gmra.mxu0 %v1528
      %v2511 = vpop.f32.mrf.mxu0
      %v2512 = vadd.f32 0.0, %v2511
      %v2513 = vpop.f32.mrf.mxu0
      %v2514 = vadd.f32 0.0, %v2513
      %2515 = vmatmul.bf16.gmra.mxu0 %v1531
      %v2516 = vpop.f32.mrf.mxu0
      %v2517 = vadd.f32 0.0, %v2516
      %v2518 = vpop.f32.mrf.mxu0
      %v2519 = vadd.f32 0.0, %v2518
      %2520 = vmatmul.bf16.gmra.mxu0 %v1534
      %v2521 = vpop.f32.mrf.mxu0
      %v2522 = vadd.f32 0.0, %v2521
      %v2523 = vpop.f32.mrf.mxu0
      %v2524 = vadd.f32 0.0, %v2523
      %2525 = vmatmul.bf16.gmra.mxu0 %v1537
      %v2526 = vpop.f32.mrf.mxu0
      %v2527 = vadd.f32 0.0, %v2526
      %v2528 = vpop.f32.mrf.mxu0
      %v2529 = vadd.f32 0.0, %v2528
      %2530 = vmatmul.bf16.gmra.mxu0 %v1540
      %v2531 = vpop.f32.mrf.mxu0
      %v2532 = vadd.f32 0.0, %v2531
      %v2533 = vpop.f32.mrf.mxu0
      %v2534 = vadd.f32 0.0, %v2533
      %2535 = vdwg.mxu0
      %2536 = vmatpush.bf16.msra.mxu0 0
      %2537 = vmatpush.bf16.msra.mxu0 0
      %2538 = vmatpush.bf16.msra.mxu0 0
      %2539 = vmatpush.bf16.msra.mxu0 %v2482
      %2540 = vmatpush.bf16.msra.mxu0 %v1459
      %2541 = vmatpush.bf16.msra.mxu0 %v1363
      %2542 = vmatpush.bf16.msra.mxu0 %v1267
      %2543 = vmatpush.bf16.msra.mxu0 %v1171
      %2544 = vmatmul.bf16.gmra.mxu0 %v1519
      %v2545 = vpop.f32.mrf.mxu0
      %v2546 = vadd.f32 0.0, %v2545
      %v2547 = vpop.f32.mrf.mxu0
      %v2548 = vadd.f32 0.0, %v2547
      %2549 = vmatmul.bf16.gmra.mxu0 %v1522
      %v2550 = vpop.f32.mrf.mxu0
      %v2551 = vadd.f32 0.0, %v2550
      %v2552 = vpop.f32.mrf.mxu0
      %v2553 = vadd.f32 0.0, %v2552
      %2554 = vmatmul.bf16.gmra.mxu0 %v1525
      %v2555 = vpop.f32.mrf.mxu0
      %v2556 = vadd.f32 0.0, %v2555
      %v2557 = vpop.f32.mrf.mxu0
      %v2558 = vadd.f32 0.0, %v2557
      %2559 = vmatmul.bf16.gmra.mxu0 %v1528
      %v2560 = vpop.f32.mrf.mxu0
      %v2561 = vadd.f32 0.0, %v2560
      %v2562 = vpop.f32.mrf.mxu0
      %v2563 = vadd.f32 0.0, %v2562
      %2564 = vmatmul.bf16.gmra.mxu0 %v1531
      %v2565 = vpop.f32.mrf.mxu0
      %v2566 = vadd.f32 0.0, %v2565
      %v2567 = vpop.f32.mrf.mxu0
      %v2568 = vadd.f32 0.0, %v2567
      %2569 = vmatmul.bf16.gmra.mxu0 %v1534
      %v2570 = vpop.f32.mrf.mxu0
      %v2571 = vadd.f32 0.0, %v2570
      %v2572 = vpop.f32.mrf.mxu0
      %v2573 = vadd.f32 0.0, %v2572
      %2574 = vmatmul.bf16.gmra.mxu0 %v1537
      %v2575 = vpop.f32.mrf.mxu0
      %v2576 = vadd.f32 0.0, %v2575
      %v2577 = vpop.f32.mrf.mxu0
      %v2578 = vadd.f32 0.0, %v2577
      %2579 = vmatmul.bf16.gmra.mxu0 %v1540
      %v2580 = vpop.f32.mrf.mxu0
      %v2581 = vadd.f32 0.0, %v2580
      %v2582 = vpop.f32.mrf.mxu0
      %v2583 = vadd.f32 0.0, %v2582
      %2584 = vdwg.mxu0
      %2585 = vmatpush.bf16.msra.mxu0 0
      %2586 = vmatpush.bf16.msra.mxu0 0
      %2587 = vmatpush.bf16.msra.mxu0 0
      %2588 = vmatpush.bf16.msra.mxu0 %v2485
      %2589 = vmatpush.bf16.msra.mxu0 %v1463
      %2590 = vmatpush.bf16.msra.mxu0 %v1367
      %2591 = vmatpush.bf16.msra.mxu0 %v1271
      %2592 = vmatpush.bf16.msra.mxu0 %v1175
      %2593 = vmatmul.bf16.gmra.mxu0 %v1519
      %v2594 = vpop.f32.mrf.mxu0
      %v2595 = vadd.f32 0.0, %v2594
      %v2596 = vpop.f32.mrf.mxu0
      %v2597 = vadd.f32 0.0, %v2596
      %2598 = vmatmul.bf16.gmra.mxu0 %v1522
      %v2599 = vpop.f32.mrf.mxu0
      %v2600 = vadd.f32 0.0, %v2599
      %v2601 = vpop.f32.mrf.mxu0
      %v2602 = vadd.f32 0.0, %v2601
      %2603 = vmatmul.bf16.gmra.mxu0 %v1525
      %v2604 = vpop.f32.mrf.mxu0
      %v2605 = vadd.f32 0.0, %v2604
      %v2606 = vpop.f32.mrf.mxu0
      %v2607 = vadd.f32 0.0, %v2606
      %2608 = vmatmul.bf16.gmra.mxu0 %v1528
      %v2609 = vpop.f32.mrf.mxu0
      %v2610 = vadd.f32 0.0, %v2609
      %v2611 = vpop.f32.mrf.mxu0
      %v2612 = vadd.f32 0.0, %v2611
      %2613 = vmatmul.bf16.gmra.mxu0 %v1531
      %v2614 = vpop.f32.mrf.mxu0
      %v2615 = vadd.f32 0.0, %v2614
      %v2616 = vpop.f32.mrf.mxu0
      %v2617 = vadd.f32 0.0, %v2616
      %2618 = vmatmul.bf16.gmra.mxu0 %v1534
      %v2619 = vpop.f32.mrf.mxu0
      %v2620 = vadd.f32 0.0, %v2619
      %v2621 = vpop.f32.mrf.mxu0
      %v2622 = vadd.f32 0.0, %v2621
      %2623 = vmatmul.bf16.gmra.mxu0 %v1537
      %v2624 = vpop.f32.mrf.mxu0
      %v2625 = vadd.f32 0.0, %v2624
      %v2626 = vpop.f32.mrf.mxu0
      %v2627 = vadd.f32 0.0, %v2626
      %2628 = vmatmul.bf16.gmra.mxu0 %v1540
      %v2629 = vpop.f32.mrf.mxu0
      %v2630 = vadd.f32 0.0, %v2629
      %v2631 = vpop.f32.mrf.mxu0
      %v2632 = vadd.f32 0.0, %v2631
      %2633 = vdwg.mxu0
      %v2635 = vsel %vm1092, %v1089, 0
      %v2638 = vsel %vm1092, %v1090, 0
      %v2641 = vsel %vm1092, %v1091, 0
      %2643 = vmatpush.bf16.msra.mxu0 0
      %2644 = vmatpush.bf16.msra.mxu0 0
      %2645 = vmatpush.bf16.msra.mxu0 0
      %2646 = vmatpush.bf16.msra.mxu0 %v2635
      %2647 = vmatpush.bf16.msra.mxu0 %v1467
      %2648 = vmatpush.bf16.msra.mxu0 %v1371
      %2649 = vmatpush.bf16.msra.mxu0 %v1275
      %2650 = vmatpush.bf16.msra.mxu0 %v1179
      %2651 = vmatmul.bf16.gmra.mxu0 %v1519
      %v2652 = vpop.f32.mrf.mxu0
      %v2653 = vadd.f32 0.0, %v2652
      %v2654 = vpop.f32.mrf.mxu0
      %v2655 = vadd.f32 0.0, %v2654
      %2656 = vmatmul.bf16.gmra.mxu0 %v1522
      %v2657 = vpop.f32.mrf.mxu0
      %v2658 = vadd.f32 0.0, %v2657
      %v2659 = vpop.f32.mrf.mxu0
      %v2660 = vadd.f32 0.0, %v2659
      %2661 = vmatmul.bf16.gmra.mxu0 %v1525
      %v2662 = vpop.f32.mrf.mxu0
      %v2663 = vadd.f32 0.0, %v2662
      %v2664 = vpop.f32.mrf.mxu0
      %v2665 = vadd.f32 0.0, %v2664
      %2666 = vmatmul.bf16.gmra.mxu0 %v1528
      %v2667 = vpop.f32.mrf.mxu0
      %v2668 = vadd.f32 0.0, %v2667
      %v2669 = vpop.f32.mrf.mxu0
      %v2670 = vadd.f32 0.0, %v2669
      %2671 = vmatmul.bf16.gmra.mxu0 %v1531
      %v2672 = vpop.f32.mrf.mxu0
      %v2673 = vadd.f32 0.0, %v2672
      %v2674 = vpop.f32.mrf.mxu0
      %v2675 = vadd.f32 0.0, %v2674
      %2676 = vmatmul.bf16.gmra.mxu0 %v1534
      %v2677 = vpop.f32.mrf.mxu0
      %v2678 = vadd.f32 0.0, %v2677
      %v2679 = vpop.f32.mrf.mxu0
      %v2680 = vadd.f32 0.0, %v2679
      %2681 = vmatmul.bf16.gmra.mxu0 %v1537
      %v2682 = vpop.f32.mrf.mxu0
      %v2683 = vadd.f32 0.0, %v2682
      %v2684 = vpop.f32.mrf.mxu0
      %v2685 = vadd.f32 0.0, %v2684
      %2686 = vmatmul.bf16.gmra.mxu0 %v1540
      %v2687 = vpop.f32.mrf.mxu0
      %v2688 = vadd.f32 0.0, %v2687
      %v2689 = vpop.f32.mrf.mxu0
      %v2690 = vadd.f32 0.0, %v2689
      %2691 = vdwg.mxu0
      %2692 = vmatpush.bf16.msra.mxu0 0
      %2693 = vmatpush.bf16.msra.mxu0 0
      %2694 = vmatpush.bf16.msra.mxu0 0
      %2695 = vmatpush.bf16.msra.mxu0 %v2638
      %2696 = vmatpush.bf16.msra.mxu0 %v1471
      %2697 = vmatpush.bf16.msra.mxu0 %v1375
      %2698 = vmatpush.bf16.msra.mxu0 %v1279
      %2699 = vmatpush.bf16.msra.mxu0 %v1183
      %2700 = vmatmul.bf16.gmra.mxu0 %v1519
      %v2701 = vpop.f32.mrf.mxu0
      %v2702 = vadd.f32 0.0, %v2701
      %v2703 = vpop.f32.mrf.mxu0
      %v2704 = vadd.f32 0.0, %v2703
      %2705 = vmatmul.bf16.gmra.mxu0 %v1522
      %v2706 = vpop.f32.mrf.mxu0
      %v2707 = vadd.f32 0.0, %v2706
      %v2708 = vpop.f32.mrf.mxu0
      %v2709 = vadd.f32 0.0, %v2708
      %2710 = vmatmul.bf16.gmra.mxu0 %v1525
      %v2711 = vpop.f32.mrf.mxu0
      %v2712 = vadd.f32 0.0, %v2711
      %v2713 = vpop.f32.mrf.mxu0
      %v2714 = vadd.f32 0.0, %v2713
      %2715 = vmatmul.bf16.gmra.mxu0 %v1528
      %v2716 = vpop.f32.mrf.mxu0
      %v2717 = vadd.f32 0.0, %v2716
      %v2718 = vpop.f32.mrf.mxu0
      %v2719 = vadd.f32 0.0, %v2718
      %2720 = vmatmul.bf16.gmra.mxu0 %v1531
      %v2721 = vpop.f32.mrf.mxu0
      %v2722 = vadd.f32 0.0, %v2721
      %v2723 = vpop.f32.mrf.mxu0
      %v2724 = vadd.f32 0.0, %v2723
      %2725 = vmatmul.bf16.gmra.mxu0 %v1534
      %v2726 = vpop.f32.mrf.mxu0
      %v2727 = vadd.f32 0.0, %v2726
      %v2728 = vpop.f32.mrf.mxu0
      %v2729 = vadd.f32 0.0, %v2728
      %2730 = vmatmul.bf16.gmra.mxu0 %v1537
      %v2731 = vpop.f32.mrf.mxu0
      %v2732 = vadd.f32 0.0, %v2731
      %v2733 = vpop.f32.mrf.mxu0
      %v2734 = vadd.f32 0.0, %v2733
      %2735 = vmatmul.bf16.gmra.mxu0 %v1540
      %v2736 = vpop.f32.mrf.mxu0
      %v2737 = vadd.f32 0.0, %v2736
      %v2738 = vpop.f32.mrf.mxu0
      %v2739 = vadd.f32 0.0, %v2738
      %2740 = vdwg.mxu0
      %2741 = vmatpush.bf16.msra.mxu0 0
      %2742 = vmatpush.bf16.msra.mxu0 0
      %2743 = vmatpush.bf16.msra.mxu0 0
      %2744 = vmatpush.bf16.msra.mxu0 %v2641
      %2745 = vmatpush.bf16.msra.mxu0 %v1475
      %2746 = vmatpush.bf16.msra.mxu0 %v1379
      %2747 = vmatpush.bf16.msra.mxu0 %v1283
      %2748 = vmatpush.bf16.msra.mxu0 %v1187
      %2749 = vmatmul.bf16.gmra.mxu0 %v1519
      %v2750 = vpop.f32.mrf.mxu0
      %v2751 = vadd.f32 0.0, %v2750
      %v2752 = vpop.f32.mrf.mxu0
      %v2753 = vadd.f32 0.0, %v2752
      %2754 = vmatmul.bf16.gmra.mxu0 %v1522
      %v2755 = vpop.f32.mrf.mxu0
      %v2756 = vadd.f32 0.0, %v2755
      %v2757 = vpop.f32.mrf.mxu0
      %v2758 = vadd.f32 0.0, %v2757
      %2759 = vmatmul.bf16.gmra.mxu0 %v1525
      %v2760 = vpop.f32.mrf.mxu0
      %v2761 = vadd.f32 0.0, %v2760
      %v2762 = vpop.f32.mrf.mxu0
      %v2763 = vadd.f32 0.0, %v2762
      %2764 = vmatmul.bf16.gmra.mxu0 %v1528
      %v2765 = vpop.f32.mrf.mxu0
      %v2766 = vadd.f32 0.0, %v2765
      %v2767 = vpop.f32.mrf.mxu0
      %v2768 = vadd.f32 0.0, %v2767
      %2769 = vmatmul.bf16.gmra.mxu0 %v1531
      %v2770 = vpop.f32.mrf.mxu0
      %v2771 = vadd.f32 0.0, %v2770
      %v2772 = vpop.f32.mrf.mxu0
      %v2773 = vadd.f32 0.0, %v2772
      %2774 = vmatmul.bf16.gmra.mxu0 %v1534
      %v2775 = vpop.f32.mrf.mxu0
      %v2776 = vadd.f32 0.0, %v2775
      %v2777 = vpop.f32.mrf.mxu0
      %v2778 = vadd.f32 0.0, %v2777
      %2779 = vmatmul.bf16.gmra.mxu0 %v1537
      %v2780 = vpop.f32.mrf.mxu0
      %v2781 = vadd.f32 0.0, %v2780
      %v2782 = vpop.f32.mrf.mxu0
      %v2783 = vadd.f32 0.0, %v2782
      %2784 = vmatmul.bf16.gmra.mxu0 %v1540
      %v2785 = vpop.f32.mrf.mxu0
      %v2786 = vadd.f32 0.0, %v2785
      %v2787 = vpop.f32.mrf.mxu0
      %v2788 = vadd.f32 0.0, %v2787
      %2789 = vdwg.mxu0
      %v2790 = vmax.f32 %v1561, 0.0
      %v2791 = vmax.f32 %v1610, 0.0
      %v2792 = vmax.f32 %v1659, 0.0
      %v2793 = vmax.f32 %v1563, 0.0
      %v2794 = vmax.f32 %v1612, 0.0
      %v2795 = vmax.f32 %v1661, 0.0
      %v2796 = vmax.f32 %v1566, 0.0
      %v2797 = vmax.f32 %v1615, 0.0
      %v2798 = vmax.f32 %v1664, 0.0
      %v2799 = vmax.f32 %v1568, 0.0
      %v2800 = vmax.f32 %v1617, 0.0
      %v2801 = vmax.f32 %v1666, 0.0
      %v2802 = vmax.f32 %v1571, 0.0
      %v2803 = vmax.f32 %v1620, 0.0
      %v2804 = vmax.f32 %v1669, 0.0
      %v2805 = vmax.f32 %v1573, 0.0
      %v2806 = vmax.f32 %v1622, 0.0
      %v2807 = vmax.f32 %v1671, 0.0
      %v2808 = vmax.f32 %v1576, 0.0
      %v2809 = vmax.f32 %v1625, 0.0
      %v2810 = vmax.f32 %v1674, 0.0
      %v2811 = vmax.f32 %v1578, 0.0
      %v2812 = vmax.f32 %v1627, 0.0
      %v2813 = vmax.f32 %v1676, 0.0
      %v2814 = vmax.f32 %v1581, 0.0
      %v2815 = vmax.f32 %v1630, 0.0
      %v2816 = vmax.f32 %v1679, 0.0
      %v2817 = vmax.f32 %v1583, 0.0
      %v2818 = vmax.f32 %v1632, 0.0
      %v2819 = vmax.f32 %v1681, 0.0
      %v2820 = vmax.f32 %v1586, 0.0
      %v2821 = vmax.f32 %v1635, 0.0
      %v2822 = vmax.f32 %v1684, 0.0
      %v2823 = vmax.f32 %v1588, 0.0
      %v2824 = vmax.f32 %v1637, 0.0
      %v2825 = vmax.f32 %v1686, 0.0
      %v2826 = vmax.f32 %v1591, 0.0
      %v2827 = vmax.f32 %v1640, 0.0
      %v2828 = vmax.f32 %v1689, 0.0
      %v2829 = vmax.f32 %v1593, 0.0
      %v2830 = vmax.f32 %v1642, 0.0
      %v2831 = vmax.f32 %v1691, 0.0
      %v2832 = vmax.f32 %v1596, 0.0
      %v2833 = vmax.f32 %v1645, 0.0
      %v2834 = vmax.f32 %v1694, 0.0
      %v2835 = vmax.f32 %v1598, 0.0
      %v2836 = vmax.f32 %v1647, 0.0
      %v2837 = vmax.f32 %v1696, 0.0
      %v2838 = vmax.f32 %v1717, 0.0
      %v2839 = vmax.f32 %v1766, 0.0
      %v2840 = vmax.f32 %v1815, 0.0
      %v2841 = vmax.f32 %v1719, 0.0
      %v2842 = vmax.f32 %v1768, 0.0
      %v2843 = vmax.f32 %v1817, 0.0
      %v2844 = vmax.f32 %v1722, 0.0
      %v2845 = vmax.f32 %v1771, 0.0
      %v2846 = vmax.f32 %v1820, 0.0
      %v2847 = vmax.f32 %v1724, 0.0
      %v2848 = vmax.f32 %v1773, 0.0
      %v2849 = vmax.f32 %v1822, 0.0
      %v2850 = vmax.f32 %v1727, 0.0
      %v2851 = vmax.f32 %v1776, 0.0
      %v2852 = vmax.f32 %v1825, 0.0
      %v2853 = vmax.f32 %v1729, 0.0
      %v2854 = vmax.f32 %v1778, 0.0
      %v2855 = vmax.f32 %v1827, 0.0
      %v2856 = vmax.f32 %v1732, 0.0
      %v2857 = vmax.f32 %v1781, 0.0
      %v2858 = vmax.f32 %v1830, 0.0
      %v2859 = vmax.f32 %v1734, 0.0
      %v2860 = vmax.f32 %v1783, 0.0
      %v2861 = vmax.f32 %v1832, 0.0
      %v2862 = vmax.f32 %v1737, 0.0
      %v2863 = vmax.f32 %v1786, 0.0
      %v2864 = vmax.f32 %v1835, 0.0
      %v2865 = vmax.f32 %v1739, 0.0
      %v2866 = vmax.f32 %v1788, 0.0
      %v2867 = vmax.f32 %v1837, 0.0
      %v2868 = vmax.f32 %v1742, 0.0
      %v2869 = vmax.f32 %v1791, 0.0
      %v2870 = vmax.f32 %v1840, 0.0
      %v2871 = vmax.f32 %v1744, 0.0
      %v2872 = vmax.f32 %v1793, 0.0
      %v2873 = vmax.f32 %v1842, 0.0
      %v2874 = vmax.f32 %v1747, 0.0
      %v2875 = vmax.f32 %v1796, 0.0
      %v2876 = vmax.f32 %v1845, 0.0
      %v2877 = vmax.f32 %v1749, 0.0
      %v2878 = vmax.f32 %v1798, 0.0
      %v2879 = vmax.f32 %v1847, 0.0
      %v2880 = vmax.f32 %v1752, 0.0
      %v2881 = vmax.f32 %v1801, 0.0
      %v2882 = vmax.f32 %v1850, 0.0
      %v2883 = vmax.f32 %v1754, 0.0
      %v2884 = vmax.f32 %v1803, 0.0
      %v2885 = vmax.f32 %v1852, 0.0
      %v2886 = vmax.f32 %v1873, 0.0
      %v2887 = vmax.f32 %v1922, 0.0
      %v2888 = vmax.f32 %v1971, 0.0
      %v2889 = vmax.f32 %v1875, 0.0
      %v2890 = vmax.f32 %v1924, 0.0
      %v2891 = vmax.f32 %v1973, 0.0
      %v2892 = vmax.f32 %v1878, 0.0
      %v2893 = vmax.f32 %v1927, 0.0
      %v2894 = vmax.f32 %v1976, 0.0
      %v2895 = vmax.f32 %v1880, 0.0
      %v2896 = vmax.f32 %v1929, 0.0
      %v2897 = vmax.f32 %v1978, 0.0
      %v2898 = vmax.f32 %v1883, 0.0
      %v2899 = vmax.f32 %v1932, 0.0
      %v2900 = vmax.f32 %v1981, 0.0
      %v2901 = vmax.f32 %v1885, 0.0
      %v2902 = vmax.f32 %v1934, 0.0
      %v2903 = vmax.f32 %v1983, 0.0
      %v2904 = vmax.f32 %v1888, 0.0
      %v2905 = vmax.f32 %v1937, 0.0
      %v2906 = vmax.f32 %v1986, 0.0
      %v2907 = vmax.f32 %v1890, 0.0
      %v2908 = vmax.f32 %v1939, 0.0
      %v2909 = vmax.f32 %v1988, 0.0
      %v2910 = vmax.f32 %v1893, 0.0
      %v2911 = vmax.f32 %v1942, 0.0
      %v2912 = vmax.f32 %v1991, 0.0
      %v2913 = vmax.f32 %v1895, 0.0
      %v2914 = vmax.f32 %v1944, 0.0
      %v2915 = vmax.f32 %v1993, 0.0
      %v2916 = vmax.f32 %v1898, 0.0
      %v2917 = vmax.f32 %v1947, 0.0
      %v2918 = vmax.f32 %v1996, 0.0
      %v2919 = vmax.f32 %v1900, 0.0
      %v2920 = vmax.f32 %v1949, 0.0
      %v2921 = vmax.f32 %v1998, 0.0
      %v2922 = vmax.f32 %v1903, 0.0
      %v2923 = vmax.f32 %v1952, 0.0
      %v2924 = vmax.f32 %v2001, 0.0
      %v2925 = vmax.f32 %v1905, 0.0
      %v2926 = vmax.f32 %v1954, 0.0
      %v2927 = vmax.f32 %v2003, 0.0
      %v2928 = vmax.f32 %v1908, 0.0
      %v2929 = vmax.f32 %v1957, 0.0
      %v2930 = vmax.f32 %v2006, 0.0
      %v2931 = vmax.f32 %v1910, 0.0
      %v2932 = vmax.f32 %v1959, 0.0
      %v2933 = vmax.f32 %v2008, 0.0
      %v2934 = vmax.f32 %v2029, 0.0
      %v2935 = vmax.f32 %v2078, 0.0
      %v2936 = vmax.f32 %v2127, 0.0
      %v2937 = vmax.f32 %v2031, 0.0
      %v2938 = vmax.f32 %v2080, 0.0
      %v2939 = vmax.f32 %v2129, 0.0
      %v2940 = vmax.f32 %v2034, 0.0
      %v2941 = vmax.f32 %v2083, 0.0
      %v2942 = vmax.f32 %v2132, 0.0
      %v2943 = vmax.f32 %v2036, 0.0
      %v2944 = vmax.f32 %v2085, 0.0
      %v2945 = vmax.f32 %v2134, 0.0
      %v2946 = vmax.f32 %v2039, 0.0
      %v2947 = vmax.f32 %v2088, 0.0
      %v2948 = vmax.f32 %v2137, 0.0
      %v2949 = vmax.f32 %v2041, 0.0
      %v2950 = vmax.f32 %v2090, 0.0
      %v2951 = vmax.f32 %v2139, 0.0
      %v2952 = vmax.f32 %v2044, 0.0
      %v2953 = vmax.f32 %v2093, 0.0
      %v2954 = vmax.f32 %v2142, 0.0
      %v2955 = vmax.f32 %v2046, 0.0
      %v2956 = vmax.f32 %v2095, 0.0
      %v2957 = vmax.f32 %v2144, 0.0
      %v2958 = vmax.f32 %v2049, 0.0
      %v2959 = vmax.f32 %v2098, 0.0
      %v2960 = vmax.f32 %v2147, 0.0
      %v2961 = vmax.f32 %v2051, 0.0
      %v2962 = vmax.f32 %v2100, 0.0
      %v2963 = vmax.f32 %v2149, 0.0
      %v2964 = vmax.f32 %v2054, 0.0
      %v2965 = vmax.f32 %v2103, 0.0
      %v2966 = vmax.f32 %v2152, 0.0
      %v2967 = vmax.f32 %v2056, 0.0
      %v2968 = vmax.f32 %v2105, 0.0
      %v2969 = vmax.f32 %v2154, 0.0
      %v2970 = vmax.f32 %v2059, 0.0
      %v2971 = vmax.f32 %v2108, 0.0
      %v2972 = vmax.f32 %v2157, 0.0
      %v2973 = vmax.f32 %v2061, 0.0
      %v2974 = vmax.f32 %v2110, 0.0
      %v2975 = vmax.f32 %v2159, 0.0
      %v2976 = vmax.f32 %v2064, 0.0
      %v2977 = vmax.f32 %v2113, 0.0
      %v2978 = vmax.f32 %v2162, 0.0
      %v2979 = vmax.f32 %v2066, 0.0
      %v2980 = vmax.f32 %v2115, 0.0
      %v2981 = vmax.f32 %v2164, 0.0
      %v2982 = vmax.f32 %v2185, 0.0
      %v2983 = vmax.f32 %v2234, 0.0
      %v2984 = vmax.f32 %v2283, 0.0
      %v2985 = vmax.f32 %v2187, 0.0
      %v2986 = vmax.f32 %v2236, 0.0
      %v2987 = vmax.f32 %v2285, 0.0
      %v2988 = vmax.f32 %v2190, 0.0
      %v2989 = vmax.f32 %v2239, 0.0
      %v2990 = vmax.f32 %v2288, 0.0
      %v2991 = vmax.f32 %v2192, 0.0
      %v2992 = vmax.f32 %v2241, 0.0
      %v2993 = vmax.f32 %v2290, 0.0
      %v2994 = vmax.f32 %v2195, 0.0
      %v2995 = vmax.f32 %v2244, 0.0
      %v2996 = vmax.f32 %v2293, 0.0
      %v2997 = vmax.f32 %v2197, 0.0
      %v2998 = vmax.f32 %v2246, 0.0
      %v2999 = vmax.f32 %v2295, 0.0
      %v3000 = vmax.f32 %v2200, 0.0
      %v3001 = vmax.f32 %v2249, 0.0
      %v3002 = vmax.f32 %v2298, 0.0
      %v3003 = vmax.f32 %v2202, 0.0
      %v3004 = vmax.f32 %v2251, 0.0
      %v3005 = vmax.f32 %v2300, 0.0
      %v3006 = vmax.f32 %v2205, 0.0
      %v3007 = vmax.f32 %v2254, 0.0
      %v3008 = vmax.f32 %v2303, 0.0
      %v3009 = vmax.f32 %v2207, 0.0
      %v3010 = vmax.f32 %v2256, 0.0
      %v3011 = vmax.f32 %v2305, 0.0
      %v3012 = vmax.f32 %v2210, 0.0
      %v3013 = vmax.f32 %v2259, 0.0
      %v3014 = vmax.f32 %v2308, 0.0
      %v3015 = vmax.f32 %v2212, 0.0
      %v3016 = vmax.f32 %v2261, 0.0
      %v3017 = vmax.f32 %v2310, 0.0
      %v3018 = vmax.f32 %v2215, 0.0
      %v3019 = vmax.f32 %v2264, 0.0
      %v3020 = vmax.f32 %v2313, 0.0
      %v3021 = vmax.f32 %v2217, 0.0
      %v3022 = vmax.f32 %v2266, 0.0
      %v3023 = vmax.f32 %v2315, 0.0
      %v3024 = vmax.f32 %v2220, 0.0
      %v3025 = vmax.f32 %v2269, 0.0
      %v3026 = vmax.f32 %v2318, 0.0
      %v3027 = vmax.f32 %v2222, 0.0
      %v3028 = vmax.f32 %v2271, 0.0
      %v3029 = vmax.f32 %v2320, 0.0
      %v3030 = vmax.f32 %v2341, 0.0
      %v3031 = vmax.f32 %v2390, 0.0
      %v3032 = vmax.f32 %v2439, 0.0
      %v3033 = vmax.f32 %v2343, 0.0
      %v3034 = vmax.f32 %v2392, 0.0
      %v3035 = vmax.f32 %v2441, 0.0
      %v3036 = vmax.f32 %v2346, 0.0
      %v3037 = vmax.f32 %v2395, 0.0
      %v3038 = vmax.f32 %v2444, 0.0
      %v3039 = vmax.f32 %v2348, 0.0
      %v3040 = vmax.f32 %v2397, 0.0
      %v3041 = vmax.f32 %v2446, 0.0
      %v3042 = vmax.f32 %v2351, 0.0
      %v3043 = vmax.f32 %v2400, 0.0
      %v3044 = vmax.f32 %v2449, 0.0
      %v3045 = vmax.f32 %v2353, 0.0
      %v3046 = vmax.f32 %v2402, 0.0
      %v3047 = vmax.f32 %v2451, 0.0
      %v3048 = vmax.f32 %v2356, 0.0
      %v3049 = vmax.f32 %v2405, 0.0
      %v3050 = vmax.f32 %v2454, 0.0
      %v3051 = vmax.f32 %v2358, 0.0
      %v3052 = vmax.f32 %v2407, 0.0
      %v3053 = vmax.f32 %v2456, 0.0
      %v3054 = vmax.f32 %v2361, 0.0
      %v3055 = vmax.f32 %v2410, 0.0
      %v3056 = vmax.f32 %v2459, 0.0
      %v3057 = vmax.f32 %v2363, 0.0
      %v3058 = vmax.f32 %v2412, 0.0
      %v3059 = vmax.f32 %v2461, 0.0
      %v3060 = vmax.f32 %v2366, 0.0
      %v3061 = vmax.f32 %v2415, 0.0
      %v3062 = vmax.f32 %v2464, 0.0
      %v3063 = vmax.f32 %v2368, 0.0
      %v3064 = vmax.f32 %v2417, 0.0
      %v3065 = vmax.f32 %v2466, 0.0
      %v3066 = vmax.f32 %v2371, 0.0
      %v3067 = vmax.f32 %v2420, 0.0
      %v3068 = vmax.f32 %v2469, 0.0
      %v3069 = vmax.f32 %v2373, 0.0
      %v3070 = vmax.f32 %v2422, 0.0
      %v3071 = vmax.f32 %v2471, 0.0
      %v3072 = vmax.f32 %v2376, 0.0
      %v3073 = vmax.f32 %v2425, 0.0
      %v3074 = vmax.f32 %v2474, 0.0
      %v3075 = vmax.f32 %v2378, 0.0
      %v3076 = vmax.f32 %v2427, 0.0
      %v3077 = vmax.f32 %v2476, 0.0
      %v3078 = vmax.f32 %v2497, 0.0
      %v3079 = vmax.f32 %v2546, 0.0
      %v3080 = vmax.f32 %v2595, 0.0
      %v3081 = vmax.f32 %v2499, 0.0
      %v3082 = vmax.f32 %v2548, 0.0
      %v3083 = vmax.f32 %v2597, 0.0
      %v3084 = vmax.f32 %v2502, 0.0
      %v3085 = vmax.f32 %v2551, 0.0
      %v3086 = vmax.f32 %v2600, 0.0
      %v3087 = vmax.f32 %v2504, 0.0
      %v3088 = vmax.f32 %v2553, 0.0
      %v3089 = vmax.f32 %v2602, 0.0
      %v3090 = vmax.f32 %v2507, 0.0
      %v3091 = vmax.f32 %v2556, 0.0
      %v3092 = vmax.f32 %v2605, 0.0
      %v3093 = vmax.f32 %v2509, 0.0
      %v3094 = vmax.f32 %v2558, 0.0
      %v3095 = vmax.f32 %v2607, 0.0
      %v3096 = vmax.f32 %v2512, 0.0
      %v3097 = vmax.f32 %v2561, 0.0
      %v3098 = vmax.f32 %v2610, 0.0
      %v3099 = vmax.f32 %v2514, 0.0
      %v3100 = vmax.f32 %v2563, 0.0
      %v3101 = vmax.f32 %v2612, 0.0
      %v3102 = vmax.f32 %v2517, 0.0
      %v3103 = vmax.f32 %v2566, 0.0
      %v3104 = vmax.f32 %v2615, 0.0
      %v3105 = vmax.f32 %v2519, 0.0
      %v3106 = vmax.f32 %v2568, 0.0
      %v3107 = vmax.f32 %v2617, 0.0
      %v3108 = vmax.f32 %v2522, 0.0
      %v3109 = vmax.f32 %v2571, 0.0
      %v3110 = vmax.f32 %v2620, 0.0
      %v3111 = vmax.f32 %v2524, 0.0
      %v3112 = vmax.f32 %v2573, 0.0
      %v3113 = vmax.f32 %v2622, 0.0
      %v3114 = vmax.f32 %v2527, 0.0
      %v3115 = vmax.f32 %v2576, 0.0
      %v3116 = vmax.f32 %v2625, 0.0
      %v3117 = vmax.f32 %v2529, 0.0
      %v3118 = vmax.f32 %v2578, 0.0
      %v3119 = vmax.f32 %v2627, 0.0
      %v3120 = vmax.f32 %v2532, 0.0
      %v3121 = vmax.f32 %v2581, 0.0
      %v3122 = vmax.f32 %v2630, 0.0
      %v3123 = vmax.f32 %v2534, 0.0
      %v3124 = vmax.f32 %v2583, 0.0
      %v3125 = vmax.f32 %v2632, 0.0
      %v3126 = vmax.f32 %v2653, 0.0
      %v3127 = vmax.f32 %v2702, 0.0
      %v3128 = vmax.f32 %v2751, 0.0
      %v3129 = vmax.f32 %v2655, 0.0
      %v3130 = vmax.f32 %v2704, 0.0
      %v3131 = vmax.f32 %v2753, 0.0
      %v3132 = vmax.f32 %v2658, 0.0
      %v3133 = vmax.f32 %v2707, 0.0
      %v3134 = vmax.f32 %v2756, 0.0
      %v3135 = vmax.f32 %v2660, 0.0
      %v3136 = vmax.f32 %v2709, 0.0
      %v3137 = vmax.f32 %v2758, 0.0
      %v3138 = vmax.f32 %v2663, 0.0
      %v3139 = vmax.f32 %v2712, 0.0
      %v3140 = vmax.f32 %v2761, 0.0
      %v3141 = vmax.f32 %v2665, 0.0
      %v3142 = vmax.f32 %v2714, 0.0
      %v3143 = vmax.f32 %v2763, 0.0
      %v3144 = vmax.f32 %v2668, 0.0
      %v3145 = vmax.f32 %v2717, 0.0
      %v3146 = vmax.f32 %v2766, 0.0
      %v3147 = vmax.f32 %v2670, 0.0
      %v3148 = vmax.f32 %v2719, 0.0
      %v3149 = vmax.f32 %v2768, 0.0
      %v3150 = vmax.f32 %v2673, 0.0
      %v3151 = vmax.f32 %v2722, 0.0
      %v3152 = vmax.f32 %v2771, 0.0
      %v3153 = vmax.f32 %v2675, 0.0
      %v3154 = vmax.f32 %v2724, 0.0
      %v3155 = vmax.f32 %v2773, 0.0
      %v3156 = vmax.f32 %v2678, 0.0
      %v3157 = vmax.f32 %v2727, 0.0
      %v3158 = vmax.f32 %v2776, 0.0
      %v3159 = vmax.f32 %v2680, 0.0
      %v3160 = vmax.f32 %v2729, 0.0
      %v3161 = vmax.f32 %v2778, 0.0
      %v3162 = vmax.f32 %v2683, 0.0
      %v3163 = vmax.f32 %v2732, 0.0
      %v3164 = vmax.f32 %v2781, 0.0
      %v3165 = vmax.f32 %v2685, 0.0
      %v3166 = vmax.f32 %v2734, 0.0
      %v3167 = vmax.f32 %v2783, 0.0
      %v3168 = vmax.f32 %v2688, 0.0
      %v3169 = vmax.f32 %v2737, 0.0
      %v3170 = vmax.f32 %v2786, 0.0
      %v3171 = vmax.f32 %v2690, 0.0
      %v3172 = vmax.f32 %v2739, 0.0
      %v3173 = vmax.f32 %v2788, 0.0
      %v3174 = vld [vmem:[%s1] sm:$0x7]
      %v3176 = vperm.slane %v3174, 0
      %v3177 = vperm.slane %v3174, 1
      %v3178 = vperm.slane %v3174, 2
      %v3182 = vmul.f32 %v2790, %v3176
      %v3183 = vmul.f32 %v2791, %v3177
      %v3184 = vmul.f32 %v2792, %v3178
      %v3185 = vmul.f32 %v2793, %v3176
      %v3186 = vmul.f32 %v2794, %v3177
      %v3187 = vmul.f32 %v2795, %v3178
      %v3188 = vmul.f32 %v2796, %v3176
      %v3189 = vmul.f32 %v2797, %v3177
      %v3190 = vmul.f32 %v2798, %v3178
      %v3191 = vmul.f32 %v2799, %v3176
      %v3192 = vmul.f32 %v2800, %v3177
      %v3193 = vmul.f32 %v2801, %v3178
      %v3194 = vmul.f32 %v2802, %v3176
      %v3195 = vmul.f32 %v2803, %v3177
      %v3196 = vmul.f32 %v2804, %v3178
      %v3197 = vmul.f32 %v2805, %v3176
      %v3198 = vmul.f32 %v2806, %v3177
      %v3199 = vmul.f32 %v2807, %v3178
      %v3200 = vmul.f32 %v2808, %v3176
      %v3201 = vmul.f32 %v2809, %v3177
      %v3202 = vmul.f32 %v2810, %v3178
      %v3203 = vmul.f32 %v2811, %v3176
      %v3204 = vmul.f32 %v2812, %v3177
      %v3205 = vmul.f32 %v2813, %v3178
      %v3206 = vmul.f32 %v2814, %v3176
      %v3207 = vmul.f32 %v2815, %v3177
      %v3208 = vmul.f32 %v2816, %v3178
      %v3209 = vmul.f32 %v2817, %v3176
      %v3210 = vmul.f32 %v2818, %v3177
      %v3211 = vmul.f32 %v2819, %v3178
      %v3212 = vmul.f32 %v2820, %v3176
      %v3213 = vmul.f32 %v2821, %v3177
      %v3214 = vmul.f32 %v2822, %v3178
      %v3215 = vmul.f32 %v2823, %v3176
      %v3216 = vmul.f32 %v2824, %v3177
      %v3217 = vmul.f32 %v2825, %v3178
      %v3218 = vmul.f32 %v2826, %v3176
      %v3219 = vmul.f32 %v2827, %v3177
      %v3220 = vmul.f32 %v2828, %v3178
      %v3221 = vmul.f32 %v2829, %v3176
      %v3222 = vmul.f32 %v2830, %v3177
      %v3223 = vmul.f32 %v2831, %v3178
      %v3224 = vmul.f32 %v2832, %v3176
      %v3225 = vmul.f32 %v2833, %v3177
      %v3226 = vmul.f32 %v2834, %v3178
      %v3227 = vmul.f32 %v2835, %v3176
      %v3228 = vmul.f32 %v2836, %v3177
      %v3229 = vmul.f32 %v2837, %v3178
      %v3230 = vmul.f32 %v2838, %v3176
      %v3231 = vmul.f32 %v2839, %v3177
      %v3232 = vmul.f32 %v2840, %v3178
      %v3233 = vmul.f32 %v2841, %v3176
      %v3234 = vmul.f32 %v2842, %v3177
      %v3235 = vmul.f32 %v2843, %v3178
      %v3236 = vmul.f32 %v2844, %v3176
      %v3237 = vmul.f32 %v2845, %v3177
      %v3238 = vmul.f32 %v2846, %v3178
      %v3239 = vmul.f32 %v2847, %v3176
      %v3240 = vmul.f32 %v2848, %v3177
      %v3241 = vmul.f32 %v2849, %v3178
      %v3242 = vmul.f32 %v2850, %v3176
      %v3243 = vmul.f32 %v2851, %v3177
      %v3244 = vmul.f32 %v2852, %v3178
      %v3245 = vmul.f32 %v2853, %v3176
      %v3246 = vmul.f32 %v2854, %v3177
      %v3247 = vmul.f32 %v2855, %v3178
      %v3248 = vmul.f32 %v2856, %v3176
      %v3249 = vmul.f32 %v2857, %v3177
      %v3250 = vmul.f32 %v2858, %v3178
      %v3251 = vmul.f32 %v2859, %v3176
      %v3252 = vmul.f32 %v2860, %v3177
      %v3253 = vmul.f32 %v2861, %v3178
      %v3254 = vmul.f32 %v2862, %v3176
      %v3255 = vmul.f32 %v2863, %v3177
      %v3256 = vmul.f32 %v2864, %v3178
      %v3257 = vmul.f32 %v2865, %v3176
      %v3258 = vmul.f32 %v2866, %v3177
      %v3259 = vmul.f32 %v2867, %v3178
      %v3260 = vmul.f32 %v2868, %v3176
      %v3261 = vmul.f32 %v2869, %v3177
      %v3262 = vmul.f32 %v2870, %v3178
      %v3263 = vmul.f32 %v2871, %v3176
      %v3264 = vmul.f32 %v2872, %v3177
      %v3265 = vmul.f32 %v2873, %v3178
      %v3266 = vmul.f32 %v2874, %v3176
      %v3267 = vmul.f32 %v2875, %v3177
      %v3268 = vmul.f32 %v2876, %v3178
      %v3269 = vmul.f32 %v2877, %v3176
      %v3270 = vmul.f32 %v2878, %v3177
      %v3271 = vmul.f32 %v2879, %v3178
      %v3272 = vmul.f32 %v2880, %v3176
      %v3273 = vmul.f32 %v2881, %v3177
      %v3274 = vmul.f32 %v2882, %v3178
      %v3275 = vmul.f32 %v2883, %v3176
      %v3276 = vmul.f32 %v2884, %v3177
      %v3277 = vmul.f32 %v2885, %v3178
      %v3278 = vmul.f32 %v2886, %v3176
      %v3279 = vmul.f32 %v2887, %v3177
      %v3280 = vmul.f32 %v2888, %v3178
      %v3281 = vmul.f32 %v2889, %v3176
      %v3282 = vmul.f32 %v2890, %v3177
      %v3283 = vmul.f32 %v2891, %v3178
      %v3284 = vmul.f32 %v2892, %v3176
      %v3285 = vmul.f32 %v2893, %v3177
      %v3286 = vmul.f32 %v2894, %v3178
      %v3287 = vmul.f32 %v2895, %v3176
      %v3288 = vmul.f32 %v2896, %v3177
      %v3289 = vmul.f32 %v2897, %v3178
      %v3290 = vmul.f32 %v2898, %v3176
      %v3291 = vmul.f32 %v2899, %v3177
      %v3292 = vmul.f32 %v2900, %v3178
      %v3293 = vmul.f32 %v2901, %v3176
      %v3294 = vmul.f32 %v2902, %v3177
      %v3295 = vmul.f32 %v2903, %v3178
      %v3296 = vmul.f32 %v2904, %v3176
      %v3297 = vmul.f32 %v2905, %v3177
      %v3298 = vmul.f32 %v2906, %v3178
      %v3299 = vmul.f32 %v2907, %v3176
      %v3300 = vmul.f32 %v2908, %v3177
      %v3301 = vmul.f32 %v2909, %v3178
      %v3302 = vmul.f32 %v2910, %v3176
      %v3303 = vmul.f32 %v2911, %v3177
      %v3304 = vmul.f32 %v2912, %v3178
      %v3305 = vmul.f32 %v2913, %v3176
      %v3306 = vmul.f32 %v2914, %v3177
      %v3307 = vmul.f32 %v2915, %v3178
      %v3308 = vmul.f32 %v2916, %v3176
      %v3309 = vmul.f32 %v2917, %v3177
      %v3310 = vmul.f32 %v2918, %v3178
      %v3311 = vmul.f32 %v2919, %v3176
      %v3312 = vmul.f32 %v2920, %v3177
      %v3313 = vmul.f32 %v2921, %v3178
      %v3314 = vmul.f32 %v2922, %v3176
      %v3315 = vmul.f32 %v2923, %v3177
      %v3316 = vmul.f32 %v2924, %v3178
      %v3317 = vmul.f32 %v2925, %v3176
      %v3318 = vmul.f32 %v2926, %v3177
      %v3319 = vmul.f32 %v2927, %v3178
      %v3320 = vmul.f32 %v2928, %v3176
      %v3321 = vmul.f32 %v2929, %v3177
      %v3322 = vmul.f32 %v2930, %v3178
      %v3323 = vmul.f32 %v2931, %v3176
      %v3324 = vmul.f32 %v2932, %v3177
      %v3325 = vmul.f32 %v2933, %v3178
      %v3326 = vmul.f32 %v2934, %v3176
      %v3327 = vmul.f32 %v2935, %v3177
      %v3328 = vmul.f32 %v2936, %v3178
      %v3329 = vmul.f32 %v2937, %v3176
      %v3330 = vmul.f32 %v2938, %v3177
      %v3331 = vmul.f32 %v2939, %v3178
      %v3332 = vmul.f32 %v2940, %v3176
      %v3333 = vmul.f32 %v2941, %v3177
      %v3334 = vmul.f32 %v2942, %v3178
      %v3335 = vmul.f32 %v2943, %v3176
      %v3336 = vmul.f32 %v2944, %v3177
      %v3337 = vmul.f32 %v2945, %v3178
      %v3338 = vmul.f32 %v2946, %v3176
      %v3339 = vmul.f32 %v2947, %v3177
      %v3340 = vmul.f32 %v2948, %v3178
      %v3341 = vmul.f32 %v2949, %v3176
      %v3342 = vmul.f32 %v2950, %v3177
      %v3343 = vmul.f32 %v2951, %v3178
      %v3344 = vmul.f32 %v2952, %v3176
      %v3345 = vmul.f32 %v2953, %v3177
      %v3346 = vmul.f32 %v2954, %v3178
      %v3347 = vmul.f32 %v2955, %v3176
      %v3348 = vmul.f32 %v2956, %v3177
      %v3349 = vmul.f32 %v2957, %v3178
      %v3350 = vmul.f32 %v2958, %v3176
      %v3351 = vmul.f32 %v2959, %v3177
      %v3352 = vmul.f32 %v2960, %v3178
      %v3353 = vmul.f32 %v2961, %v3176
      %v3354 = vmul.f32 %v2962, %v3177
      %v3355 = vmul.f32 %v2963, %v3178
      %v3356 = vmul.f32 %v2964, %v3176
      %v3357 = vmul.f32 %v2965, %v3177
      %v3358 = vmul.f32 %v2966, %v3178
      %v3359 = vmul.f32 %v2967, %v3176
      %v3360 = vmul.f32 %v2968, %v3177
      %v3361 = vmul.f32 %v2969, %v3178
      %v3362 = vmul.f32 %v2970, %v3176
      %v3363 = vmul.f32 %v2971, %v3177
      %v3364 = vmul.f32 %v2972, %v3178
      %v3365 = vmul.f32 %v2973, %v3176
      %v3366 = vmul.f32 %v2974, %v3177
      %v3367 = vmul.f32 %v2975, %v3178
      %v3368 = vmul.f32 %v2976, %v3176
      %v3369 = vmul.f32 %v2977, %v3177
      %v3370 = vmul.f32 %v2978, %v3178
      %v3371 = vmul.f32 %v2979, %v3176
      %v3372 = vmul.f32 %v2980, %v3177
      %v3373 = vmul.f32 %v2981, %v3178
      %v3374 = vmul.f32 %v2982, %v3176
      %v3375 = vmul.f32 %v2983, %v3177
      %v3376 = vmul.f32 %v2984, %v3178
      %v3377 = vmul.f32 %v2985, %v3176
      %v3378 = vmul.f32 %v2986, %v3177
      %v3379 = vmul.f32 %v2987, %v3178
      %v3380 = vmul.f32 %v2988, %v3176
      %v3381 = vmul.f32 %v2989, %v3177
      %v3382 = vmul.f32 %v2990, %v3178
      %v3383 = vmul.f32 %v2991, %v3176
      %v3384 = vmul.f32 %v2992, %v3177
      %v3385 = vmul.f32 %v2993, %v3178
      %v3386 = vmul.f32 %v2994, %v3176
      %v3387 = vmul.f32 %v2995, %v3177
      %v3388 = vmul.f32 %v2996, %v3178
      %v3389 = vmul.f32 %v2997, %v3176
      %v3390 = vmul.f32 %v2998, %v3177
      %v3391 = vmul.f32 %v2999, %v3178
      %v3392 = vmul.f32 %v3000, %v3176
      %v3393 = vmul.f32 %v3001, %v3177
      %v3394 = vmul.f32 %v3002, %v3178
      %v3395 = vmul.f32 %v3003, %v3176
      %v3396 = vmul.f32 %v3004, %v3177
      %v3397 = vmul.f32 %v3005, %v3178
      %v3398 = vmul.f32 %v3006, %v3176
      %v3399 = vmul.f32 %v3007, %v3177
      %v3400 = vmul.f32 %v3008, %v3178
      %v3401 = vmul.f32 %v3009, %v3176
      %v3402 = vmul.f32 %v3010, %v3177
      %v3403 = vmul.f32 %v3011, %v3178
      %v3404 = vmul.f32 %v3012, %v3176
      %v3405 = vmul.f32 %v3013, %v3177
      %v3406 = vmul.f32 %v3014, %v3178
      %v3407 = vmul.f32 %v3015, %v3176
      %v3408 = vmul.f32 %v3016, %v3177
      %v3409 = vmul.f32 %v3017, %v3178
      %v3410 = vmul.f32 %v3018, %v3176
      %v3411 = vmul.f32 %v3019, %v3177
      %v3412 = vmul.f32 %v3020, %v3178
      %v3413 = vmul.f32 %v3021, %v3176
      %v3414 = vmul.f32 %v3022, %v3177
      %v3415 = vmul.f32 %v3023, %v3178
      %v3416 = vmul.f32 %v3024, %v3176
      %v3417 = vmul.f32 %v3025, %v3177
      %v3418 = vmul.f32 %v3026, %v3178
      %v3419 = vmul.f32 %v3027, %v3176
      %v3420 = vmul.f32 %v3028, %v3177
      %v3421 = vmul.f32 %v3029, %v3178
      %v3422 = vmul.f32 %v3030, %v3176
      %v3423 = vmul.f32 %v3031, %v3177
      %v3424 = vmul.f32 %v3032, %v3178
      %v3425 = vmul.f32 %v3033, %v3176
      %v3426 = vmul.f32 %v3034, %v3177
      %v3427 = vmul.f32 %v3035, %v3178
      %v3428 = vmul.f32 %v3036, %v3176
      %v3429 = vmul.f32 %v3037, %v3177
      %v3430 = vmul.f32 %v3038, %v3178
      %v3431 = vmul.f32 %v3039, %v3176
      %v3432 = vmul.f32 %v3040, %v3177
      %v3433 = vmul.f32 %v3041, %v3178
      %v3434 = vmul.f32 %v3042, %v3176
      %v3435 = vmul.f32 %v3043, %v3177
      %v3436 = vmul.f32 %v3044, %v3178
      %v3437 = vmul.f32 %v3045, %v3176
      %v3438 = vmul.f32 %v3046, %v3177
      %v3439 = vmul.f32 %v3047, %v3178
      %v3440 = vmul.f32 %v3048, %v3176
      %v3441 = vmul.f32 %v3049, %v3177
      %v3442 = vmul.f32 %v3050, %v3178
      %v3443 = vmul.f32 %v3051, %v3176
      %v3444 = vmul.f32 %v3052, %v3177
      %v3445 = vmul.f32 %v3053, %v3178
      %v3446 = vmul.f32 %v3054, %v3176
      %v3447 = vmul.f32 %v3055, %v3177
      %v3448 = vmul.f32 %v3056, %v3178
      %v3449 = vmul.f32 %v3057, %v3176
      %v3450 = vmul.f32 %v3058, %v3177
      %v3451 = vmul.f32 %v3059, %v3178
      %v3452 = vmul.f32 %v3060, %v3176
      %v3453 = vmul.f32 %v3061, %v3177
      %v3454 = vmul.f32 %v3062, %v3178
      %v3455 = vmul.f32 %v3063, %v3176
      %v3456 = vmul.f32 %v3064, %v3177
      %v3457 = vmul.f32 %v3065, %v3178
      %v3458 = vmul.f32 %v3066, %v3176
      %v3459 = vmul.f32 %v3067, %v3177
      %v3460 = vmul.f32 %v3068, %v3178
      %v3461 = vmul.f32 %v3069, %v3176
      %v3462 = vmul.f32 %v3070, %v3177
      %v3463 = vmul.f32 %v3071, %v3178
      %v3464 = vmul.f32 %v3072, %v3176
      %v3465 = vmul.f32 %v3073, %v3177
      %v3466 = vmul.f32 %v3074, %v3178
      %v3467 = vmul.f32 %v3075, %v3176
      %v3468 = vmul.f32 %v3076, %v3177
      %v3469 = vmul.f32 %v3077, %v3178
      %v3470 = vmul.f32 %v3078, %v3176
      %v3471 = vmul.f32 %v3079, %v3177
      %v3472 = vmul.f32 %v3080, %v3178
      %v3473 = vmul.f32 %v3081, %v3176
      %v3474 = vmul.f32 %v3082, %v3177
      %v3475 = vmul.f32 %v3083, %v3178
      %v3476 = vmul.f32 %v3084, %v3176
      %v3477 = vmul.f32 %v3085, %v3177
      %v3478 = vmul.f32 %v3086, %v3178
      %v3479 = vmul.f32 %v3087, %v3176
      %v3480 = vmul.f32 %v3088, %v3177
      %v3481 = vmul.f32 %v3089, %v3178
      %v3482 = vmul.f32 %v3090, %v3176
      %v3483 = vmul.f32 %v3091, %v3177
      %v3484 = vmul.f32 %v3092, %v3178
      %v3485 = vmul.f32 %v3093, %v3176
      %v3486 = vmul.f32 %v3094, %v3177
      %v3487 = vmul.f32 %v3095, %v3178
      %v3488 = vmul.f32 %v3096, %v3176
      %v3489 = vmul.f32 %v3097, %v3177
      %v3490 = vmul.f32 %v3098, %v3178
      %v3491 = vmul.f32 %v3099, %v3176
      %v3492 = vmul.f32 %v3100, %v3177
      %v3493 = vmul.f32 %v3101, %v3178
      %v3494 = vmul.f32 %v3102, %v3176
      %v3495 = vmul.f32 %v3103, %v3177
      %v3496 = vmul.f32 %v3104, %v3178
      %v3497 = vmul.f32 %v3105, %v3176
      %v3498 = vmul.f32 %v3106, %v3177
      %v3499 = vmul.f32 %v3107, %v3178
      %v3500 = vmul.f32 %v3108, %v3176
      %v3501 = vmul.f32 %v3109, %v3177
      %v3502 = vmul.f32 %v3110, %v3178
      %v3503 = vmul.f32 %v3111, %v3176
      %v3504 = vmul.f32 %v3112, %v3177
      %v3505 = vmul.f32 %v3113, %v3178
      %v3506 = vmul.f32 %v3114, %v3176
      %v3507 = vmul.f32 %v3115, %v3177
      %v3508 = vmul.f32 %v3116, %v3178
      %v3509 = vmul.f32 %v3117, %v3176
      %v3510 = vmul.f32 %v3118, %v3177
      %v3511 = vmul.f32 %v3119, %v3178
      %v3512 = vmul.f32 %v3120, %v3176
      %v3513 = vmul.f32 %v3121, %v3177
      %v3514 = vmul.f32 %v3122, %v3178
      %v3515 = vmul.f32 %v3123, %v3176
      %v3516 = vmul.f32 %v3124, %v3177
      %v3517 = vmul.f32 %v3125, %v3178
      %v3518 = vmul.f32 %v3126, %v3176
      %v3519 = vmul.f32 %v3127, %v3177
      %v3520 = vmul.f32 %v3128, %v3178
      %v3521 = vmul.f32 %v3129, %v3176
      %v3522 = vmul.f32 %v3130, %v3177
      %v3523 = vmul.f32 %v3131, %v3178
      %v3524 = vmul.f32 %v3132, %v3176
      %v3525 = vmul.f32 %v3133, %v3177
      %v3526 = vmul.f32 %v3134, %v3178
      %v3527 = vmul.f32 %v3135, %v3176
      %v3528 = vmul.f32 %v3136, %v3177
      %v3529 = vmul.f32 %v3137, %v3178
      %v3530 = vmul.f32 %v3138, %v3176
      %v3531 = vmul.f32 %v3139, %v3177
      %v3532 = vmul.f32 %v3140, %v3178
      %v3533 = vmul.f32 %v3141, %v3176
      %v3534 = vmul.f32 %v3142, %v3177
      %v3535 = vmul.f32 %v3143, %v3178
      %v3536 = vmul.f32 %v3144, %v3176
      %v3537 = vmul.f32 %v3145, %v3177
      %v3538 = vmul.f32 %v3146, %v3178
      %v3539 = vmul.f32 %v3147, %v3176
      %v3540 = vmul.f32 %v3148, %v3177
      %v3541 = vmul.f32 %v3149, %v3178
      %v3542 = vmul.f32 %v3150, %v3176
      %v3543 = vmul.f32 %v3151, %v3177
      %v3544 = vmul.f32 %v3152, %v3178
      %v3545 = vmul.f32 %v3153, %v3176
      %v3546 = vmul.f32 %v3154, %v3177
      %v3547 = vmul.f32 %v3155, %v3178
      %v3548 = vmul.f32 %v3156, %v3176
      %v3549 = vmul.f32 %v3157, %v3177
      %v3550 = vmul.f32 %v3158, %v3178
      %v3551 = vmul.f32 %v3159, %v3176
      %v3552 = vmul.f32 %v3160, %v3177
      %v3553 = vmul.f32 %v3161, %v3178
      %v3554 = vmul.f32 %v3162, %v3176
      %v3555 = vmul.f32 %v3163, %v3177
      %v3556 = vmul.f32 %v3164, %v3178
      %v3557 = vmul.f32 %v3165, %v3176
      %v3558 = vmul.f32 %v3166, %v3177
      %v3559 = vmul.f32 %v3167, %v3178
      %v3560 = vmul.f32 %v3168, %v3176
      %v3561 = vmul.f32 %v3169, %v3177
      %v3562 = vmul.f32 %v3170, %v3178
      %v3563 = vmul.f32 %v3171, %v3176
      %v3564 = vmul.f32 %v3172, %v3177
      %v3565 = vmul.f32 %v3173, %v3178
      %v3566 = vld [vmem:[#allocation2] sm:$0xff]
      %v3567 = vadd.f32 %v3182, %v3183
      %v3568 = vadd.f32 %v3567, %v3184
      %3569 = vadd.xlane.f32.xlu0 %v3568
      %v3570 = vpop.xlane.xlu0 %3569
      %v3571 = vadd.f32 %v3185, %v3186
      %v3572 = vadd.f32 %v3571, %v3187
      %3573 = vadd.xlane.f32.xlu0 %v3572
      %v3574 = vpop.xlane.xlu0 %3573
      %v3575 = vadd.f32 %v3188, %v3189
      %v3576 = vadd.f32 %v3575, %v3190
      %3577 = vadd.xlane.f32.xlu0 %v3576
      %v3578 = vpop.xlane.xlu0 %3577
      %v3579 = vadd.f32 %v3191, %v3192
      %v3580 = vadd.f32 %v3579, %v3193
      %3581 = vadd.xlane.f32.xlu0 %v3580
      %v3582 = vpop.xlane.xlu0 %3581
      %v3583 = vadd.f32 %v3194, %v3195
      %v3584 = vadd.f32 %v3583, %v3196
      %3585 = vadd.xlane.f32.xlu0 %v3584
      %v3586 = vpop.xlane.xlu0 %3585
      %v3587 = vadd.f32 %v3197, %v3198
      %v3588 = vadd.f32 %v3587, %v3199
      %3589 = vadd.xlane.f32.xlu0 %v3588
      %v3590 = vpop.xlane.xlu0 %3589
      %v3591 = vadd.f32 %v3200, %v3201
      %v3592 = vadd.f32 %v3591, %v3202
      %3593 = vadd.xlane.f32.xlu0 %v3592
      %v3594 = vpop.xlane.xlu0 %3593
      %v3595 = vadd.f32 %v3203, %v3204
      %v3596 = vadd.f32 %v3595, %v3205
      %3597 = vadd.xlane.f32.xlu0 %v3596
      %v3598 = vpop.xlane.xlu0 %3597
      %v3599 = vadd.f32 %v3206, %v3207
      %v3600 = vadd.f32 %v3599, %v3208
      %3601 = vadd.xlane.f32.xlu0 %v3600
      %v3602 = vpop.xlane.xlu0 %3601
      %v3603 = vadd.f32 %v3209, %v3210
      %v3604 = vadd.f32 %v3603, %v3211
      %3605 = vadd.xlane.f32.xlu0 %v3604
      %v3606 = vpop.xlane.xlu0 %3605
      %v3607 = vadd.f32 %v3212, %v3213
      %v3608 = vadd.f32 %v3607, %v3214
      %3609 = vadd.xlane.f32.xlu0 %v3608
      %v3610 = vpop.xlane.xlu0 %3609
      %v3611 = vadd.f32 %v3215, %v3216
      %v3612 = vadd.f32 %v3611, %v3217
      %3613 = vadd.xlane.f32.xlu0 %v3612
      %v3614 = vpop.xlane.xlu0 %3613
      %v3615 = vadd.f32 %v3218, %v3219
      %v3616 = vadd.f32 %v3615, %v3220
      %3617 = vadd.xlane.f32.xlu0 %v3616
      %v3618 = vpop.xlane.xlu0 %3617
      %v3619 = vadd.f32 %v3221, %v3222
      %v3620 = vadd.f32 %v3619, %v3223
      %3621 = vadd.xlane.f32.xlu0 %v3620
      %v3622 = vpop.xlane.xlu0 %3621
      %v3623 = vadd.f32 %v3224, %v3225
      %v3624 = vadd.f32 %v3623, %v3226
      %3625 = vadd.xlane.f32.xlu0 %v3624
      %v3626 = vpop.xlane.xlu0 %3625
      %v3627 = vadd.f32 %v3227, %v3228
      %v3628 = vadd.f32 %v3627, %v3229
      %3629 = vadd.xlane.f32.xlu0 %v3628
      %v3630 = vpop.xlane.xlu0 %3629
      %v3631 = vadd.f32 %v3230, %v3231
      %v3632 = vadd.f32 %v3631, %v3232
      %3633 = vadd.xlane.f32.xlu0 %v3632
      %v3634 = vpop.xlane.xlu0 %3633
      %v3635 = vadd.f32 %v3233, %v3234
      %v3636 = vadd.f32 %v3635, %v3235
      %3637 = vadd.xlane.f32.xlu0 %v3636
      %v3638 = vpop.xlane.xlu0 %3637
      %v3639 = vadd.f32 %v3236, %v3237
      %v3640 = vadd.f32 %v3639, %v3238
      %3641 = vadd.xlane.f32.xlu0 %v3640
      %v3642 = vpop.xlane.xlu0 %3641
      %v3643 = vadd.f32 %v3239, %v3240
      %v3644 = vadd.f32 %v3643, %v3241
      %3645 = vadd.xlane.f32.xlu0 %v3644
      %v3646 = vpop.xlane.xlu0 %3645
      %v3647 = vadd.f32 %v3242, %v3243
      %v3648 = vadd.f32 %v3647, %v3244
      %3649 = vadd.xlane.f32.xlu0 %v3648
      %v3650 = vpop.xlane.xlu0 %3649
      %v3651 = vadd.f32 %v3245, %v3246
      %v3652 = vadd.f32 %v3651, %v3247
      %3653 = vadd.xlane.f32.xlu0 %v3652
      %v3654 = vpop.xlane.xlu0 %3653
      %v3655 = vadd.f32 %v3248, %v3249
      %v3656 = vadd.f32 %v3655, %v3250
      %3657 = vadd.xlane.f32.xlu0 %v3656
      %v3658 = vpop.xlane.xlu0 %3657
      %v3659 = vadd.f32 %v3251, %v3252
      %v3660 = vadd.f32 %v3659, %v3253
      %3661 = vadd.xlane.f32.xlu0 %v3660
      %v3662 = vpop.xlane.xlu0 %3661
      %v3663 = vadd.f32 %v3254, %v3255
      %v3664 = vadd.f32 %v3663, %v3256
      %3665 = vadd.xlane.f32.xlu0 %v3664
      %v3666 = vpop.xlane.xlu0 %3665
      %v3667 = vadd.f32 %v3257, %v3258
      %v3668 = vadd.f32 %v3667, %v3259
      %3669 = vadd.xlane.f32.xlu0 %v3668
      %v3670 = vpop.xlane.xlu0 %3669
      %v3671 = vadd.f32 %v3260, %v3261
      %v3672 = vadd.f32 %v3671, %v3262
      %3673 = vadd.xlane.f32.xlu0 %v3672
      %v3674 = vpop.xlane.xlu0 %3673
      %v3675 = vadd.f32 %v3263, %v3264
      %v3676 = vadd.f32 %v3675, %v3265
      %3677 = vadd.xlane.f32.xlu0 %v3676
      %v3678 = vpop.xlane.xlu0 %3677
      %v3679 = vadd.f32 %v3266, %v3267
      %v3680 = vadd.f32 %v3679, %v3268
      %3681 = vadd.xlane.f32.xlu0 %v3680
      %v3682 = vpop.xlane.xlu0 %3681
      %v3683 = vadd.f32 %v3269, %v3270
      %v3684 = vadd.f32 %v3683, %v3271
      %3685 = vadd.xlane.f32.xlu0 %v3684
      %v3686 = vpop.xlane.xlu0 %3685
      %v3687 = vadd.f32 %v3272, %v3273
      %v3688 = vadd.f32 %v3687, %v3274
      %3689 = vadd.xlane.f32.xlu0 %v3688
      %v3690 = vpop.xlane.xlu0 %3689
      %v3691 = vadd.f32 %v3275, %v3276
      %v3692 = vadd.f32 %v3691, %v3277
      %3693 = vadd.xlane.f32.xlu0 %v3692
      %v3694 = vpop.xlane.xlu0 %3693
      %v3695 = vadd.f32 %v3278, %v3279
      %v3696 = vadd.f32 %v3695, %v3280
      %3697 = vadd.xlane.f32.xlu0 %v3696
      %v3698 = vpop.xlane.xlu0 %3697
      %v3699 = vadd.f32 %v3281, %v3282
      %v3700 = vadd.f32 %v3699, %v3283
      %3701 = vadd.xlane.f32.xlu0 %v3700
      %v3702 = vpop.xlane.xlu0 %3701
      %v3703 = vadd.f32 %v3284, %v3285
      %v3704 = vadd.f32 %v3703, %v3286
      %3705 = vadd.xlane.f32.xlu0 %v3704
      %v3706 = vpop.xlane.xlu0 %3705
      %v3707 = vadd.f32 %v3287, %v3288
      %v3708 = vadd.f32 %v3707, %v3289
      %3709 = vadd.xlane.f32.xlu0 %v3708
      %v3710 = vpop.xlane.xlu0 %3709
      %v3711 = vadd.f32 %v3290, %v3291
      %v3712 = vadd.f32 %v3711, %v3292
      %3713 = vadd.xlane.f32.xlu0 %v3712
      %v3714 = vpop.xlane.xlu0 %3713
      %v3715 = vadd.f32 %v3293, %v3294
      %v3716 = vadd.f32 %v3715, %v3295
      %3717 = vadd.xlane.f32.xlu0 %v3716
      %v3718 = vpop.xlane.xlu0 %3717
      %v3719 = vadd.f32 %v3296, %v3297
      %v3720 = vadd.f32 %v3719, %v3298
      %3721 = vadd.xlane.f32.xlu0 %v3720
      %v3722 = vpop.xlane.xlu0 %3721
      %v3723 = vadd.f32 %v3299, %v3300
      %v3724 = vadd.f32 %v3723, %v3301
      %3725 = vadd.xlane.f32.xlu0 %v3724
      %v3726 = vpop.xlane.xlu0 %3725
      %v3727 = vadd.f32 %v3302, %v3303
      %v3728 = vadd.f32 %v3727, %v3304
      %3729 = vadd.xlane.f32.xlu0 %v3728
      %v3730 = vpop.xlane.xlu0 %3729
      %v3731 = vadd.f32 %v3305, %v3306
      %v3732 = vadd.f32 %v3731, %v3307
      %3733 = vadd.xlane.f32.xlu0 %v3732
      %v3734 = vpop.xlane.xlu0 %3733
      %v3735 = vadd.f32 %v3308, %v3309
      %v3736 = vadd.f32 %v3735, %v3310
      %3737 = vadd.xlane.f32.xlu0 %v3736
      %v3738 = vpop.xlane.xlu0 %3737
      %v3739 = vadd.f32 %v3311, %v3312
      %v3740 = vadd.f32 %v3739, %v3313
      %3741 = vadd.xlane.f32.xlu0 %v3740
      %v3742 = vpop.xlane.xlu0 %3741
      %v3743 = vadd.f32 %v3314, %v3315
      %v3744 = vadd.f32 %v3743, %v3316
      %3745 = vadd.xlane.f32.xlu0 %v3744
      %v3746 = vpop.xlane.xlu0 %3745
      %v3747 = vadd.f32 %v3317, %v3318
      %v3748 = vadd.f32 %v3747, %v3319
      %3749 = vadd.xlane.f32.xlu0 %v3748
      %v3750 = vpop.xlane.xlu0 %3749
      %v3751 = vadd.f32 %v3320, %v3321
      %v3752 = vadd.f32 %v3751, %v3322
      %3753 = vadd.xlane.f32.xlu0 %v3752
      %v3754 = vpop.xlane.xlu0 %3753
      %v3755 = vadd.f32 %v3323, %v3324
      %v3756 = vadd.f32 %v3755, %v3325
      %3757 = vadd.xlane.f32.xlu0 %v3756
      %v3758 = vpop.xlane.xlu0 %3757
      %v3759 = vadd.f32 %v3326, %v3327
      %v3760 = vadd.f32 %v3759, %v3328
      %3761 = vadd.xlane.f32.xlu0 %v3760
      %v3762 = vpop.xlane.xlu0 %3761
      %v3763 = vadd.f32 %v3329, %v3330
      %v3764 = vadd.f32 %v3763, %v3331
      %3765 = vadd.xlane.f32.xlu0 %v3764
      %v3766 = vpop.xlane.xlu0 %3765
      %v3767 = vadd.f32 %v3332, %v3333
      %v3768 = vadd.f32 %v3767, %v3334
      %3769 = vadd.xlane.f32.xlu0 %v3768
      %v3770 = vpop.xlane.xlu0 %3769
      %v3771 = vadd.f32 %v3335, %v3336
      %v3772 = vadd.f32 %v3771, %v3337
      %3773 = vadd.xlane.f32.xlu0 %v3772
      %v3774 = vpop.xlane.xlu0 %3773
      %v3775 = vadd.f32 %v3338, %v3339
      %v3776 = vadd.f32 %v3775, %v3340
      %3777 = vadd.xlane.f32.xlu0 %v3776
      %v3778 = vpop.xlane.xlu0 %3777
      %v3779 = vadd.f32 %v3341, %v3342
      %v3780 = vadd.f32 %v3779, %v3343
      %3781 = vadd.xlane.f32.xlu0 %v3780
      %v3782 = vpop.xlane.xlu0 %3781
      %v3783 = vadd.f32 %v3344, %v3345
      %v3784 = vadd.f32 %v3783, %v3346
      %3785 = vadd.xlane.f32.xlu0 %v3784
      %v3786 = vpop.xlane.xlu0 %3785
      %v3787 = vadd.f32 %v3347, %v3348
      %v3788 = vadd.f32 %v3787, %v3349
      %3789 = vadd.xlane.f32.xlu0 %v3788
      %v3790 = vpop.xlane.xlu0 %3789
      %v3791 = vadd.f32 %v3350, %v3351
      %v3792 = vadd.f32 %v3791, %v3352
      %3793 = vadd.xlane.f32.xlu0 %v3792
      %v3794 = vpop.xlane.xlu0 %3793
      %v3795 = vadd.f32 %v3353, %v3354
      %v3796 = vadd.f32 %v3795, %v3355
      %3797 = vadd.xlane.f32.xlu0 %v3796
      %v3798 = vpop.xlane.xlu0 %3797
      %v3799 = vadd.f32 %v3356, %v3357
      %v3800 = vadd.f32 %v3799, %v3358
      %3801 = vadd.xlane.f32.xlu0 %v3800
      %v3802 = vpop.xlane.xlu0 %3801
      %v3803 = vadd.f32 %v3359, %v3360
      %v3804 = vadd.f32 %v3803, %v3361
      %3805 = vadd.xlane.f32.xlu0 %v3804
      %v3806 = vpop.xlane.xlu0 %3805
      %v3807 = vadd.f32 %v3362, %v3363
      %v3808 = vadd.f32 %v3807, %v3364
      %3809 = vadd.xlane.f32.xlu0 %v3808
      %v3810 = vpop.xlane.xlu0 %3809
      %v3811 = vadd.f32 %v3365, %v3366
      %v3812 = vadd.f32 %v3811, %v3367
      %3813 = vadd.xlane.f32.xlu0 %v3812
      %v3814 = vpop.xlane.xlu0 %3813
      %v3815 = vadd.f32 %v3368, %v3369
      %v3816 = vadd.f32 %v3815, %v3370
      %3817 = vadd.xlane.f32.xlu0 %v3816
      %v3818 = vpop.xlane.xlu0 %3817
      %v3819 = vadd.f32 %v3371, %v3372
      %v3820 = vadd.f32 %v3819, %v3373
      %3821 = vadd.xlane.f32.xlu0 %v3820
      %v3822 = vpop.xlane.xlu0 %3821
      %v3823 = vadd.f32 %v3374, %v3375
      %v3824 = vadd.f32 %v3823, %v3376
      %3825 = vadd.xlane.f32.xlu0 %v3824
      %v3826 = vpop.xlane.xlu0 %3825
      %v3827 = vadd.f32 %v3377, %v3378
      %v3828 = vadd.f32 %v3827, %v3379
      %3829 = vadd.xlane.f32.xlu0 %v3828
      %v3830 = vpop.xlane.xlu0 %3829
      %v3831 = vadd.f32 %v3380, %v3381
      %v3832 = vadd.f32 %v3831, %v3382
      %3833 = vadd.xlane.f32.xlu0 %v3832
      %v3834 = vpop.xlane.xlu0 %3833
      %v3835 = vadd.f32 %v3383, %v3384
      %v3836 = vadd.f32 %v3835, %v3385
      %3837 = vadd.xlane.f32.xlu0 %v3836
      %v3838 = vpop.xlane.xlu0 %3837
      %v3839 = vadd.f32 %v3386, %v3387
      %v3840 = vadd.f32 %v3839, %v3388
      %3841 = vadd.xlane.f32.xlu0 %v3840
      %v3842 = vpop.xlane.xlu0 %3841
      %v3843 = vadd.f32 %v3389, %v3390
      %v3844 = vadd.f32 %v3843, %v3391
      %3845 = vadd.xlane.f32.xlu0 %v3844
      %v3846 = vpop.xlane.xlu0 %3845
      %v3847 = vadd.f32 %v3392, %v3393
      %v3848 = vadd.f32 %v3847, %v3394
      %3849 = vadd.xlane.f32.xlu0 %v3848
      %v3850 = vpop.xlane.xlu0 %3849
      %v3851 = vadd.f32 %v3395, %v3396
      %v3852 = vadd.f32 %v3851, %v3397
      %3853 = vadd.xlane.f32.xlu0 %v3852
      %v3854 = vpop.xlane.xlu0 %3853
      %v3855 = vadd.f32 %v3398, %v3399
      %v3856 = vadd.f32 %v3855, %v3400
      %3857 = vadd.xlane.f32.xlu0 %v3856
      %v3858 = vpop.xlane.xlu0 %3857
      %v3859 = vadd.f32 %v3401, %v3402
      %v3860 = vadd.f32 %v3859, %v3403
      %3861 = vadd.xlane.f32.xlu0 %v3860
      %v3862 = vpop.xlane.xlu0 %3861
      %v3863 = vadd.f32 %v3404, %v3405
      %v3864 = vadd.f32 %v3863, %v3406
      %3865 = vadd.xlane.f32.xlu0 %v3864
      %v3866 = vpop.xlane.xlu0 %3865
      %v3867 = vadd.f32 %v3407, %v3408
      %v3868 = vadd.f32 %v3867, %v3409
      %3869 = vadd.xlane.f32.xlu0 %v3868
      %v3870 = vpop.xlane.xlu0 %3869
      %v3871 = vadd.f32 %v3410, %v3411
      %v3872 = vadd.f32 %v3871, %v3412
      %3873 = vadd.xlane.f32.xlu0 %v3872
      %v3874 = vpop.xlane.xlu0 %3873
      %v3875 = vadd.f32 %v3413, %v3414
      %v3876 = vadd.f32 %v3875, %v3415
      %3877 = vadd.xlane.f32.xlu0 %v3876
      %v3878 = vpop.xlane.xlu0 %3877
      %v3879 = vadd.f32 %v3416, %v3417
      %v3880 = vadd.f32 %v3879, %v3418
      %3881 = vadd.xlane.f32.xlu0 %v3880
      %v3882 = vpop.xlane.xlu0 %3881
      %v3883 = vadd.f32 %v3419, %v3420
      %v3884 = vadd.f32 %v3883, %v3421
      %3885 = vadd.xlane.f32.xlu0 %v3884
      %v3886 = vpop.xlane.xlu0 %3885
      %v3887 = vadd.f32 %v3422, %v3423
      %v3888 = vadd.f32 %v3887, %v3424
      %3889 = vadd.xlane.f32.xlu0 %v3888
      %v3890 = vpop.xlane.xlu0 %3889
      %v3891 = vadd.f32 %v3425, %v3426
      %v3892 = vadd.f32 %v3891, %v3427
      %3893 = vadd.xlane.f32.xlu0 %v3892
      %v3894 = vpop.xlane.xlu0 %3893
      %v3895 = vadd.f32 %v3428, %v3429
      %v3896 = vadd.f32 %v3895, %v3430
      %3897 = vadd.xlane.f32.xlu0 %v3896
      %v3898 = vpop.xlane.xlu0 %3897
      %v3899 = vadd.f32 %v3431, %v3432
      %v3900 = vadd.f32 %v3899, %v3433
      %3901 = vadd.xlane.f32.xlu0 %v3900
      %v3902 = vpop.xlane.xlu0 %3901
      %v3903 = vadd.f32 %v3434, %v3435
      %v3904 = vadd.f32 %v3903, %v3436
      %3905 = vadd.xlane.f32.xlu0 %v3904
      %v3906 = vpop.xlane.xlu0 %3905
      %v3907 = vadd.f32 %v3437, %v3438
      %v3908 = vadd.f32 %v3907, %v3439
      %3909 = vadd.xlane.f32.xlu0 %v3908
      %v3910 = vpop.xlane.xlu0 %3909
      %v3911 = vadd.f32 %v3440, %v3441
      %v3912 = vadd.f32 %v3911, %v3442
      %3913 = vadd.xlane.f32.xlu0 %v3912
      %v3914 = vpop.xlane.xlu0 %3913
      %v3915 = vadd.f32 %v3443, %v3444
      %v3916 = vadd.f32 %v3915, %v3445
      %3917 = vadd.xlane.f32.xlu0 %v3916
      %v3918 = vpop.xlane.xlu0 %3917
      %v3919 = vadd.f32 %v3446, %v3447
      %v3920 = vadd.f32 %v3919, %v3448
      %3921 = vadd.xlane.f32.xlu0 %v3920
      %v3922 = vpop.xlane.xlu0 %3921
      %v3923 = vadd.f32 %v3449, %v3450
      %v3924 = vadd.f32 %v3923, %v3451
      %3925 = vadd.xlane.f32.xlu0 %v3924
      %v3926 = vpop.xlane.xlu0 %3925
      %v3927 = vadd.f32 %v3452, %v3453
      %v3928 = vadd.f32 %v3927, %v3454
      %3929 = vadd.xlane.f32.xlu0 %v3928
      %v3930 = vpop.xlane.xlu0 %3929
      %v3931 = vadd.f32 %v3455, %v3456
      %v3932 = vadd.f32 %v3931, %v3457
      %3933 = vadd.xlane.f32.xlu0 %v3932
      %v3934 = vpop.xlane.xlu0 %3933
      %v3935 = vadd.f32 %v3458, %v3459
      %v3936 = vadd.f32 %v3935, %v3460
      %3937 = vadd.xlane.f32.xlu0 %v3936
      %v3938 = vpop.xlane.xlu0 %3937
      %v3939 = vadd.f32 %v3461, %v3462
      %v3940 = vadd.f32 %v3939, %v3463
      %3941 = vadd.xlane.f32.xlu0 %v3940
      %v3942 = vpop.xlane.xlu0 %3941
      %v3943 = vadd.f32 %v3464, %v3465
      %v3944 = vadd.f32 %v3943, %v3466
      %3945 = vadd.xlane.f32.xlu0 %v3944
      %v3946 = vpop.xlane.xlu0 %3945
      %v3947 = vadd.f32 %v3467, %v3468
      %v3948 = vadd.f32 %v3947, %v3469
      %3949 = vadd.xlane.f32.xlu0 %v3948
      %v3950 = vpop.xlane.xlu0 %3949
      %v3951 = vadd.f32 %v3470, %v3471
      %v3952 = vadd.f32 %v3951, %v3472
      %3953 = vadd.xlane.f32.xlu0 %v3952
      %v3954 = vpop.xlane.xlu0 %3953
      %v3955 = vadd.f32 %v3473, %v3474
      %v3956 = vadd.f32 %v3955, %v3475
      %3957 = vadd.xlane.f32.xlu0 %v3956
      %v3958 = vpop.xlane.xlu0 %3957
      %v3959 = vadd.f32 %v3476, %v3477
      %v3960 = vadd.f32 %v3959, %v3478
      %3961 = vadd.xlane.f32.xlu0 %v3960
      %v3962 = vpop.xlane.xlu0 %3961
      %v3963 = vadd.f32 %v3479, %v3480
      %v3964 = vadd.f32 %v3963, %v3481
      %3965 = vadd.xlane.f32.xlu0 %v3964
      %v3966 = vpop.xlane.xlu0 %3965
      %v3967 = vadd.f32 %v3482, %v3483
      %v3968 = vadd.f32 %v3967, %v3484
      %3969 = vadd.xlane.f32.xlu0 %v3968
      %v3970 = vpop.xlane.xlu0 %3969
      %v3971 = vadd.f32 %v3485, %v3486
      %v3972 = vadd.f32 %v3971, %v3487
      %3973 = vadd.xlane.f32.xlu0 %v3972
      %v3974 = vpop.xlane.xlu0 %3973
      %v3975 = vadd.f32 %v3488, %v3489
      %v3976 = vadd.f32 %v3975, %v3490
      %3977 = vadd.xlane.f32.xlu0 %v3976
      %v3978 = vpop.xlane.xlu0 %3977
      %v3979 = vadd.f32 %v3491, %v3492
      %v3980 = vadd.f32 %v3979, %v3493
      %3981 = vadd.xlane.f32.xlu0 %v3980
      %v3982 = vpop.xlane.xlu0 %3981
      %v3983 = vadd.f32 %v3494, %v3495
      %v3984 = vadd.f32 %v3983, %v3496
      %3985 = vadd.xlane.f32.xlu0 %v3984
      %v3986 = vpop.xlane.xlu0 %3985
      %v3987 = vadd.f32 %v3497, %v3498
      %v3988 = vadd.f32 %v3987, %v3499
      %3989 = vadd.xlane.f32.xlu0 %v3988
      %v3990 = vpop.xlane.xlu0 %3989
      %v3991 = vadd.f32 %v3500, %v3501
      %v3992 = vadd.f32 %v3991, %v3502
      %3993 = vadd.xlane.f32.xlu0 %v3992
      %v3994 = vpop.xlane.xlu0 %3993
      %v3995 = vadd.f32 %v3503, %v3504
      %v3996 = vadd.f32 %v3995, %v3505
      %3997 = vadd.xlane.f32.xlu0 %v3996
      %v3998 = vpop.xlane.xlu0 %3997
      %v3999 = vadd.f32 %v3506, %v3507
      %v4000 = vadd.f32 %v3999, %v3508
      %4001 = vadd.xlane.f32.xlu0 %v4000
      %v4002 = vpop.xlane.xlu0 %4001
      %v4003 = vadd.f32 %v3509, %v3510
      %v4004 = vadd.f32 %v4003, %v3511
      %4005 = vadd.xlane.f32.xlu0 %v4004
      %v4006 = vpop.xlane.xlu0 %4005
      %v4007 = vadd.f32 %v3512, %v3513
      %v4008 = vadd.f32 %v4007, %v3514
      %4009 = vadd.xlane.f32.xlu0 %v4008
      %v4010 = vpop.xlane.xlu0 %4009
      %v4011 = vadd.f32 %v3515, %v3516
      %v4012 = vadd.f32 %v4011, %v3517
      %4013 = vadd.xlane.f32.xlu0 %v4012
      %v4014 = vpop.xlane.xlu0 %4013
      %v4015 = vadd.f32 %v3518, %v3519
      %v4016 = vadd.f32 %v4015, %v3520
      %4017 = vadd.xlane.f32.xlu0 %v4016
      %v4018 = vpop.xlane.xlu0 %4017
      %v4019 = vadd.f32 %v3521, %v3522
      %v4020 = vadd.f32 %v4019, %v3523
      %4021 = vadd.xlane.f32.xlu0 %v4020
      %v4022 = vpop.xlane.xlu0 %4021
      %v4023 = vadd.f32 %v3524, %v3525
      %v4024 = vadd.f32 %v4023, %v3526
      %4025 = vadd.xlane.f32.xlu0 %v4024
      %v4026 = vpop.xlane.xlu0 %4025
      %v4027 = vadd.f32 %v3527, %v3528
      %v4028 = vadd.f32 %v4027, %v3529
      %4029 = vadd.xlane.f32.xlu0 %v4028
      %v4030 = vpop.xlane.xlu0 %4029
      %v4031 = vadd.f32 %v3530, %v3531
      %v4032 = vadd.f32 %v4031, %v3532
      %4033 = vadd.xlane.f32.xlu0 %v4032
      %v4034 = vpop.xlane.xlu0 %4033
      %v4035 = vadd.f32 %v3533, %v3534
      %v4036 = vadd.f32 %v4035, %v3535
      %4037 = vadd.xlane.f32.xlu0 %v4036
      %v4038 = vpop.xlane.xlu0 %4037
      %v4039 = vadd.f32 %v3536, %v3537
      %v4040 = vadd.f32 %v4039, %v3538
      %4041 = vadd.xlane.f32.xlu0 %v4040
      %v4042 = vpop.xlane.xlu0 %4041
      %v4043 = vadd.f32 %v3539, %v3540
      %v4044 = vadd.f32 %v4043, %v3541
      %4045 = vadd.xlane.f32.xlu0 %v4044
      %v4046 = vpop.xlane.xlu0 %4045
      %v4047 = vadd.f32 %v3542, %v3543
      %v4048 = vadd.f32 %v4047, %v3544
      %4049 = vadd.xlane.f32.xlu0 %v4048
      %v4050 = vpop.xlane.xlu0 %4049
      %v4051 = vadd.f32 %v3545, %v3546
      %v4052 = vadd.f32 %v4051, %v3547
      %4053 = vadd.xlane.f32.xlu0 %v4052
      %v4054 = vpop.xlane.xlu0 %4053
      %v4055 = vadd.f32 %v3548, %v3549
      %v4056 = vadd.f32 %v4055, %v3550
      %4057 = vadd.xlane.f32.xlu0 %v4056
      %v4058 = vpop.xlane.xlu0 %4057
      %v4059 = vadd.f32 %v3551, %v3552
      %v4060 = vadd.f32 %v4059, %v3553
      %4061 = vadd.xlane.f32.xlu0 %v4060
      %v4062 = vpop.xlane.xlu0 %4061
      %v4063 = vadd.f32 %v3554, %v3555
      %v4064 = vadd.f32 %v4063, %v3556
      %4065 = vadd.xlane.f32.xlu0 %v4064
      %v4066 = vpop.xlane.xlu0 %4065
      %v4067 = vadd.f32 %v3557, %v3558
      %v4068 = vadd.f32 %v4067, %v3559
      %4069 = vadd.xlane.f32.xlu0 %v4068
      %v4070 = vpop.xlane.xlu0 %4069
      %v4071 = vadd.f32 %v3560, %v3561
      %v4072 = vadd.f32 %v4071, %v3562
      %4073 = vadd.xlane.f32.xlu0 %v4072
      %v4074 = vpop.xlane.xlu0 %4073
      %v4075 = vadd.f32 %v3563, %v3564
      %v4076 = vadd.f32 %v4075, %v3565
      %4077 = vadd.xlane.f32.xlu0 %v4076
      %v4078 = vpop.xlane.xlu0 %4077
      %v4207 = vlaneseq
      %v4208 = vand.u32 %v4207, 127
      %v4209 = vperm.slane %v3570, %v4208
      %v4210 = vadd.s32 %v4208, 4294967288
      %v4211 = vperm.slane %v3574, %v4210
      %vm4212 = vcmask 130112
      %v4213 = vsel %vm4212, %v4211, %v4209
      %v4214 = vadd.s32 %v4208, 4294967280
      %v4215 = vperm.slane %v3578, %v4214
      %vm4216 = vcmask 195712
      %v4217 = vsel %vm4216, %v4215, %v4213
      %v4218 = vadd.s32 %v4208, 4294967272
      %v4219 = vperm.slane %v3582, %v4218
      %vm4220 = vcmask 261312
      %v4221 = vsel %vm4220, %v4219, %v4217
      %v4222 = vadd.s32 %v4208, 4294967264
      %v4223 = vperm.slane %v3586, %v4222
      %vm4224 = vcmask 326912
      %v4225 = vsel %vm4224, %v4223, %v4221
      %v4226 = vadd.s32 %v4208, 4294967256
      %v4227 = vperm.slane %v3590, %v4226
      %vm4228 = vcmask 392512
      %v4229 = vsel %vm4228, %v4227, %v4225
      %v4230 = vadd.s32 %v4208, 4294967248
      %v4231 = vperm.slane %v3594, %v4230
      %vm4232 = vcmask 458112
      %v4233 = vsel %vm4232, %v4231, %v4229
      %v4234 = vadd.s32 %v4208, 4294967240
      %v4235 = vperm.slane %v3598, %v4234
      %vm4236 = vcmask 523712
      %v4237 = vsel %vm4236, %v4235, %v4233
      %v4238 = vadd.s32 %v4208, 4294967232
      %v4239 = vperm.slane %v3602, %v4238
      %vm4240 = vcmask 589312
      %v4241 = vsel %vm4240, %v4239, %v4237
      %v4242 = vadd.s32 %v4208, 4294967224
      %v4243 = vperm.slane %v3606, %v4242
      %vm4244 = vcmask 654912
      %v4245 = vsel %vm4244, %v4243, %v4241
      %v4246 = vadd.s32 %v4208, 4294967216
      %v4247 = vperm.slane %v3610, %v4246
      %vm4248 = vcmask 720512
      %v4249 = vsel %vm4248, %v4247, %v4245
      %v4250 = vadd.s32 %v4208, 4294967208
      %v4251 = vperm.slane %v3614, %v4250
      %vm4252 = vcmask 786112
      %v4253 = vsel %vm4252, %v4251, %v4249
      %v4254 = vadd.s32 %v4208, 4294967200
      %v4255 = vperm.slane %v3618, %v4254
      %vm4256 = vcmask 851712
      %v4257 = vsel %vm4256, %v4255, %v4253
      %v4258 = vadd.s32 %v4208, 4294967192
      %v4259 = vperm.slane %v3622, %v4258
      %vm4260 = vcmask 917312
      %v4261 = vsel %vm4260, %v4259, %v4257
      %v4262 = vadd.s32 %v4208, 4294967184
      %v4263 = vperm.slane %v3626, %v4262
      %vm4264 = vcmask 982912
      %v4265 = vsel %vm4264, %v4263, %v4261
      %v4266 = vadd.s32 %v4208, 4294967176
      %v4267 = vperm.slane %v3630, %v4266
      %vm4268 = vcmask 1048512
      %v4269 = vsel %vm4268, %v4267, %v4265
      %v4270 = vperm.slane %v3634, %v4208
      %v4271 = vperm.slane %v3638, %v4210
      %v4272 = vsel %vm4212, %v4271, %v4270
      %v4273 = vperm.slane %v3642, %v4214
      %v4274 = vsel %vm4216, %v4273, %v4272
      %v4275 = vperm.slane %v3646, %v4218
      %v4276 = vsel %vm4220, %v4275, %v4274
      %v4277 = vperm.slane %v3650, %v4222
      %v4278 = vsel %vm4224, %v4277, %v4276
      %v4279 = vperm.slane %v3654, %v4226
      %v4280 = vsel %vm4228, %v4279, %v4278
      %v4281 = vperm.slane %v3658, %v4230
      %v4282 = vsel %vm4232, %v4281, %v4280
      %v4283 = vperm.slane %v3662, %v4234
      %v4284 = vsel %vm4236, %v4283, %v4282
      %v4285 = vperm.slane %v3666, %v4238
      %v4286 = vsel %vm4240, %v4285, %v4284
      %v4287 = vperm.slane %v3670, %v4242
      %v4288 = vsel %vm4244, %v4287, %v4286
      %v4289 = vperm.slane %v3674, %v4246
      %v4290 = vsel %vm4248, %v4289, %v4288
      %v4291 = vperm.slane %v3678, %v4250
      %v4292 = vsel %vm4252, %v4291, %v4290
      %v4293 = vperm.slane %v3682, %v4254
      %v4294 = vsel %vm4256, %v4293, %v4292
      %v4295 = vperm.slane %v3686, %v4258
      %v4296 = vsel %vm4260, %v4295, %v4294
      %v4297 = vperm.slane %v3690, %v4262
      %v4298 = vsel %vm4264, %v4297, %v4296
      %v4299 = vperm.slane %v3694, %v4266
      %v4300 = vsel %vm4268, %v4299, %v4298
      %v4301 = vperm.slane %v3698, %v4208
      %v4302 = vperm.slane %v3702, %v4210
      %v4303 = vsel %vm4212, %v4302, %v4301
      %v4304 = vperm.slane %v3706, %v4214
      %v4305 = vsel %vm4216, %v4304, %v4303
      %v4306 = vperm.slane %v3710, %v4218
      %v4307 = vsel %vm4220, %v4306, %v4305
      %v4308 = vperm.slane %v3714, %v4222
      %v4309 = vsel %vm4224, %v4308, %v4307
      %v4310 = vperm.slane %v3718, %v4226
      %v4311 = vsel %vm4228, %v4310, %v4309
      %v4312 = vperm.slane %v3722, %v4230
      %v4313 = vsel %vm4232, %v4312, %v4311
      %v4314 = vperm.slane %v3726, %v4234
      %v4315 = vsel %vm4236, %v4314, %v4313
      %v4316 = vperm.slane %v3730, %v4238
      %v4317 = vsel %vm4240, %v4316, %v4315
      %v4318 = vperm.slane %v3734, %v4242
      %v4319 = vsel %vm4244, %v4318, %v4317
      %v4320 = vperm.slane %v3738, %v4246
      %v4321 = vsel %vm4248, %v4320, %v4319
      %v4322 = vperm.slane %v3742, %v4250
      %v4323 = vsel %vm4252, %v4322, %v4321
      %v4324 = vperm.slane %v3746, %v4254
      %v4325 = vsel %vm4256, %v4324, %v4323
      %v4326 = vperm.slane %v3750, %v4258
      %v4327 = vsel %vm4260, %v4326, %v4325
      %v4328 = vperm.slane %v3754, %v4262
      %v4329 = vsel %vm4264, %v4328, %v4327
      %v4330 = vperm.slane %v3758, %v4266
      %v4331 = vsel %vm4268, %v4330, %v4329
      %v4332 = vperm.slane %v3762, %v4208
      %v4333 = vperm.slane %v3766, %v4210
      %v4334 = vsel %vm4212, %v4333, %v4332
      %v4335 = vperm.slane %v3770, %v4214
      %v4336 = vsel %vm4216, %v4335, %v4334
      %v4337 = vperm.slane %v3774, %v4218
      %v4338 = vsel %vm4220, %v4337, %v4336
      %v4339 = vperm.slane %v3778, %v4222
      %v4340 = vsel %vm4224, %v4339, %v4338
      %v4341 = vperm.slane %v3782, %v4226
      %v4342 = vsel %vm4228, %v4341, %v4340
      %v4343 = vperm.slane %v3786, %v4230
      %v4344 = vsel %vm4232, %v4343, %v4342
      %v4345 = vperm.slane %v3790, %v4234
      %v4346 = vsel %vm4236, %v4345, %v4344
      %v4347 = vperm.slane %v3794, %v4238
      %v4348 = vsel %vm4240, %v4347, %v4346
      %v4349 = vperm.slane %v3798, %v4242
      %v4350 = vsel %vm4244, %v4349, %v4348
      %v4351 = vperm.slane %v3802, %v4246
      %v4352 = vsel %vm4248, %v4351, %v4350
      %v4353 = vperm.slane %v3806, %v4250
      %v4354 = vsel %vm4252, %v4353, %v4352
      %v4355 = vperm.slane %v3810, %v4254
      %v4356 = vsel %vm4256, %v4355, %v4354
      %v4357 = vperm.slane %v3814, %v4258
      %v4358 = vsel %vm4260, %v4357, %v4356
      %v4359 = vperm.slane %v3818, %v4262
      %v4360 = vsel %vm4264, %v4359, %v4358
      %v4361 = vperm.slane %v3822, %v4266
      %v4362 = vsel %vm4268, %v4361, %v4360
      %v4363 = vperm.slane %v3826, %v4208
      %v4364 = vperm.slane %v3830, %v4210
      %v4365 = vsel %vm4212, %v4364, %v4363
      %v4366 = vperm.slane %v3834, %v4214
      %v4367 = vsel %vm4216, %v4366, %v4365
      %v4368 = vperm.slane %v3838, %v4218
      %v4369 = vsel %vm4220, %v4368, %v4367
      %v4370 = vperm.slane %v3842, %v4222
      %v4371 = vsel %vm4224, %v4370, %v4369
      %v4372 = vperm.slane %v3846, %v4226
      %v4373 = vsel %vm4228, %v4372, %v4371
      %v4374 = vperm.slane %v3850, %v4230
      %v4375 = vsel %vm4232, %v4374, %v4373
      %v4376 = vperm.slane %v3854, %v4234
      %v4377 = vsel %vm4236, %v4376, %v4375
      %v4378 = vperm.slane %v3858, %v4238
      %v4379 = vsel %vm4240, %v4378, %v4377
      %v4380 = vperm.slane %v3862, %v4242
      %v4381 = vsel %vm4244, %v4380, %v4379
      %v4382 = vperm.slane %v3866, %v4246
      %v4383 = vsel %vm4248, %v4382, %v4381
      %v4384 = vperm.slane %v3870, %v4250
      %v4385 = vsel %vm4252, %v4384, %v4383
      %v4386 = vperm.slane %v3874, %v4254
      %v4387 = vsel %vm4256, %v4386, %v4385
      %v4388 = vperm.slane %v3878, %v4258
      %v4389 = vsel %vm4260, %v4388, %v4387
      %v4390 = vperm.slane %v3882, %v4262
      %v4391 = vsel %vm4264, %v4390, %v4389
      %v4392 = vperm.slane %v3886, %v4266
      %v4393 = vsel %vm4268, %v4392, %v4391
      %v4394 = vperm.slane %v3890, %v4208
      %v4395 = vperm.slane %v3894, %v4210
      %v4396 = vsel %vm4212, %v4395, %v4394
      %v4397 = vperm.slane %v3898, %v4214
      %v4398 = vsel %vm4216, %v4397, %v4396
      %v4399 = vperm.slane %v3902, %v4218
      %v4400 = vsel %vm4220, %v4399, %v4398
      %v4401 = vperm.slane %v3906, %v4222
      %v4402 = vsel %vm4224, %v4401, %v4400
      %v4403 = vperm.slane %v3910, %v4226
      %v4404 = vsel %vm4228, %v4403, %v4402
      %v4405 = vperm.slane %v3914, %v4230
      %v4406 = vsel %vm4232, %v4405, %v4404
      %v4407 = vperm.slane %v3918, %v4234
      %v4408 = vsel %vm4236, %v4407, %v4406
      %v4409 = vperm.slane %v3922, %v4238
      %v4410 = vsel %vm4240, %v4409, %v4408
      %v4411 = vperm.slane %v3926, %v4242
      %v4412 = vsel %vm4244, %v4411, %v4410
      %v4413 = vperm.slane %v3930, %v4246
      %v4414 = vsel %vm4248, %v4413, %v4412
      %v4415 = vperm.slane %v3934, %v4250
      %v4416 = vsel %vm4252, %v4415, %v4414
      %v4417 = vperm.slane %v3938, %v4254
      %v4418 = vsel %vm4256, %v4417, %v4416
      %v4419 = vperm.slane %v3942, %v4258
      %v4420 = vsel %vm4260, %v4419, %v4418
      %v4421 = vperm.slane %v3946, %v4262
      %v4422 = vsel %vm4264, %v4421, %v4420
      %v4423 = vperm.slane %v3950, %v4266
      %v4424 = vsel %vm4268, %v4423, %v4422
      %v4425 = vperm.slane %v3954, %v4208
      %v4426 = vperm.slane %v3958, %v4210
      %v4427 = vsel %vm4212, %v4426, %v4425
      %v4428 = vperm.slane %v3962, %v4214
      %v4429 = vsel %vm4216, %v4428, %v4427
      %v4430 = vperm.slane %v3966, %v4218
      %v4431 = vsel %vm4220, %v4430, %v4429
      %v4432 = vperm.slane %v3970, %v4222
      %v4433 = vsel %vm4224, %v4432, %v4431
      %v4434 = vperm.slane %v3974, %v4226
      %v4435 = vsel %vm4228, %v4434, %v4433
      %v4436 = vperm.slane %v3978, %v4230
      %v4437 = vsel %vm4232, %v4436, %v4435
      %v4438 = vperm.slane %v3982, %v4234
      %v4439 = vsel %vm4236, %v4438, %v4437
      %v4440 = vperm.slane %v3986, %v4238
      %v4441 = vsel %vm4240, %v4440, %v4439
      %v4442 = vperm.slane %v3990, %v4242
      %v4443 = vsel %vm4244, %v4442, %v4441
      %v4444 = vperm.slane %v3994, %v4246
      %v4445 = vsel %vm4248, %v4444, %v4443
      %v4446 = vperm.slane %v3998, %v4250
      %v4447 = vsel %vm4252, %v4446, %v4445
      %v4448 = vperm.slane %v4002, %v4254
      %v4449 = vsel %vm4256, %v4448, %v4447
      %v4450 = vperm.slane %v4006, %v4258
      %v4451 = vsel %vm4260, %v4450, %v4449
      %v4452 = vperm.slane %v4010, %v4262
      %v4453 = vsel %vm4264, %v4452, %v4451
      %v4454 = vperm.slane %v4014, %v4266
      %v4455 = vsel %vm4268, %v4454, %v4453
      %v4456 = vperm.slane %v4018, %v4208
      %v4457 = vperm.slane %v4022, %v4210
      %v4458 = vsel %vm4212, %v4457, %v4456
      %v4459 = vperm.slane %v4026, %v4214
      %v4460 = vsel %vm4216, %v4459, %v4458
      %v4461 = vperm.slane %v4030, %v4218
      %v4462 = vsel %vm4220, %v4461, %v4460
      %v4463 = vperm.slane %v4034, %v4222
      %v4464 = vsel %vm4224, %v4463, %v4462
      %v4465 = vperm.slane %v4038, %v4226
      %v4466 = vsel %vm4228, %v4465, %v4464
      %v4467 = vperm.slane %v4042, %v4230
      %v4468 = vsel %vm4232, %v4467, %v4466
      %v4469 = vperm.slane %v4046, %v4234
      %v4470 = vsel %vm4236, %v4469, %v4468
      %v4471 = vperm.slane %v4050, %v4238
      %v4472 = vsel %vm4240, %v4471, %v4470
      %v4473 = vperm.slane %v4054, %v4242
      %v4474 = vsel %vm4244, %v4473, %v4472
      %v4475 = vperm.slane %v4058, %v4246
      %v4476 = vsel %vm4248, %v4475, %v4474
      %v4477 = vperm.slane %v4062, %v4250
      %v4478 = vsel %vm4252, %v4477, %v4476
      %v4479 = vperm.slane %v4066, %v4254
      %v4480 = vsel %vm4256, %v4479, %v4478
      %v4481 = vperm.slane %v4070, %v4258
      %v4482 = vsel %vm4260, %v4481, %v4480
      %v4483 = vperm.slane %v4074, %v4262
      %v4484 = vsel %vm4264, %v4483, %v4482
      %v4485 = vperm.slane %v4078, %v4266
      %v4486 = vsel %vm4268, %v4485, %v4484
      %vm4487 = vcmask 1041409
      %v4488 = vsel %vm4487, %v4300, %v4269
      %vm4489 = vcmask 1042434
      %v4490 = vsel %vm4489, %v4331, %v4488
      %vm4491 = vcmask 1043459
      %v4492 = vsel %vm4491, %v4362, %v4490
      %vm4493 = vcmask 1044484
      %v4494 = vsel %vm4493, %v4393, %v4492
      %vm4495 = vcmask 1045509
      %v4496 = vsel %vm4495, %v4424, %v4494
      %vm4497 = vcmask 1046534
      %v4498 = vsel %vm4497, %v4455, %v4496
      %vm4499 = vcmask 1047559
      %v4500 = vsel %vm4499, %v4486, %v4498
      %v4502 = vadd.f32 %v3566, %v4500
      %4503 = vst [vmem:[#allocation2] sm:$0xff] %v4502
      %v4504 = vld [vmem:[#allocation2] sm:$0xff]
      %v4505 = vmul.f32 %v4504, 0.00390625
      %4506 = vst [vmem:[%s261] sm:$0xff] %v4505
      %v4507 = vpack.c.bf16 %v4505, %v4505
      %v4508 = vld [vmem:[%s3] sm:$0xf]
      %v4509 = vld [vmem:[%s3 + $0x4] sm:$0xf]
      %v4510 = vld [vmem:[%s3 + $0x8] sm:$0xf]
      %v4511 = vld [vmem:[%s3 + $0xc] sm:$0xf]
      %v4512 = vld [vmem:[%s3 + $0x10] sm:$0xf]
      %v4513 = vld [vmem:[%s3 + $0x14] sm:$0xf]
      %v4514 = vld [vmem:[%s3 + $0x18] sm:$0xf]
      %v4515 = vld [vmem:[%s3 + $0x1c] sm:$0xf]
      %v4516 = vld [vmem:[%s3 + $0x20] sm:$0xf]
      %v4517 = vld [vmem:[%s3 + $0x24] sm:$0xf]
      %v4518 = vld [vmem:[%s3 + $0x28] sm:$0xf]
      %v4519 = vld [vmem:[%s3 + $0x2c] sm:$0xf]
      %v4520 = vld [vmem:[%s3 + $0x30] sm:$0xf]
      %v4521 = vld [vmem:[%s3 + $0x34] sm:$0xf]
      %v4522 = vld [vmem:[%s3 + $0x38] sm:$0xf]
      %v4523 = vld [vmem:[%s3 + $0x3c] sm:$0xf]
      %v4540 = vunpack.c.l.b16 %v4508
      %v4541 = vunpack.c.l.b16 %v4509
      %v4542 = vunpack.c.l.b16 %v4510
      %v4543 = vunpack.c.l.b16 %v4511
      %v4544 = vunpack.c.l.b16 %v4512
      %v4545 = vunpack.c.l.b16 %v4513
      %v4546 = vunpack.c.l.b16 %v4514
      %v4547 = vunpack.c.l.b16 %v4515
      %v4548 = vunpack.c.l.b16 %v4516
      %v4549 = vunpack.c.l.b16 %v4517
      %v4550 = vunpack.c.l.b16 %v4518
      %v4551 = vunpack.c.l.b16 %v4519
      %v4552 = vunpack.c.l.b16 %v4520
      %v4553 = vunpack.c.l.b16 %v4521
      %v4554 = vunpack.c.l.b16 %v4522
      %v4555 = vunpack.c.l.b16 %v4523
      %v4556 = vpack.c.b16 %v4541, %v4540
      %v4557 = vpack.c.b16 %v4543, %v4542
      %v4558 = vpack.c.b16 %v4545, %v4544
      %v4559 = vpack.c.b16 %v4547, %v4546
      %v4560 = vpack.c.b16 %v4549, %v4548
      %v4561 = vpack.c.b16 %v4551, %v4550
      %v4562 = vpack.c.b16 %v4553, %v4552
      %v4563 = vpack.c.b16 %v4555, %v4554
      %4572 = vmatpush.bf16.msra.mxu0 %v4563
      %4573 = vmatpush.bf16.msra.mxu0 %v4562
      %4574 = vmatpush.bf16.msra.mxu0 %v4561
      %4575 = vmatpush.bf16.msra.mxu0 %v4560
      %4576 = vmatpush.bf16.msra.mxu0 %v4559
      %4577 = vmatpush.bf16.msra.mxu0 %v4558
      %4578 = vmatpush.bf16.msra.mxu0 %v4557
      %4579 = vmatpush.bf16.msra.mxu0 %v4556
      %4580 = vmatmul.bf16.gmra.mxu0 %v4507
      %v4581 = vpop.f32.mrf.mxu0
      %v4582 = vadd.f32 0.0, %v4581
      %v4583 = vpop.f32.mrf.mxu0
      %4584 = vdwg.mxu0
      %v4585 = vmax.f32 %v4582, 0.0
      %v4586 = vpack.c.bf16 %v4585, %v4585
      %v4587 = vld [vmem:[%s4] sm:$0xf]
      %v4588 = vld [vmem:[%s4 + $0x4] sm:$0xf]
      %v4589 = vld [vmem:[%s4 + $0x8] sm:$0xf]
      %v4590 = vld [vmem:[%s4 + $0xc] sm:$0xf]
      %v4591 = vld [vmem:[%s4 + $0x10] sm:$0xf]
      %v4592 = vld [vmem:[%s4 + $0x14] sm:$0xf]
      %v4593 = vld [vmem:[%s4 + $0x18] sm:$0xf]
      %v4594 = vld [vmem:[%s4 + $0x1c] sm:$0xf]
      %v4595 = vld [vmem:[%s4 + $0x20] sm:$0xf]
      %v4596 = vld [vmem:[%s4 + $0x24] sm:$0xf]
      %v4597 = vld [vmem:[%s4 + $0x28] sm:$0xf]
      %v4598 = vld [vmem:[%s4 + $0x2c] sm:$0xf]
      %v4599 = vld [vmem:[%s4 + $0x30] sm:$0xf]
      %v4600 = vld [vmem:[%s4 + $0x34] sm:$0xf]
      %v4601 = vld [vmem:[%s4 + $0x38] sm:$0xf]
      %v4602 = vld [vmem:[%s4 + $0x3c] sm:$0xf]
      %v4619 = vunpack.c.l.b16 %v4587
      %v4620 = vunpack.c.l.b16 %v4588
      %v4621 = vunpack.c.l.b16 %v4589
      %v4622 = vunpack.c.l.b16 %v4590
      %v4623 = vunpack.c.l.b16 %v4591
      %v4624 = vunpack.c.l.b16 %v4592
      %v4625 = vunpack.c.l.b16 %v4593
      %v4626 = vunpack.c.l.b16 %v4594
      %v4627 = vunpack.c.l.b16 %v4595
      %v4628 = vunpack.c.l.b16 %v4596
      %v4629 = vunpack.c.l.b16 %v4597
      %v4630 = vunpack.c.l.b16 %v4598
      %v4631 = vunpack.c.l.b16 %v4599
      %v4632 = vunpack.c.l.b16 %v4600
      %v4633 = vunpack.c.l.b16 %v4601
      %v4634 = vunpack.c.l.b16 %v4602
      %v4635 = vpack.c.b16 %v4620, %v4619
      %v4636 = vpack.c.b16 %v4622, %v4621
      %v4637 = vpack.c.b16 %v4624, %v4623
      %v4638 = vpack.c.b16 %v4626, %v4625
      %v4639 = vpack.c.b16 %v4628, %v4627
      %v4640 = vpack.c.b16 %v4630, %v4629
      %v4641 = vpack.c.b16 %v4632, %v4631
      %v4642 = vpack.c.b16 %v4634, %v4633
      %4651 = vmatpush.bf16.msra.mxu0 %v4642
      %4652 = vmatpush.bf16.msra.mxu0 %v4641
      %4653 = vmatpush.bf16.msra.mxu0 %v4640
      %4654 = vmatpush.bf16.msra.mxu0 %v4639
      %4655 = vmatpush.bf16.msra.mxu0 %v4638
      %4656 = vmatpush.bf16.msra.mxu0 %v4637
      %4657 = vmatpush.bf16.msra.mxu0 %v4636
      %4658 = vmatpush.bf16.msra.mxu0 %v4635
      %4659 = vmatmul.bf16.gmra.mxu0 %v4586
      %v4660 = vpop.f32.mrf.mxu0
      %v4661 = vadd.f32 0.0, %v4660
      %v4662 = vpop.f32.mrf.mxu0
      %4663 = vdwg.mxu0
      %v4664 = vmul.f32 %v4661, %v4661
      %4665 = vadd.xlane.f32.xlu0 %v4664
      %v4666 = vpop.xlane.xlu0 %4665
      %v4667 = vmax.f32 %v4666, 1e-24
      %v4668 = vrsqrt.pop %v4667
      %v4669 = vmul.f32 %v4668, %v4667
      %v4670 = vmul.f32 %v4669, %v4668
      %v4671 = vmul.f32 0.5, %v4670
      %v4672 = vsub.f32 1.5, %v4671
      %v4673 = vmul.f32 %v4668, %v4672
      %vm4674 = vweird.f32 %v4667
      %vm4675 = vweird.f32 %v4668
      %vm4676 = vmor %vm4674, %vm4675
      %v4677 = vsel %vm4676, %v4668, %v4673
      %v4678 = vmul.f32 %v4661, %v4677
      %4679 = vst [vmem:[%s265] sm:$0xff] %v4678
      %p4680 = scmp.lt.s32.totalorder %s18, 1
      %s4681 = scalar_select %p4680, %s18, 1
      %s4682 = smul.addr %s4681, 8
      %s4683 = scalar_lea.vmem %s5, %s4682
      %p4684 = scmp.lt.s32.totalorder %s18, 1
      %s4685 = scalar_select %p4684, %s18, 1
      %s4686 = smul.addr %s4685, 8
      %s4687 = scalar_lea.vmem %s6, %s4686
      // Predicated region
      $region41: #{simclr_forward.1} parent=39 // pred_check
        %p4688 = pneg %p146
      $region42: #{simclr_forward.1} parent=39 // pred_check_branch
        %4690 = sbr.rel (%p4688) target = $region44
      $region43: #{simclr_forward.1} parent=39 // pred_region
        _
      $region44: #{simclr_forward.1} parent=39 // pred_fallthru
        _
      // Predicated region
      $region45: #{simclr_forward.1} parent=39 // pred_check
        %p4691 = pneg %p172
      $region46: #{simclr_forward.1} parent=39 // pred_check_branch
        %4693 = sbr.rel (%p4691) target = $region48
      $region47: #{simclr_forward.1} parent=39 // pred_region
        _
      $region48: #{simclr_forward.1} parent=39 // pred_fallthru
        _
    $region40: #{simclr_forward.1} parent=5 // pred_fallthru
      _
    %p4694 = scmp.le.s32.totalorder 2, %s13
    // Predicated region
    $region49: #{simclr_forward.1} parent=5 // pred_check
      %p4695 = pneg %p4694
    $region50: #{simclr_forward.1} parent=5 // pred_check_branch
      %4697 = sbr.rel (%p4695) target = $region52
    $region51: #{simclr_forward.1} parent=5 // pred_region
      %s4698 = ssub.s32 %s13, 2
      // Predicated region
      $region53: #{simclr_forward.1} parent=51 // pred_check
        %p4699 = pneg %p152
      $region54: #{simclr_forward.1} parent=51 // pred_check_branch
        %4701 = sbr.rel (%p4699) target = $region56
      $region55: #{simclr_forward.1} parent=51 // pred_region
        %p4702 = scmp.lt.s32.totalorder %s19, 1
        %s4703 = scalar_select %p4702, %s19, 1
        %s4704 = smul.addr %s4703, 8
        %s4705 = scalar_lea.vmem %s5, %s4704
      $region56: #{simclr_forward.1} parent=51 // pred_fallthru
        _
      // Predicated region
      $region57: #{simclr_forward.1} parent=51 // pred_check
        %p4706 = pneg %p178
      $region58: #{simclr_forward.1} parent=51 // pred_check_branch
        %4708 = sbr.rel (%p4706) target = $region60
      $region59: #{simclr_forward.1} parent=51 // pred_region
        %p4709 = scmp.lt.s32.totalorder %s19, 1
        %s4710 = scalar_select %p4709, %s19, 1
        %s4711 = smul.addr %s4710, 8
        %s4712 = scalar_lea.vmem %s6, %s4711
      $region60: #{simclr_forward.1} parent=51 // pred_fallthru
        _
    $region52: #{simclr_forward.1} parent=5 // pred_fallthru
      _
  $region6: #{simclr_forward.1} parent=0 // loop_footer
    %s17 = sadd.s32 1, %s13
  $region7: #{simclr_forward.1} parent=0 // loop_footer_branch
    %12 = sbr.rel target = $region3
  $region8: #{simclr_forward.1} parent=0 // loop_exit
    _

</llo_original>
